<compile_context>
chip_gen: v5e
topology: v5e:2x2
jax: 0.10.0
libtpu: 0.0.40
codegen_flags: <defaults>
</compile_context>

<pallas_src>
import functools

import jax
import jax.numpy as jnp
from jax import lax
from jax.experimental import pallas as pl
from jax.experimental.pallas import tpu as pltpu


# ----------------------------- Pallas kernel --------------------------------

def _sent_encoder_kernel(x_ref, m_ref, *refs, num_layers, hidden):
    """Fused bidirectional multi-layer LSTM + mask.

    x_ref:   [T, B, D0]   time-major input (VMEM)
    m_ref:   [T, B, 1]    mask (VMEM)
    refs:    per layer, per direction (fwd then bwd): wih^T [Din,4H], whh^T [H,4H],
             bias [1,4H]  (6 refs per layer), followed by out_ref [T, B, 2H].
    """
    out_ref = refs[-1]
    w_refs = refs[:-1]
    T, B, _ = x_ref.shape
    H = hidden

    # Current layer input, as per-timestep values living in vregs/VMEM.
    # Layer 0 has a single feature block; deeper layers carry (fwd, bwd) halves
    # separately so no lane-concatenate is needed on the recurrence path.
    xs_f = [x_ref[t] for t in range(T)]      # list of [B, Din]
    xs_b = None

    for layer in range(num_layers):
        base = layer * 6

        def run_direction(wih_ref, whh_ref, b_ref, reverse, xf=xs_f, xb=xs_b):
            # Hoist weight / bias loads out of the time loop.
            wih = wih_ref[...]
            whh = whh_ref[...]
            b = b_ref[...]

            # Hoisted input projection: independent of the recurrence, so it is
            # off the serial critical path (only h @ W_hh remains per step).
            if xb is None:
                gx = [jnp.dot(xf[t], wih, preferred_element_type=jnp.float32) + b
                      for t in range(T)]
            else:
                w_top = wih[:H, :]      # rows matching the forward half of the input
                w_bot = wih[H:, :]      # rows matching the backward half
                gx = [jnp.dot(xf[t], w_top, preferred_element_type=jnp.float32)
                      + jnp.dot(xb[t], w_bot, preferred_element_type=jnp.float32)
                      + b
                      for t in range(T)]

            h = jnp.zeros((B, H), jnp.float32)
            c = jnp.zeros((B, H), jnp.float32)
            outs = [None] * T
            order = range(T - 1, -1, -1) if reverse else range(T)
            for t in order:   # fully unrolled serial recurrence (T is static)
                gates = gx[t] + jnp.dot(h, whh, preferred_element_type=jnp.float32)
                sig = jax.nn.sigmoid(gates)   # one full-width (4H-lane) EUP pass
                th = jnp.tanh(gates)          # one full-width (4H-lane) EUP pass
                i_g = sig[:, 0 * H:1 * H]
                f_g = sig[:, 1 * H:2 * H]
                g_g = th[:, 2 * H:3 * H]
                o_g = sig[:, 3 * H:4 * H]
                c = f_g * c + i_g * g_g
                h = o_g * jnp.tanh(c)
                outs[t] = h
            return outs

        outs_f = run_direction(w_refs[base + 0], w_refs[base + 1], w_refs[base + 2],
                               reverse=False)
        outs_b = run_direction(w_refs[base + 3], w_refs[base + 4], w_refs[base + 5],
                               reverse=True)
        xs_f, xs_b = outs_f, outs_b

    # Assemble [T, B, 2H] once, apply the mask in-kernel, single wide store.
    h_f = jnp.stack(xs_f, axis=0)                     # [T, B, H]
    h_b = jnp.stack(xs_b, axis=0)                     # [T, B, H]
    out = jnp.concatenate([h_f, h_b], axis=-1) * m_ref[...]
    out_ref[...] = out.astype(out_ref.dtype)


# ------------------------------- wrapper -------------------------------------

def sent_encoder_forward(params, sent_reps, sent_masks):
    """Equivalent of SentEncoder.forward in eval mode.

    sent_reps:  [B, T, sent_rep_size] float32
    sent_masks: [B, T] float32
    returns:    [B, T, 2 * sent_hidden_size]
    """
    B, T, D0 = sent_reps.shape
    H = params[0][0][1].shape[0]          # whh^T is [H, 4H]
    L = len(params)

    x_tm = jnp.transpose(sent_reps, (1, 0, 2)).astype(jnp.float32)             # [T, B, D0]
    m_tm = jnp.transpose(sent_masks, (1, 0)).astype(jnp.float32)[:, :, None]   # [T, B, 1]

    weight_inputs = []
    in_specs = [
        pl.BlockSpec((T, B, D0), lambda i: (0, 0, 0)),
        pl.BlockSpec((T, B, 1), lambda i: (0, 0, 0)),
    ]
    for fwd, bwd in params:
        for (wih_t, whh_t, bias) in (fwd, bwd):
            weight_inputs += [wih_t, whh_t, bias]
            in_specs += [
                pl.BlockSpec(wih_t.shape, lambda i: (0, 0)),
                pl.BlockSpec(whh_t.shape, lambda i: (0, 0)),
                pl.BlockSpec(bias.shape, lambda i: (0, 0)),
            ]

    kernel = functools.partial(_sent_encoder_kernel, num_layers=L, hidden=H)
    out_tm = pl.pallas_call(
        kernel,
        out_shape=jax.ShapeDtypeStruct((T, B, 2 * H), jnp.float32),
        grid=(1,),
        in_specs=in_specs,
        out_specs=pl.BlockSpec((T, B, 2 * H), lambda i: (0, 0, 0)),
        compiler_params=pltpu.CompilerParams(
            dimension_semantics=("arbitrary",),
            vmem_limit_bytes=32 * 1024 * 1024,
        ),
    )(x_tm, m_tm, *weight_inputs)
    # TODO(synk): nn.Dropout only fires in training mode; forward here is eval, so it is a no-op.
    return jnp.transpose(out_tm, (1, 0, 2))                                    # [B, T, 2H]


# ------------------------- parameters / reference ----------------------------

def init_params(key, input_size, hidden_size, num_layers):
    """PyTorch nn.LSTM-style init: U(-1/sqrt(H), 1/sqrt(H)); gate order i,f,g,o."""
    params = []
    bound = 1.0 / float(hidden_size) ** 0.5
    din = input_size
    for _ in range(num_layers):
        layer = []
        for _dir in range(2):  # forward, reverse
            key, k1, k2, k3, k4 = jax.random.split(key, 5)
            wih = jax.random.uniform(k1, (4 * hidden_size, din), jnp.float32, -bound, bound)
            whh = jax.random.uniform(k2, (4 * hidden_size, hidden_size), jnp.float32, -bound, bound)
            bih = jax.random.uniform(k3, (4 * hidden_size,), jnp.float32, -bound, bound)
            bhh = jax.random.uniform(k4, (4 * hidden_size,), jnp.float32, -bound, bound)
            layer.append((wih.T, whh.T, (bih + bhh).reshape(1, -1)))
        params.append(tuple(layer))
        din = 2 * hidden_size
    return params


def _lstm_ref_dir(x_tbd, wih_t, whh_t, b, reverse):
    T, B, _ = x_tbd.shape
    H = whh_t.shape[0]
    xs = x_tbd[::-1] if reverse else x_tbd

    def step(carry, x_t):
        h, c = carry
        gates = x_t @ wih_t + h @ whh_t + b
        i_g = jax.nn.sigmoid(gates[:, :H])
        f_g = jax.nn.sigmoid(gates[:, H:2 * H])
        g_g = jnp.tanh(gates[:, 2 * H:3 * H])
        o_g = jax.nn.sigmoid(gates[:, 3 * H:])
        c_new = f_g * c + i_g * g_g
        h_new = o_g * jnp.tanh(c_new)
        return (h_new, c_new), h_new

    init = (jnp.zeros((B, H), jnp.float32), jnp.zeros((B, H), jnp.float32))
    _, hs = lax.scan(step, init, xs)
    return hs[::-1] if reverse else hs


def sent_encoder_ref(params, sent_reps, sent_masks):
    x = jnp.transpose(sent_reps, (1, 0, 2)).astype(jnp.float32)
    for (fwd, bwd) in params:
        of = _lstm_ref_dir(x, *fwd, reverse=False)
        ob = _lstm_ref_dir(x, *bwd, reverse=True)
        x = jnp.concatenate([of, ob], axis=-1)
    h = jnp.transpose(x, (1, 0, 2))
    return h * sent_masks[..., None].astype(h.dtype)


# --------------------------------- main ---------------------------------------

if __name__ == "__main__":
    # config(): sent_hidden_size=32, sent_num_layers=2, dropout=0.15 (unused in eval)
    B, T = 2, 8
    SENT_REP_SIZE = 32
    SENT_HIDDEN_SIZE = 32
    SENT_NUM_LAYERS = 2

    key = jax.random.PRNGKey(0)
    key, kx, km, kp = jax.random.split(key, 4)
    sent_reps = jax.random.normal(kx, (B, T, SENT_REP_SIZE), jnp.float32)
    sent_masks = (jax.random.uniform(km, (B, T)) > 0.3).astype(jnp.float32)

    params = init_params(kp, SENT_REP_SIZE, SENT_HIDDEN_SIZE, SENT_NUM_LAYERS)

    out = sent_encoder_forward(params, sent_reps, sent_masks)
    out = jax.block_until_ready(out)

    ref = jax.block_until_ready(sent_encoder_ref(params, sent_reps, sent_masks))
    assert out.shape == (B, T, 2 * SENT_HIDDEN_SIZE), out.shape
    assert jnp.allclose(out, ref, rtol=2e-3, atol=2e-3), float(jnp.max(jnp.abs(out - ref)))

    print("KERNEL_OK")
</pallas_src>

<mosaic_0001>
module attributes {stable_mosaic.version = 11 : i64} {
  func.func @_sent_encoder_kernel(%arg0: i32, %arg1: memref<8x2x32xf32, #tpu.memory_space<vmem>>, %arg2: memref<8x2x1xf32, #tpu.memory_space<vmem>>, %arg3: memref<32x128xf32, #tpu.memory_space<vmem>>, %arg4: memref<32x128xf32, #tpu.memory_space<vmem>>, %arg5: memref<1x128xf32, #tpu.memory_space<vmem>>, %arg6: memref<32x128xf32, #tpu.memory_space<vmem>>, %arg7: memref<32x128xf32, #tpu.memory_space<vmem>>, %arg8: memref<1x128xf32, #tpu.memory_space<vmem>>, %arg9: memref<64x128xf32, #tpu.memory_space<vmem>>, %arg10: memref<32x128xf32, #tpu.memory_space<vmem>>, %arg11: memref<1x128xf32, #tpu.memory_space<vmem>>, %arg12: memref<64x128xf32, #tpu.memory_space<vmem>>, %arg13: memref<32x128xf32, #tpu.memory_space<vmem>>, %arg14: memref<1x128xf32, #tpu.memory_space<vmem>>, %arg15: memref<8x2x64xf32, #tpu.memory_space<vmem>>) attributes {dimension_semantics = [#tpu.dimension_semantics<arbitrary>], iteration_bounds = array<i64: 1>, scalar_prefetch = 0 : i64, scratch_operands = 0 : i64, tpu.core_type = #tpu.core_type<tc>, window_params = [{pipeline_mode = #tpu.pipeline_mode<synchronous>, transform_indices = @transform_0, window_bounds = array<i64: 8, 2, 32>}, {pipeline_mode = #tpu.pipeline_mode<synchronous>, transform_indices = @transform_1, window_bounds = array<i64: 8, 2, 1>}, {pipeline_mode = #tpu.pipeline_mode<synchronous>, transform_indices = @transform_2, window_bounds = array<i64: 32, 128>}, {pipeline_mode = #tpu.pipeline_mode<synchronous>, transform_indices = @transform_3, window_bounds = array<i64: 32, 128>}, {pipeline_mode = #tpu.pipeline_mode<synchronous>, transform_indices = @transform_4, window_bounds = array<i64: 1, 128>}, {pipeline_mode = #tpu.pipeline_mode<synchronous>, transform_indices = @transform_5, window_bounds = array<i64: 32, 128>}, {pipeline_mode = #tpu.pipeline_mode<synchronous>, transform_indices = @transform_6, window_bounds = array<i64: 32, 128>}, {pipeline_mode = #tpu.pipeline_mode<synchronous>, transform_indices = @transform_7, window_bounds = array<i64: 1, 128>}, {pipeline_mode = #tpu.pipeline_mode<synchronous>, transform_indices = @transform_8, window_bounds = array<i64: 64, 128>}, {pipeline_mode = #tpu.pipeline_mode<synchronous>, transform_indices = @transform_9, window_bounds = array<i64: 32, 128>}, {pipeline_mode = #tpu.pipeline_mode<synchronous>, transform_indices = @transform_10, window_bounds = array<i64: 1, 128>}, {pipeline_mode = #tpu.pipeline_mode<synchronous>, transform_indices = @transform_11, window_bounds = array<i64: 64, 128>}, {pipeline_mode = #tpu.pipeline_mode<synchronous>, transform_indices = @transform_12, window_bounds = array<i64: 32, 128>}, {pipeline_mode = #tpu.pipeline_mode<synchronous>, transform_indices = @transform_13, window_bounds = array<i64: 1, 128>}, {pipeline_mode = #tpu.pipeline_mode<synchronous>, transform_indices = @transform_14, window_bounds = array<i64: 8, 2, 64>}]} {
    %c0 = arith.constant 0 : index
    %c0_0 = arith.constant 0 : index
    %c0_1 = arith.constant 0 : index
    %0 = vector.load %arg1[%c0, %c0_0, %c0_1] : memref<8x2x32xf32, #tpu.memory_space<vmem>>, vector<1x2x32xf32>
    %1 = vector.shape_cast %0 : vector<1x2x32xf32> to vector<2x32xf32>
    %c1 = arith.constant 1 : index
    %c0_2 = arith.constant 0 : index
    %c0_3 = arith.constant 0 : index
    %2 = vector.load %arg1[%c1, %c0_2, %c0_3] : memref<8x2x32xf32, #tpu.memory_space<vmem>>, vector<1x2x32xf32>
    %3 = vector.shape_cast %2 : vector<1x2x32xf32> to vector<2x32xf32>
    %c2 = arith.constant 2 : index
    %c0_4 = arith.constant 0 : index
    %c0_5 = arith.constant 0 : index
    %4 = vector.load %arg1[%c2, %c0_4, %c0_5] : memref<8x2x32xf32, #tpu.memory_space<vmem>>, vector<1x2x32xf32>
    %5 = vector.shape_cast %4 : vector<1x2x32xf32> to vector<2x32xf32>
    %c3 = arith.constant 3 : index
    %c0_6 = arith.constant 0 : index
    %c0_7 = arith.constant 0 : index
    %6 = vector.load %arg1[%c3, %c0_6, %c0_7] : memref<8x2x32xf32, #tpu.memory_space<vmem>>, vector<1x2x32xf32>
    %7 = vector.shape_cast %6 : vector<1x2x32xf32> to vector<2x32xf32>
    %c4 = arith.constant 4 : index
    %c0_8 = arith.constant 0 : index
    %c0_9 = arith.constant 0 : index
    %8 = vector.load %arg1[%c4, %c0_8, %c0_9] : memref<8x2x32xf32, #tpu.memory_space<vmem>>, vector<1x2x32xf32>
    %9 = vector.shape_cast %8 : vector<1x2x32xf32> to vector<2x32xf32>
    %c5 = arith.constant 5 : index
    %c0_10 = arith.constant 0 : index
    %c0_11 = arith.constant 0 : index
    %10 = vector.load %arg1[%c5, %c0_10, %c0_11] : memref<8x2x32xf32, #tpu.memory_space<vmem>>, vector<1x2x32xf32>
    %11 = vector.shape_cast %10 : vector<1x2x32xf32> to vector<2x32xf32>
    %c6 = arith.constant 6 : index
    %c0_12 = arith.constant 0 : index
    %c0_13 = arith.constant 0 : index
    %12 = vector.load %arg1[%c6, %c0_12, %c0_13] : memref<8x2x32xf32, #tpu.memory_space<vmem>>, vector<1x2x32xf32>
    %13 = vector.shape_cast %12 : vector<1x2x32xf32> to vector<2x32xf32>
    %c7 = arith.constant 7 : index
    %c0_14 = arith.constant 0 : index
    %c0_15 = arith.constant 0 : index
    %14 = vector.load %arg1[%c7, %c0_14, %c0_15] : memref<8x2x32xf32, #tpu.memory_space<vmem>>, vector<1x2x32xf32>
    %15 = vector.shape_cast %14 : vector<1x2x32xf32> to vector<2x32xf32>
    %c0_16 = arith.constant 0 : index
    %c0_17 = arith.constant 0 : index
    %16 = vector.load %arg3[%c0_16, %c0_17] : memref<32x128xf32, #tpu.memory_space<vmem>>, vector<32x128xf32>
    %c0_18 = arith.constant 0 : index
    %c0_19 = arith.constant 0 : index
    %17 = vector.load %arg4[%c0_18, %c0_19] : memref<32x128xf32, #tpu.memory_space<vmem>>, vector<32x128xf32>
    %c0_20 = arith.constant 0 : index
    %c0_21 = arith.constant 0 : index
    %18 = vector.load %arg5[%c0_20, %c0_21] : memref<1x128xf32, #tpu.memory_space<vmem>>, vector<1x128xf32>
    %cst = arith.constant dense<0.000000e+00> : vector<2x128xf32>
    %19 = tpu.matmul %1, %16, %cst {dimension_numbers = #tpu.dot_dimension_numbers<[1], [0], [0], [1], [0, 0, 1, 1], [], []>} : vector<2x32xf32>, vector<32x128xf32>, vector<2x128xf32> -> vector<2x128xf32>
    %20 = vector.broadcast %18 : vector<1x128xf32> to vector<2x128xf32>
    %21 = arith.addf %19, %20 : vector<2x128xf32>
    %cst_22 = arith.constant dense<0.000000e+00> : vector<2x128xf32>
    %22 = tpu.matmul %3, %16, %cst_22 {dimension_numbers = #tpu.dot_dimension_numbers<[1], [0], [0], [1], [0, 0, 1, 1], [], []>} : vector<2x32xf32>, vector<32x128xf32>, vector<2x128xf32> -> vector<2x128xf32>
    %23 = vector.broadcast %18 : vector<1x128xf32> to vector<2x128xf32>
    %24 = arith.addf %22, %23 : vector<2x128xf32>
    %cst_23 = arith.constant dense<0.000000e+00> : vector<2x128xf32>
    %25 = tpu.matmul %5, %16, %cst_23 {dimension_numbers = #tpu.dot_dimension_numbers<[1], [0], [0], [1], [0, 0, 1, 1], [], []>} : vector<2x32xf32>, vector<32x128xf32>, vector<2x128xf32> -> vector<2x128xf32>
    %26 = vector.broadcast %18 : vector<1x128xf32> to vector<2x128xf32>
    %27 = arith.addf %25, %26 : vector<2x128xf32>
    %cst_24 = arith.constant dense<0.000000e+00> : vector<2x128xf32>
    %28 = tpu.matmul %7, %16, %cst_24 {dimension_numbers = #tpu.dot_dimension_numbers<[1], [0], [0], [1], [0, 0, 1, 1], [], []>} : vector<2x32xf32>, vector<32x128xf32>, vector<2x128xf32> -> vector<2x128xf32>
    %29 = vector.broadcast %18 : vector<1x128xf32> to vector<2x128xf32>
    %30 = arith.addf %28, %29 : vector<2x128xf32>
    %cst_25 = arith.constant dense<0.000000e+00> : vector<2x128xf32>
    %31 = tpu.matmul %9, %16, %cst_25 {dimension_numbers = #tpu.dot_dimension_numbers<[1], [0], [0], [1], [0, 0, 1, 1], [], []>} : vector<2x32xf32>, vector<32x128xf32>, vector<2x128xf32> -> vector<2x128xf32>
    %32 = vector.broadcast %18 : vector<1x128xf32> to vector<2x128xf32>
    %33 = arith.addf %31, %32 : vector<2x128xf32>
    %cst_26 = arith.constant dense<0.000000e+00> : vector<2x128xf32>
    %34 = tpu.matmul %11, %16, %cst_26 {dimension_numbers = #tpu.dot_dimension_numbers<[1], [0], [0], [1], [0, 0, 1, 1], [], []>} : vector<2x32xf32>, vector<32x128xf32>, vector<2x128xf32> -> vector<2x128xf32>
    %35 = vector.broadcast %18 : vector<1x128xf32> to vector<2x128xf32>
    %36 = arith.addf %34, %35 : vector<2x128xf32>
    %cst_27 = arith.constant dense<0.000000e+00> : vector<2x128xf32>
    %37 = tpu.matmul %13, %16, %cst_27 {dimension_numbers = #tpu.dot_dimension_numbers<[1], [0], [0], [1], [0, 0, 1, 1], [], []>} : vector<2x32xf32>, vector<32x128xf32>, vector<2x128xf32> -> vector<2x128xf32>
    %38 = vector.broadcast %18 : vector<1x128xf32> to vector<2x128xf32>
    %39 = arith.addf %37, %38 : vector<2x128xf32>
    %cst_28 = arith.constant dense<0.000000e+00> : vector<2x128xf32>
    %40 = tpu.matmul %15, %16, %cst_28 {dimension_numbers = #tpu.dot_dimension_numbers<[1], [0], [0], [1], [0, 0, 1, 1], [], []>} : vector<2x32xf32>, vector<32x128xf32>, vector<2x128xf32> -> vector<2x128xf32>
    %41 = vector.broadcast %18 : vector<1x128xf32> to vector<2x128xf32>
    %42 = arith.addf %40, %41 : vector<2x128xf32>
    %cst_29 = arith.constant 0.000000e+00 : f32
    %43 = vector.broadcast %cst_29 : f32 to vector<2x32xf32>
    %cst_30 = arith.constant 0.000000e+00 : f32
    %44 = vector.broadcast %cst_30 : f32 to vector<2x32xf32>
    %cst_31 = arith.constant dense<0.000000e+00> : vector<2x128xf32>
    %45 = tpu.matmul %43, %17, %cst_31 {dimension_numbers = #tpu.dot_dimension_numbers<[1], [0], [0], [1], [0, 0, 1, 1], [], []>} : vector<2x32xf32>, vector<32x128xf32>, vector<2x128xf32> -> vector<2x128xf32>
    %46 = arith.addf %21, %45 : vector<2x128xf32>
    %47 = arith.negf %46 : vector<2x128xf32>
    %48 = math.exp %47 : vector<2x128xf32>
    %cst_32 = arith.constant 1.000000e+00 : f32
    %49 = vector.broadcast %cst_32 : f32 to vector<2x128xf32>
    %50 = arith.addf %49, %48 : vector<2x128xf32>
    %51 = arith.divf %49, %50 : vector<2x128xf32>
    %52 = math.tanh %46 : vector<2x128xf32>
    %53 = vector.extract_strided_slice %51 {offsets = [0, 0], sizes = [2, 32], strides = [1, 1]} : vector<2x128xf32> to vector<2x32xf32>
    %54 = vector.extract_strided_slice %51 {offsets = [0, 32], sizes = [2, 32], strides = [1, 1]} : vector<2x128xf32> to vector<2x32xf32>
    %55 = vector.extract_strided_slice %52 {offsets = [0, 64], sizes = [2, 32], strides = [1, 1]} : vector<2x128xf32> to vector<2x32xf32>
    %56 = vector.extract_strided_slice %51 {offsets = [0, 96], sizes = [2, 32], strides = [1, 1]} : vector<2x128xf32> to vector<2x32xf32>
    %57 = arith.mulf %54, %44 : vector<2x32xf32>
    %58 = arith.mulf %53, %55 : vector<2x32xf32>
    %59 = arith.addf %57, %58 : vector<2x32xf32>
    %60 = math.tanh %59 : vector<2x32xf32>
    %61 = arith.mulf %56, %60 : vector<2x32xf32>
    %cst_33 = arith.constant dense<0.000000e+00> : vector<2x128xf32>
    %62 = tpu.matmul %61, %17, %cst_33 {dimension_numbers = #tpu.dot_dimension_numbers<[1], [0], [0], [1], [0, 0, 1, 1], [], []>} : vector<2x32xf32>, vector<32x128xf32>, vector<2x128xf32> -> vector<2x128xf32>
    %63 = arith.addf %24, %62 : vector<2x128xf32>
    %64 = arith.negf %63 : vector<2x128xf32>
    %65 = math.exp %64 : vector<2x128xf32>
    %cst_34 = arith.constant 1.000000e+00 : f32
    %66 = vector.broadcast %cst_34 : f32 to vector<2x128xf32>
    %67 = arith.addf %66, %65 : vector<2x128xf32>
    %68 = arith.divf %66, %67 : vector<2x128xf32>
    %69 = math.tanh %63 : vector<2x128xf32>
    %70 = vector.extract_strided_slice %68 {offsets = [0, 0], sizes = [2, 32], strides = [1, 1]} : vector<2x128xf32> to vector<2x32xf32>
    %71 = vector.extract_strided_slice %68 {offsets = [0, 32], sizes = [2, 32], strides = [1, 1]} : vector<2x128xf32> to vector<2x32xf32>
    %72 = vector.extract_strided_slice %69 {offsets = [0, 64], sizes = [2, 32], strides = [1, 1]} : vector<2x128xf32> to vector<2x32xf32>
    %73 = vector.extract_strided_slice %68 {offsets = [0, 96], sizes = [2, 32], strides = [1, 1]} : vector<2x128xf32> to vector<2x32xf32>
    %74 = arith.mulf %71, %59 : vector<2x32xf32>
    %75 = arith.mulf %70, %72 : vector<2x32xf32>
    %76 = arith.addf %74, %75 : vector<2x32xf32>
    %77 = math.tanh %76 : vector<2x32xf32>
    %78 = arith.mulf %73, %77 : vector<2x32xf32>
    %cst_35 = arith.constant dense<0.000000e+00> : vector<2x128xf32>
    %79 = tpu.matmul %78, %17, %cst_35 {dimension_numbers = #tpu.dot_dimension_numbers<[1], [0], [0], [1], [0, 0, 1, 1], [], []>} : vector<2x32xf32>, vector<32x128xf32>, vector<2x128xf32> -> vector<2x128xf32>
    %80 = arith.addf %27, %79 : vector<2x128xf32>
    %81 = arith.negf %80 : vector<2x128xf32>
    %82 = math.exp %81 : vector<2x128xf32>
    %cst_36 = arith.constant 1.000000e+00 : f32
    %83 = vector.broadcast %cst_36 : f32 to vector<2x128xf32>
    %84 = arith.addf %83, %82 : vector<2x128xf32>
    %85 = arith.divf %83, %84 : vector<2x128xf32>
    %86 = math.tanh %80 : vector<2x128xf32>
    %87 = vector.extract_strided_slice %85 {offsets = [0, 0], sizes = [2, 32], strides = [1, 1]} : vector<2x128xf32> to vector<2x32xf32>
    %88 = vector.extract_strided_slice %85 {offsets = [0, 32], sizes = [2, 32], strides = [1, 1]} : vector<2x128xf32> to vector<2x32xf32>
    %89 = vector.extract_strided_slice %86 {offsets = [0, 64], sizes = [2, 32], strides = [1, 1]} : vector<2x128xf32> to vector<2x32xf32>
    %90 = vector.extract_strided_slice %85 {offsets = [0, 96], sizes = [2, 32], strides = [1, 1]} : vector<2x128xf32> to vector<2x32xf32>
    %91 = arith.mulf %88, %76 : vector<2x32xf32>
    %92 = arith.mulf %87, %89 : vector<2x32xf32>
    %93 = arith.addf %91, %92 : vector<2x32xf32>
    %94 = math.tanh %93 : vector<2x32xf32>
    %95 = arith.mulf %90, %94 : vector<2x32xf32>
    %cst_37 = arith.constant dense<0.000000e+00> : vector<2x128xf32>
    %96 = tpu.matmul %95, %17, %cst_37 {dimension_numbers = #tpu.dot_dimension_numbers<[1], [0], [0], [1], [0, 0, 1, 1], [], []>} : vector<2x32xf32>, vector<32x128xf32>, vector<2x128xf32> -> vector<2x128xf32>
    %97 = arith.addf %30, %96 : vector<2x128xf32>
    %98 = arith.negf %97 : vector<2x128xf32>
    %99 = math.exp %98 : vector<2x128xf32>
    %cst_38 = arith.constant 1.000000e+00 : f32
    %100 = vector.broadcast %cst_38 : f32 to vector<2x128xf32>
    %101 = arith.addf %100, %99 : vector<2x128xf32>
    %102 = arith.divf %100, %101 : vector<2x128xf32>
    %103 = math.tanh %97 : vector<2x128xf32>
    %104 = vector.extract_strided_slice %102 {offsets = [0, 0], sizes = [2, 32], strides = [1, 1]} : vector<2x128xf32> to vector<2x32xf32>
    %105 = vector.extract_strided_slice %102 {offsets = [0, 32], sizes = [2, 32], strides = [1, 1]} : vector<2x128xf32> to vector<2x32xf32>
    %106 = vector.extract_strided_slice %103 {offsets = [0, 64], sizes = [2, 32], strides = [1, 1]} : vector<2x128xf32> to vector<2x32xf32>
    %107 = vector.extract_strided_slice %102 {offsets = [0, 96], sizes = [2, 32], strides = [1, 1]} : vector<2x128xf32> to vector<2x32xf32>
    %108 = arith.mulf %105, %93 : vector<2x32xf32>
    %109 = arith.mulf %104, %106 : vector<2x32xf32>
    %110 = arith.addf %108, %109 : vector<2x32xf32>
    %111 = math.tanh %110 : vector<2x32xf32>
    %112 = arith.mulf %107, %111 : vector<2x32xf32>
    %cst_39 = arith.constant dense<0.000000e+00> : vector<2x128xf32>
    %113 = tpu.matmul %112, %17, %cst_39 {dimension_numbers = #tpu.dot_dimension_numbers<[1], [0], [0], [1], [0, 0, 1, 1], [], []>} : vector<2x32xf32>, vector<32x128xf32>, vector<2x128xf32> -> vector<2x128xf32>
    %114 = arith.addf %33, %113 : vector<2x128xf32>
    %115 = arith.negf %114 : vector<2x128xf32>
    %116 = math.exp %115 : vector<2x128xf32>
    %cst_40 = arith.constant 1.000000e+00 : f32
    %117 = vector.broadcast %cst_40 : f32 to vector<2x128xf32>
    %118 = arith.addf %117, %116 : vector<2x128xf32>
    %119 = arith.divf %117, %118 : vector<2x128xf32>
    %120 = math.tanh %114 : vector<2x128xf32>
    %121 = vector.extract_strided_slice %119 {offsets = [0, 0], sizes = [2, 32], strides = [1, 1]} : vector<2x128xf32> to vector<2x32xf32>
    %122 = vector.extract_strided_slice %119 {offsets = [0, 32], sizes = [2, 32], strides = [1, 1]} : vector<2x128xf32> to vector<2x32xf32>
    %123 = vector.extract_strided_slice %120 {offsets = [0, 64], sizes = [2, 32], strides = [1, 1]} : vector<2x128xf32> to vector<2x32xf32>
    %124 = vector.extract_strided_slice %119 {offsets = [0, 96], sizes = [2, 32], strides = [1, 1]} : vector<2x128xf32> to vector<2x32xf32>
    %125 = arith.mulf %122, %110 : vector<2x32xf32>
    %126 = arith.mulf %121, %123 : vector<2x32xf32>
    %127 = arith.addf %125, %126 : vector<2x32xf32>
    %128 = math.tanh %127 : vector<2x32xf32>
    %129 = arith.mulf %124, %128 : vector<2x32xf32>
    %cst_41 = arith.constant dense<0.000000e+00> : vector<2x128xf32>
    %130 = tpu.matmul %129, %17, %cst_41 {dimension_numbers = #tpu.dot_dimension_numbers<[1], [0], [0], [1], [0, 0, 1, 1], [], []>} : vector<2x32xf32>, vector<32x128xf32>, vector<2x128xf32> -> vector<2x128xf32>
    %131 = arith.addf %36, %130 : vector<2x128xf32>
    %132 = arith.negf %131 : vector<2x128xf32>
    %133 = math.exp %132 : vector<2x128xf32>
    %cst_42 = arith.constant 1.000000e+00 : f32
    %134 = vector.broadcast %cst_42 : f32 to vector<2x128xf32>
    %135 = arith.addf %134, %133 : vector<2x128xf32>
    %136 = arith.divf %134, %135 : vector<2x128xf32>
    %137 = math.tanh %131 : vector<2x128xf32>
    %138 = vector.extract_strided_slice %136 {offsets = [0, 0], sizes = [2, 32], strides = [1, 1]} : vector<2x128xf32> to vector<2x32xf32>
    %139 = vector.extract_strided_slice %136 {offsets = [0, 32], sizes = [2, 32], strides = [1, 1]} : vector<2x128xf32> to vector<2x32xf32>
    %140 = vector.extract_strided_slice %137 {offsets = [0, 64], sizes = [2, 32], strides = [1, 1]} : vector<2x128xf32> to vector<2x32xf32>
    %141 = vector.extract_strided_slice %136 {offsets = [0, 96], sizes = [2, 32], strides = [1, 1]} : vector<2x128xf32> to vector<2x32xf32>
    %142 = arith.mulf %139, %127 : vector<2x32xf32>
    %143 = arith.mulf %138, %140 : vector<2x32xf32>
    %144 = arith.addf %142, %143 : vector<2x32xf32>
    %145 = math.tanh %144 : vector<2x32xf32>
    %146 = arith.mulf %141, %145 : vector<2x32xf32>
    %cst_43 = arith.constant dense<0.000000e+00> : vector<2x128xf32>
    %147 = tpu.matmul %146, %17, %cst_43 {dimension_numbers = #tpu.dot_dimension_numbers<[1], [0], [0], [1], [0, 0, 1, 1], [], []>} : vector<2x32xf32>, vector<32x128xf32>, vector<2x128xf32> -> vector<2x128xf32>
    %148 = arith.addf %39, %147 : vector<2x128xf32>
    %149 = arith.negf %148 : vector<2x128xf32>
    %150 = math.exp %149 : vector<2x128xf32>
    %cst_44 = arith.constant 1.000000e+00 : f32
    %151 = vector.broadcast %cst_44 : f32 to vector<2x128xf32>
    %152 = arith.addf %151, %150 : vector<2x128xf32>
    %153 = arith.divf %151, %152 : vector<2x128xf32>
    %154 = math.tanh %148 : vector<2x128xf32>
    %155 = vector.extract_strided_slice %153 {offsets = [0, 0], sizes = [2, 32], strides = [1, 1]} : vector<2x128xf32> to vector<2x32xf32>
    %156 = vector.extract_strided_slice %153 {offsets = [0, 32], sizes = [2, 32], strides = [1, 1]} : vector<2x128xf32> to vector<2x32xf32>
    %157 = vector.extract_strided_slice %154 {offsets = [0, 64], sizes = [2, 32], strides = [1, 1]} : vector<2x128xf32> to vector<2x32xf32>
    %158 = vector.extract_strided_slice %153 {offsets = [0, 96], sizes = [2, 32], strides = [1, 1]} : vector<2x128xf32> to vector<2x32xf32>
    %159 = arith.mulf %156, %144 : vector<2x32xf32>
    %160 = arith.mulf %155, %157 : vector<2x32xf32>
    %161 = arith.addf %159, %160 : vector<2x32xf32>
    %162 = math.tanh %161 : vector<2x32xf32>
    %163 = arith.mulf %158, %162 : vector<2x32xf32>
    %cst_45 = arith.constant dense<0.000000e+00> : vector<2x128xf32>
    %164 = tpu.matmul %163, %17, %cst_45 {dimension_numbers = #tpu.dot_dimension_numbers<[1], [0], [0], [1], [0, 0, 1, 1], [], []>} : vector<2x32xf32>, vector<32x128xf32>, vector<2x128xf32> -> vector<2x128xf32>
    %165 = arith.addf %42, %164 : vector<2x128xf32>
    %166 = arith.negf %165 : vector<2x128xf32>
    %167 = math.exp %166 : vector<2x128xf32>
    %cst_46 = arith.constant 1.000000e+00 : f32
    %168 = vector.broadcast %cst_46 : f32 to vector<2x128xf32>
    %169 = arith.addf %168, %167 : vector<2x128xf32>
    %170 = arith.divf %168, %169 : vector<2x128xf32>
    %171 = math.tanh %165 : vector<2x128xf32>
    %172 = vector.extract_strided_slice %170 {offsets = [0, 0], sizes = [2, 32], strides = [1, 1]} : vector<2x128xf32> to vector<2x32xf32>
    %173 = vector.extract_strided_slice %170 {offsets = [0, 32], sizes = [2, 32], strides = [1, 1]} : vector<2x128xf32> to vector<2x32xf32>
    %174 = vector.extract_strided_slice %171 {offsets = [0, 64], sizes = [2, 32], strides = [1, 1]} : vector<2x128xf32> to vector<2x32xf32>
    %175 = vector.extract_strided_slice %170 {offsets = [0, 96], sizes = [2, 32], strides = [1, 1]} : vector<2x128xf32> to vector<2x32xf32>
    %176 = arith.mulf %173, %161 : vector<2x32xf32>
    %177 = arith.mulf %172, %174 : vector<2x32xf32>
    %178 = arith.addf %176, %177 : vector<2x32xf32>
    %179 = math.tanh %178 : vector<2x32xf32>
    %180 = arith.mulf %175, %179 : vector<2x32xf32>
    %c0_47 = arith.constant 0 : index
    %c0_48 = arith.constant 0 : index
    %181 = vector.load %arg6[%c0_47, %c0_48] : memref<32x128xf32, #tpu.memory_space<vmem>>, vector<32x128xf32>
    %c0_49 = arith.constant 0 : index
    %c0_50 = arith.constant 0 : index
    %182 = vector.load %arg7[%c0_49, %c0_50] : memref<32x128xf32, #tpu.memory_space<vmem>>, vector<32x128xf32>
    %c0_51 = arith.constant 0 : index
    %c0_52 = arith.constant 0 : index
    %183 = vector.load %arg8[%c0_51, %c0_52] : memref<1x128xf32, #tpu.memory_space<vmem>>, vector<1x128xf32>
    %cst_53 = arith.constant dense<0.000000e+00> : vector<2x128xf32>
    %184 = tpu.matmul %1, %181, %cst_53 {dimension_numbers = #tpu.dot_dimension_numbers<[1], [0], [0], [1], [0, 0, 1, 1], [], []>} : vector<2x32xf32>, vector<32x128xf32>, vector<2x128xf32> -> vector<2x128xf32>
    %185 = vector.broadcast %183 : vector<1x128xf32> to vector<2x128xf32>
    %186 = arith.addf %184, %185 : vector<2x128xf32>
    %cst_54 = arith.constant dense<0.000000e+00> : vector<2x128xf32>
    %187 = tpu.matmul %3, %181, %cst_54 {dimension_numbers = #tpu.dot_dimension_numbers<[1], [0], [0], [1], [0, 0, 1, 1], [], []>} : vector<2x32xf32>, vector<32x128xf32>, vector<2x128xf32> -> vector<2x128xf32>
    %188 = vector.broadcast %183 : vector<1x128xf32> to vector<2x128xf32>
    %189 = arith.addf %187, %188 : vector<2x128xf32>
    %cst_55 = arith.constant dense<0.000000e+00> : vector<2x128xf32>
    %190 = tpu.matmul %5, %181, %cst_55 {dimension_numbers = #tpu.dot_dimension_numbers<[1], [0], [0], [1], [0, 0, 1, 1], [], []>} : vector<2x32xf32>, vector<32x128xf32>, vector<2x128xf32> -> vector<2x128xf32>
    %191 = vector.broadcast %183 : vector<1x128xf32> to vector<2x128xf32>
    %192 = arith.addf %190, %191 : vector<2x128xf32>
    %cst_56 = arith.constant dense<0.000000e+00> : vector<2x128xf32>
    %193 = tpu.matmul %7, %181, %cst_56 {dimension_numbers = #tpu.dot_dimension_numbers<[1], [0], [0], [1], [0, 0, 1, 1], [], []>} : vector<2x32xf32>, vector<32x128xf32>, vector<2x128xf32> -> vector<2x128xf32>
    %194 = vector.broadcast %183 : vector<1x128xf32> to vector<2x128xf32>
    %195 = arith.addf %193, %194 : vector<2x128xf32>
    %cst_57 = arith.constant dense<0.000000e+00> : vector<2x128xf32>
    %196 = tpu.matmul %9, %181, %cst_57 {dimension_numbers = #tpu.dot_dimension_numbers<[1], [0], [0], [1], [0, 0, 1, 1], [], []>} : vector<2x32xf32>, vector<32x128xf32>, vector<2x128xf32> -> vector<2x128xf32>
    %197 = vector.broadcast %183 : vector<1x128xf32> to vector<2x128xf32>
    %198 = arith.addf %196, %197 : vector<2x128xf32>
    %cst_58 = arith.constant dense<0.000000e+00> : vector<2x128xf32>
    %199 = tpu.matmul %11, %181, %cst_58 {dimension_numbers = #tpu.dot_dimension_numbers<[1], [0], [0], [1], [0, 0, 1, 1], [], []>} : vector<2x32xf32>, vector<32x128xf32>, vector<2x128xf32> -> vector<2x128xf32>
    %200 = vector.broadcast %183 : vector<1x128xf32> to vector<2x128xf32>
    %201 = arith.addf %199, %200 : vector<2x128xf32>
    %cst_59 = arith.constant dense<0.000000e+00> : vector<2x128xf32>
    %202 = tpu.matmul %13, %181, %cst_59 {dimension_numbers = #tpu.dot_dimension_numbers<[1], [0], [0], [1], [0, 0, 1, 1], [], []>} : vector<2x32xf32>, vector<32x128xf32>, vector<2x128xf32> -> vector<2x128xf32>
    %203 = vector.broadcast %183 : vector<1x128xf32> to vector<2x128xf32>
    %204 = arith.addf %202, %203 : vector<2x128xf32>
    %cst_60 = arith.constant dense<0.000000e+00> : vector<2x128xf32>
    %205 = tpu.matmul %15, %181, %cst_60 {dimension_numbers = #tpu.dot_dimension_numbers<[1], [0], [0], [1], [0, 0, 1, 1], [], []>} : vector<2x32xf32>, vector<32x128xf32>, vector<2x128xf32> -> vector<2x128xf32>
    %206 = vector.broadcast %183 : vector<1x128xf32> to vector<2x128xf32>
    %207 = arith.addf %205, %206 : vector<2x128xf32>
    %cst_61 = arith.constant 0.000000e+00 : f32
    %208 = vector.broadcast %cst_61 : f32 to vector<2x32xf32>
    %cst_62 = arith.constant 0.000000e+00 : f32
    %209 = vector.broadcast %cst_62 : f32 to vector<2x32xf32>
    %cst_63 = arith.constant dense<0.000000e+00> : vector<2x128xf32>
    %210 = tpu.matmul %208, %182, %cst_63 {dimension_numbers = #tpu.dot_dimension_numbers<[1], [0], [0], [1], [0, 0, 1, 1], [], []>} : vector<2x32xf32>, vector<32x128xf32>, vector<2x128xf32> -> vector<2x128xf32>
    %211 = arith.addf %207, %210 : vector<2x128xf32>
    %212 = arith.negf %211 : vector<2x128xf32>
    %213 = math.exp %212 : vector<2x128xf32>
    %cst_64 = arith.constant 1.000000e+00 : f32
    %214 = vector.broadcast %cst_64 : f32 to vector<2x128xf32>
    %215 = arith.addf %214, %213 : vector<2x128xf32>
    %216 = arith.divf %214, %215 : vector<2x128xf32>
    %217 = math.tanh %211 : vector<2x128xf32>
    %218 = vector.extract_strided_slice %216 {offsets = [0, 0], sizes = [2, 32], strides = [1, 1]} : vector<2x128xf32> to vector<2x32xf32>
    %219 = vector.extract_strided_slice %216 {offsets = [0, 32], sizes = [2, 32], strides = [1, 1]} : vector<2x128xf32> to vector<2x32xf32>
    %220 = vector.extract_strided_slice %217 {offsets = [0, 64], sizes = [2, 32], strides = [1, 1]} : vector<2x128xf32> to vector<2x32xf32>
    %221 = vector.extract_strided_slice %216 {offsets = [0, 96], sizes = [2, 32], strides = [1, 1]} : vector<2x128xf32> to vector<2x32xf32>
    %222 = arith.mulf %219, %209 : vector<2x32xf32>
    %223 = arith.mulf %218, %220 : vector<2x32xf32>
    %224 = arith.addf %222, %223 : vector<2x32xf32>
    %225 = math.tanh %224 : vector<2x32xf32>
    %226 = arith.mulf %221, %225 : vector<2x32xf32>
    %cst_65 = arith.constant dense<0.000000e+00> : vector<2x128xf32>
    %227 = tpu.matmul %226, %182, %cst_65 {dimension_numbers = #tpu.dot_dimension_numbers<[1], [0], [0], [1], [0, 0, 1, 1], [], []>} : vector<2x32xf32>, vector<32x128xf32>, vector<2x128xf32> -> vector<2x128xf32>
    %228 = arith.addf %204, %227 : vector<2x128xf32>
    %229 = arith.negf %228 : vector<2x128xf32>
    %230 = math.exp %229 : vector<2x128xf32>
    %cst_66 = arith.constant 1.000000e+00 : f32
    %231 = vector.broadcast %cst_66 : f32 to vector<2x128xf32>
    %232 = arith.addf %231, %230 : vector<2x128xf32>
    %233 = arith.divf %231, %232 : vector<2x128xf32>
    %234 = math.tanh %228 : vector<2x128xf32>
    %235 = vector.extract_strided_slice %233 {offsets = [0, 0], sizes = [2, 32], strides = [1, 1]} : vector<2x128xf32> to vector<2x32xf32>
    %236 = vector.extract_strided_slice %233 {offsets = [0, 32], sizes = [2, 32], strides = [1, 1]} : vector<2x128xf32> to vector<2x32xf32>
    %237 = vector.extract_strided_slice %234 {offsets = [0, 64], sizes = [2, 32], strides = [1, 1]} : vector<2x128xf32> to vector<2x32xf32>
    %238 = vector.extract_strided_slice %233 {offsets = [0, 96], sizes = [2, 32], strides = [1, 1]} : vector<2x128xf32> to vector<2x32xf32>
    %239 = arith.mulf %236, %224 : vector<2x32xf32>
    %240 = arith.mulf %235, %237 : vector<2x32xf32>
    %241 = arith.addf %239, %240 : vector<2x32xf32>
    %242 = math.tanh %241 : vector<2x32xf32>
    %243 = arith.mulf %238, %242 : vector<2x32xf32>
    %cst_67 = arith.constant dense<0.000000e+00> : vector<2x128xf32>
    %244 = tpu.matmul %243, %182, %cst_67 {dimension_numbers = #tpu.dot_dimension_numbers<[1], [0], [0], [1], [0, 0, 1, 1], [], []>} : vector<2x32xf32>, vector<32x128xf32>, vector<2x128xf32> -> vector<2x128xf32>
    %245 = arith.addf %201, %244 : vector<2x128xf32>
    %246 = arith.negf %245 : vector<2x128xf32>
    %247 = math.exp %246 : vector<2x128xf32>
    %cst_68 = arith.constant 1.000000e+00 : f32
    %248 = vector.broadcast %cst_68 : f32 to vector<2x128xf32>
    %249 = arith.addf %248, %247 : vector<2x128xf32>
    %250 = arith.divf %248, %249 : vector<2x128xf32>
    %251 = math.tanh %245 : vector<2x128xf32>
    %252 = vector.extract_strided_slice %250 {offsets = [0, 0], sizes = [2, 32], strides = [1, 1]} : vector<2x128xf32> to vector<2x32xf32>
    %253 = vector.extract_strided_slice %250 {offsets = [0, 32], sizes = [2, 32], strides = [1, 1]} : vector<2x128xf32> to vector<2x32xf32>
    %254 = vector.extract_strided_slice %251 {offsets = [0, 64], sizes = [2, 32], strides = [1, 1]} : vector<2x128xf32> to vector<2x32xf32>
    %255 = vector.extract_strided_slice %250 {offsets = [0, 96], sizes = [2, 32], strides = [1, 1]} : vector<2x128xf32> to vector<2x32xf32>
    %256 = arith.mulf %253, %241 : vector<2x32xf32>
    %257 = arith.mulf %252, %254 : vector<2x32xf32>
    %258 = arith.addf %256, %257 : vector<2x32xf32>
    %259 = math.tanh %258 : vector<2x32xf32>
    %260 = arith.mulf %255, %259 : vector<2x32xf32>
    %cst_69 = arith.constant dense<0.000000e+00> : vector<2x128xf32>
    %261 = tpu.matmul %260, %182, %cst_69 {dimension_numbers = #tpu.dot_dimension_numbers<[1], [0], [0], [1], [0, 0, 1, 1], [], []>} : vector<2x32xf32>, vector<32x128xf32>, vector<2x128xf32> -> vector<2x128xf32>
    %262 = arith.addf %198, %261 : vector<2x128xf32>
    %263 = arith.negf %262 : vector<2x128xf32>
    %264 = math.exp %263 : vector<2x128xf32>
    %cst_70 = arith.constant 1.000000e+00 : f32
    %265 = vector.broadcast %cst_70 : f32 to vector<2x128xf32>
    %266 = arith.addf %265, %264 : vector<2x128xf32>
    %267 = arith.divf %265, %266 : vector<2x128xf32>
    %268 = math.tanh %262 : vector<2x128xf32>
    %269 = vector.extract_strided_slice %267 {offsets = [0, 0], sizes = [2, 32], strides = [1, 1]} : vector<2x128xf32> to vector<2x32xf32>
    %270 = vector.extract_strided_slice %267 {offsets = [0, 32], sizes = [2, 32], strides = [1, 1]} : vector<2x128xf32> to vector<2x32xf32>
    %271 = vector.extract_strided_slice %268 {offsets = [0, 64], sizes = [2, 32], strides = [1, 1]} : vector<2x128xf32> to vector<2x32xf32>
    %272 = vector.extract_strided_slice %267 {offsets = [0, 96], sizes = [2, 32], strides = [1, 1]} : vector<2x128xf32> to vector<2x32xf32>
    %273 = arith.mulf %270, %258 : vector<2x32xf32>
    %274 = arith.mulf %269, %271 : vector<2x32xf32>
    %275 = arith.addf %273, %274 : vector<2x32xf32>
    %276 = math.tanh %275 : vector<2x32xf32>
    %277 = arith.mulf %272, %276 : vector<2x32xf32>
    %cst_71 = arith.constant dense<0.000000e+00> : vector<2x128xf32>
    %278 = tpu.matmul %277, %182, %cst_71 {dimension_numbers = #tpu.dot_dimension_numbers<[1], [0], [0], [1], [0, 0, 1, 1], [], []>} : vector<2x32xf32>, vector<32x128xf32>, vector<2x128xf32> -> vector<2x128xf32>
    %279 = arith.addf %195, %278 : vector<2x128xf32>
    %280 = arith.negf %279 : vector<2x128xf32>
    %281 = math.exp %280 : vector<2x128xf32>
    %cst_72 = arith.constant 1.000000e+00 : f32
    %282 = vector.broadcast %cst_72 : f32 to vector<2x128xf32>
    %283 = arith.addf %282, %281 : vector<2x128xf32>
    %284 = arith.divf %282, %283 : vector<2x128xf32>
    %285 = math.tanh %279 : vector<2x128xf32>
    %286 = vector.extract_strided_slice %284 {offsets = [0, 0], sizes = [2, 32], strides = [1, 1]} : vector<2x128xf32> to vector<2x32xf32>
    %287 = vector.extract_strided_slice %284 {offsets = [0, 32], sizes = [2, 32], strides = [1, 1]} : vector<2x128xf32> to vector<2x32xf32>
    %288 = vector.extract_strided_slice %285 {offsets = [0, 64], sizes = [2, 32], strides = [1, 1]} : vector<2x128xf32> to vector<2x32xf32>
    %289 = vector.extract_strided_slice %284 {offsets = [0, 96], sizes = [2, 32], strides = [1, 1]} : vector<2x128xf32> to vector<2x32xf32>
    %290 = arith.mulf %287, %275 : vector<2x32xf32>
    %291 = arith.mulf %286, %288 : vector<2x32xf32>
    %292 = arith.addf %290, %291 : vector<2x32xf32>
    %293 = math.tanh %292 : vector<2x32xf32>
    %294 = arith.mulf %289, %293 : vector<2x32xf32>
    %cst_73 = arith.constant dense<0.000000e+00> : vector<2x128xf32>
    %295 = tpu.matmul %294, %182, %cst_73 {dimension_numbers = #tpu.dot_dimension_numbers<[1], [0], [0], [1], [0, 0, 1, 1], [], []>} : vector<2x32xf32>, vector<32x128xf32>, vector<2x128xf32> -> vector<2x128xf32>
    %296 = arith.addf %192, %295 : vector<2x128xf32>
    %297 = arith.negf %296 : vector<2x128xf32>
    %298 = math.exp %297 : vector<2x128xf32>
    %cst_74 = arith.constant 1.000000e+00 : f32
    %299 = vector.broadcast %cst_74 : f32 to vector<2x128xf32>
    %300 = arith.addf %299, %298 : vector<2x128xf32>
    %301 = arith.divf %299, %300 : vector<2x128xf32>
    %302 = math.tanh %296 : vector<2x128xf32>
    %303 = vector.extract_strided_slice %301 {offsets = [0, 0], sizes = [2, 32], strides = [1, 1]} : vector<2x128xf32> to vector<2x32xf32>
    %304 = vector.extract_strided_slice %301 {offsets = [0, 32], sizes = [2, 32], strides = [1, 1]} : vector<2x128xf32> to vector<2x32xf32>
    %305 = vector.extract_strided_slice %302 {offsets = [0, 64], sizes = [2, 32], strides = [1, 1]} : vector<2x128xf32> to vector<2x32xf32>
    %306 = vector.extract_strided_slice %301 {offsets = [0, 96], sizes = [2, 32], strides = [1, 1]} : vector<2x128xf32> to vector<2x32xf32>
    %307 = arith.mulf %304, %292 : vector<2x32xf32>
    %308 = arith.mulf %303, %305 : vector<2x32xf32>
    %309 = arith.addf %307, %308 : vector<2x32xf32>
    %310 = math.tanh %309 : vector<2x32xf32>
    %311 = arith.mulf %306, %310 : vector<2x32xf32>
    %cst_75 = arith.constant dense<0.000000e+00> : vector<2x128xf32>
    %312 = tpu.matmul %311, %182, %cst_75 {dimension_numbers = #tpu.dot_dimension_numbers<[1], [0], [0], [1], [0, 0, 1, 1], [], []>} : vector<2x32xf32>, vector<32x128xf32>, vector<2x128xf32> -> vector<2x128xf32>
    %313 = arith.addf %189, %312 : vector<2x128xf32>
    %314 = arith.negf %313 : vector<2x128xf32>
    %315 = math.exp %314 : vector<2x128xf32>
    %cst_76 = arith.constant 1.000000e+00 : f32
    %316 = vector.broadcast %cst_76 : f32 to vector<2x128xf32>
    %317 = arith.addf %316, %315 : vector<2x128xf32>
    %318 = arith.divf %316, %317 : vector<2x128xf32>
    %319 = math.tanh %313 : vector<2x128xf32>
    %320 = vector.extract_strided_slice %318 {offsets = [0, 0], sizes = [2, 32], strides = [1, 1]} : vector<2x128xf32> to vector<2x32xf32>
    %321 = vector.extract_strided_slice %318 {offsets = [0, 32], sizes = [2, 32], strides = [1, 1]} : vector<2x128xf32> to vector<2x32xf32>
    %322 = vector.extract_strided_slice %319 {offsets = [0, 64], sizes = [2, 32], strides = [1, 1]} : vector<2x128xf32> to vector<2x32xf32>
    %323 = vector.extract_strided_slice %318 {offsets = [0, 96], sizes = [2, 32], strides = [1, 1]} : vector<2x128xf32> to vector<2x32xf32>
    %324 = arith.mulf %321, %309 : vector<2x32xf32>
    %325 = arith.mulf %320, %322 : vector<2x32xf32>
    %326 = arith.addf %324, %325 : vector<2x32xf32>
    %327 = math.tanh %326 : vector<2x32xf32>
    %328 = arith.mulf %323, %327 : vector<2x32xf32>
    %cst_77 = arith.constant dense<0.000000e+00> : vector<2x128xf32>
    %329 = tpu.matmul %328, %182, %cst_77 {dimension_numbers = #tpu.dot_dimension_numbers<[1], [0], [0], [1], [0, 0, 1, 1], [], []>} : vector<2x32xf32>, vector<32x128xf32>, vector<2x128xf32> -> vector<2x128xf32>
    %330 = arith.addf %186, %329 : vector<2x128xf32>
    %331 = arith.negf %330 : vector<2x128xf32>
    %332 = math.exp %331 : vector<2x128xf32>
    %cst_78 = arith.constant 1.000000e+00 : f32
    %333 = vector.broadcast %cst_78 : f32 to vector<2x128xf32>
    %334 = arith.addf %333, %332 : vector<2x128xf32>
    %335 = arith.divf %333, %334 : vector<2x128xf32>
    %336 = math.tanh %330 : vector<2x128xf32>
    %337 = vector.extract_strided_slice %335 {offsets = [0, 0], sizes = [2, 32], strides = [1, 1]} : vector<2x128xf32> to vector<2x32xf32>
    %338 = vector.extract_strided_slice %335 {offsets = [0, 32], sizes = [2, 32], strides = [1, 1]} : vector<2x128xf32> to vector<2x32xf32>
    %339 = vector.extract_strided_slice %336 {offsets = [0, 64], sizes = [2, 32], strides = [1, 1]} : vector<2x128xf32> to vector<2x32xf32>
    %340 = vector.extract_strided_slice %335 {offsets = [0, 96], sizes = [2, 32], strides = [1, 1]} : vector<2x128xf32> to vector<2x32xf32>
    %341 = arith.mulf %338, %326 : vector<2x32xf32>
    %342 = arith.mulf %337, %339 : vector<2x32xf32>
    %343 = arith.addf %341, %342 : vector<2x32xf32>
    %344 = math.tanh %343 : vector<2x32xf32>
    %345 = arith.mulf %340, %344 : vector<2x32xf32>
    %c0_79 = arith.constant 0 : index
    %c0_80 = arith.constant 0 : index
    %346 = vector.load %arg9[%c0_79, %c0_80] : memref<64x128xf32, #tpu.memory_space<vmem>>, vector<64x128xf32>
    %c0_81 = arith.constant 0 : index
    %c0_82 = arith.constant 0 : index
    %347 = vector.load %arg10[%c0_81, %c0_82] : memref<32x128xf32, #tpu.memory_space<vmem>>, vector<32x128xf32>
    %c0_83 = arith.constant 0 : index
    %c0_84 = arith.constant 0 : index
    %348 = vector.load %arg11[%c0_83, %c0_84] : memref<1x128xf32, #tpu.memory_space<vmem>>, vector<1x128xf32>
    %349 = vector.extract_strided_slice %346 {offsets = [0, 0], sizes = [32, 128], strides = [1, 1]} : vector<64x128xf32> to vector<32x128xf32>
    %350 = vector.extract_strided_slice %346 {offsets = [32, 0], sizes = [32, 128], strides = [1, 1]} : vector<64x128xf32> to vector<32x128xf32>
    %cst_85 = arith.constant dense<0.000000e+00> : vector<2x128xf32>
    %351 = tpu.matmul %61, %349, %cst_85 {dimension_numbers = #tpu.dot_dimension_numbers<[1], [0], [0], [1], [0, 0, 1, 1], [], []>} : vector<2x32xf32>, vector<32x128xf32>, vector<2x128xf32> -> vector<2x128xf32>
    %cst_86 = arith.constant dense<0.000000e+00> : vector<2x128xf32>
    %352 = tpu.matmul %345, %350, %cst_86 {dimension_numbers = #tpu.dot_dimension_numbers<[1], [0], [0], [1], [0, 0, 1, 1], [], []>} : vector<2x32xf32>, vector<32x128xf32>, vector<2x128xf32> -> vector<2x128xf32>
    %353 = arith.addf %351, %352 : vector<2x128xf32>
    %354 = vector.broadcast %348 : vector<1x128xf32> to vector<2x128xf32>
    %355 = arith.addf %353, %354 : vector<2x128xf32>
    %cst_87 = arith.constant dense<0.000000e+00> : vector<2x128xf32>
    %356 = tpu.matmul %78, %349, %cst_87 {dimension_numbers = #tpu.dot_dimension_numbers<[1], [0], [0], [1], [0, 0, 1, 1], [], []>} : vector<2x32xf32>, vector<32x128xf32>, vector<2x128xf32> -> vector<2x128xf32>
    %cst_88 = arith.constant dense<0.000000e+00> : vector<2x128xf32>
    %357 = tpu.matmul %328, %350, %cst_88 {dimension_numbers = #tpu.dot_dimension_numbers<[1], [0], [0], [1], [0, 0, 1, 1], [], []>} : vector<2x32xf32>, vector<32x128xf32>, vector<2x128xf32> -> vector<2x128xf32>
    %358 = arith.addf %356, %357 : vector<2x128xf32>
    %359 = vector.broadcast %348 : vector<1x128xf32> to vector<2x128xf32>
    %360 = arith.addf %358, %359 : vector<2x128xf32>
    %cst_89 = arith.constant dense<0.000000e+00> : vector<2x128xf32>
    %361 = tpu.matmul %95, %349, %cst_89 {dimension_numbers = #tpu.dot_dimension_numbers<[1], [0], [0], [1], [0, 0, 1, 1], [], []>} : vector<2x32xf32>, vector<32x128xf32>, vector<2x128xf32> -> vector<2x128xf32>
    %cst_90 = arith.constant dense<0.000000e+00> : vector<2x128xf32>
    %362 = tpu.matmul %311, %350, %cst_90 {dimension_numbers = #tpu.dot_dimension_numbers<[1], [0], [0], [1], [0, 0, 1, 1], [], []>} : vector<2x32xf32>, vector<32x128xf32>, vector<2x128xf32> -> vector<2x128xf32>
    %363 = arith.addf %361, %362 : vector<2x128xf32>
    %364 = vector.broadcast %348 : vector<1x128xf32> to vector<2x128xf32>
    %365 = arith.addf %363, %364 : vector<2x128xf32>
    %cst_91 = arith.constant dense<0.000000e+00> : vector<2x128xf32>
    %366 = tpu.matmul %112, %349, %cst_91 {dimension_numbers = #tpu.dot_dimension_numbers<[1], [0], [0], [1], [0, 0, 1, 1], [], []>} : vector<2x32xf32>, vector<32x128xf32>, vector<2x128xf32> -> vector<2x128xf32>
    %cst_92 = arith.constant dense<0.000000e+00> : vector<2x128xf32>
    %367 = tpu.matmul %294, %350, %cst_92 {dimension_numbers = #tpu.dot_dimension_numbers<[1], [0], [0], [1], [0, 0, 1, 1], [], []>} : vector<2x32xf32>, vector<32x128xf32>, vector<2x128xf32> -> vector<2x128xf32>
    %368 = arith.addf %366, %367 : vector<2x128xf32>
    %369 = vector.broadcast %348 : vector<1x128xf32> to vector<2x128xf32>
    %370 = arith.addf %368, %369 : vector<2x128xf32>
    %cst_93 = arith.constant dense<0.000000e+00> : vector<2x128xf32>
    %371 = tpu.matmul %129, %349, %cst_93 {dimension_numbers = #tpu.dot_dimension_numbers<[1], [0], [0], [1], [0, 0, 1, 1], [], []>} : vector<2x32xf32>, vector<32x128xf32>, vector<2x128xf32> -> vector<2x128xf32>
    %cst_94 = arith.constant dense<0.000000e+00> : vector<2x128xf32>
    %372 = tpu.matmul %277, %350, %cst_94 {dimension_numbers = #tpu.dot_dimension_numbers<[1], [0], [0], [1], [0, 0, 1, 1], [], []>} : vector<2x32xf32>, vector<32x128xf32>, vector<2x128xf32> -> vector<2x128xf32>
    %373 = arith.addf %371, %372 : vector<2x128xf32>
    %374 = vector.broadcast %348 : vector<1x128xf32> to vector<2x128xf32>
    %375 = arith.addf %373, %374 : vector<2x128xf32>
    %cst_95 = arith.constant dense<0.000000e+00> : vector<2x128xf32>
    %376 = tpu.matmul %146, %349, %cst_95 {dimension_numbers = #tpu.dot_dimension_numbers<[1], [0], [0], [1], [0, 0, 1, 1], [], []>} : vector<2x32xf32>, vector<32x128xf32>, vector<2x128xf32> -> vector<2x128xf32>
    %cst_96 = arith.constant dense<0.000000e+00> : vector<2x128xf32>
    %377 = tpu.matmul %260, %350, %cst_96 {dimension_numbers = #tpu.dot_dimension_numbers<[1], [0], [0], [1], [0, 0, 1, 1], [], []>} : vector<2x32xf32>, vector<32x128xf32>, vector<2x128xf32> -> vector<2x128xf32>
    %378 = arith.addf %376, %377 : vector<2x128xf32>
    %379 = vector.broadcast %348 : vector<1x128xf32> to vector<2x128xf32>
    %380 = arith.addf %378, %379 : vector<2x128xf32>
    %cst_97 = arith.constant dense<0.000000e+00> : vector<2x128xf32>
    %381 = tpu.matmul %163, %349, %cst_97 {dimension_numbers = #tpu.dot_dimension_numbers<[1], [0], [0], [1], [0, 0, 1, 1], [], []>} : vector<2x32xf32>, vector<32x128xf32>, vector<2x128xf32> -> vector<2x128xf32>
    %cst_98 = arith.constant dense<0.000000e+00> : vector<2x128xf32>
    %382 = tpu.matmul %243, %350, %cst_98 {dimension_numbers = #tpu.dot_dimension_numbers<[1], [0], [0], [1], [0, 0, 1, 1], [], []>} : vector<2x32xf32>, vector<32x128xf32>, vector<2x128xf32> -> vector<2x128xf32>
    %383 = arith.addf %381, %382 : vector<2x128xf32>
    %384 = vector.broadcast %348 : vector<1x128xf32> to vector<2x128xf32>
    %385 = arith.addf %383, %384 : vector<2x128xf32>
    %cst_99 = arith.constant dense<0.000000e+00> : vector<2x128xf32>
    %386 = tpu.matmul %180, %349, %cst_99 {dimension_numbers = #tpu.dot_dimension_numbers<[1], [0], [0], [1], [0, 0, 1, 1], [], []>} : vector<2x32xf32>, vector<32x128xf32>, vector<2x128xf32> -> vector<2x128xf32>
    %cst_100 = arith.constant dense<0.000000e+00> : vector<2x128xf32>
    %387 = tpu.matmul %226, %350, %cst_100 {dimension_numbers = #tpu.dot_dimension_numbers<[1], [0], [0], [1], [0, 0, 1, 1], [], []>} : vector<2x32xf32>, vector<32x128xf32>, vector<2x128xf32> -> vector<2x128xf32>
    %388 = arith.addf %386, %387 : vector<2x128xf32>
    %389 = vector.broadcast %348 : vector<1x128xf32> to vector<2x128xf32>
    %390 = arith.addf %388, %389 : vector<2x128xf32>
    %cst_101 = arith.constant 0.000000e+00 : f32
    %391 = vector.broadcast %cst_101 : f32 to vector<2x32xf32>
    %cst_102 = arith.constant 0.000000e+00 : f32
    %392 = vector.broadcast %cst_102 : f32 to vector<2x32xf32>
    %cst_103 = arith.constant dense<0.000000e+00> : vector<2x128xf32>
    %393 = tpu.matmul %391, %347, %cst_103 {dimension_numbers = #tpu.dot_dimension_numbers<[1], [0], [0], [1], [0, 0, 1, 1], [], []>} : vector<2x32xf32>, vector<32x128xf32>, vector<2x128xf32> -> vector<2x128xf32>
    %394 = arith.addf %355, %393 : vector<2x128xf32>
    %395 = arith.negf %394 : vector<2x128xf32>
    %396 = math.exp %395 : vector<2x128xf32>
    %cst_104 = arith.constant 1.000000e+00 : f32
    %397 = vector.broadcast %cst_104 : f32 to vector<2x128xf32>
    %398 = arith.addf %397, %396 : vector<2x128xf32>
    %399 = arith.divf %397, %398 : vector<2x128xf32>
    %400 = math.tanh %394 : vector<2x128xf32>
    %401 = vector.extract_strided_slice %399 {offsets = [0, 0], sizes = [2, 32], strides = [1, 1]} : vector<2x128xf32> to vector<2x32xf32>
    %402 = vector.extract_strided_slice %399 {offsets = [0, 32], sizes = [2, 32], strides = [1, 1]} : vector<2x128xf32> to vector<2x32xf32>
    %403 = vector.extract_strided_slice %400 {offsets = [0, 64], sizes = [2, 32], strides = [1, 1]} : vector<2x128xf32> to vector<2x32xf32>
    %404 = vector.extract_strided_slice %399 {offsets = [0, 96], sizes = [2, 32], strides = [1, 1]} : vector<2x128xf32> to vector<2x32xf32>
    %405 = arith.mulf %402, %392 : vector<2x32xf32>
    %406 = arith.mulf %401, %403 : vector<2x32xf32>
    %407 = arith.addf %405, %406 : vector<2x32xf32>
    %408 = math.tanh %407 : vector<2x32xf32>
    %409 = arith.mulf %404, %408 : vector<2x32xf32>
    %cst_105 = arith.constant dense<0.000000e+00> : vector<2x128xf32>
    %410 = tpu.matmul %409, %347, %cst_105 {dimension_numbers = #tpu.dot_dimension_numbers<[1], [0], [0], [1], [0, 0, 1, 1], [], []>} : vector<2x32xf32>, vector<32x128xf32>, vector<2x128xf32> -> vector<2x128xf32>
    %411 = arith.addf %360, %410 : vector<2x128xf32>
    %412 = arith.negf %411 : vector<2x128xf32>
    %413 = math.exp %412 : vector<2x128xf32>
    %cst_106 = arith.constant 1.000000e+00 : f32
    %414 = vector.broadcast %cst_106 : f32 to vector<2x128xf32>
    %415 = arith.addf %414, %413 : vector<2x128xf32>
    %416 = arith.divf %414, %415 : vector<2x128xf32>
    %417 = math.tanh %411 : vector<2x128xf32>
    %418 = vector.extract_strided_slice %416 {offsets = [0, 0], sizes = [2, 32], strides = [1, 1]} : vector<2x128xf32> to vector<2x32xf32>
    %419 = vector.extract_strided_slice %416 {offsets = [0, 32], sizes = [2, 32], strides = [1, 1]} : vector<2x128xf32> to vector<2x32xf32>
    %420 = vector.extract_strided_slice %417 {offsets = [0, 64], sizes = [2, 32], strides = [1, 1]} : vector<2x128xf32> to vector<2x32xf32>
    %421 = vector.extract_strided_slice %416 {offsets = [0, 96], sizes = [2, 32], strides = [1, 1]} : vector<2x128xf32> to vector<2x32xf32>
    %422 = arith.mulf %419, %407 : vector<2x32xf32>
    %423 = arith.mulf %418, %420 : vector<2x32xf32>
    %424 = arith.addf %422, %423 : vector<2x32xf32>
    %425 = math.tanh %424 : vector<2x32xf32>
    %426 = arith.mulf %421, %425 : vector<2x32xf32>
    %cst_107 = arith.constant dense<0.000000e+00> : vector<2x128xf32>
    %427 = tpu.matmul %426, %347, %cst_107 {dimension_numbers = #tpu.dot_dimension_numbers<[1], [0], [0], [1], [0, 0, 1, 1], [], []>} : vector<2x32xf32>, vector<32x128xf32>, vector<2x128xf32> -> vector<2x128xf32>
    %428 = arith.addf %365, %427 : vector<2x128xf32>
    %429 = arith.negf %428 : vector<2x128xf32>
    %430 = math.exp %429 : vector<2x128xf32>
    %cst_108 = arith.constant 1.000000e+00 : f32
    %431 = vector.broadcast %cst_108 : f32 to vector<2x128xf32>
    %432 = arith.addf %431, %430 : vector<2x128xf32>
    %433 = arith.divf %431, %432 : vector<2x128xf32>
    %434 = math.tanh %428 : vector<2x128xf32>
    %435 = vector.extract_strided_slice %433 {offsets = [0, 0], sizes = [2, 32], strides = [1, 1]} : vector<2x128xf32> to vector<2x32xf32>
    %436 = vector.extract_strided_slice %433 {offsets = [0, 32], sizes = [2, 32], strides = [1, 1]} : vector<2x128xf32> to vector<2x32xf32>
    %437 = vector.extract_strided_slice %434 {offsets = [0, 64], sizes = [2, 32], strides = [1, 1]} : vector<2x128xf32> to vector<2x32xf32>
    %438 = vector.extract_strided_slice %433 {offsets = [0, 96], sizes = [2, 32], strides = [1, 1]} : vector<2x128xf32> to vector<2x32xf32>
    %439 = arith.mulf %436, %424 : vector<2x32xf32>
    %440 = arith.mulf %435, %437 : vector<2x32xf32>
    %441 = arith.addf %439, %440 : vector<2x32xf32>
    %442 = math.tanh %441 : vector<2x32xf32>
    %443 = arith.mulf %438, %442 : vector<2x32xf32>
    %cst_109 = arith.constant dense<0.000000e+00> : vector<2x128xf32>
    %444 = tpu.matmul %443, %347, %cst_109 {dimension_numbers = #tpu.dot_dimension_numbers<[1], [0], [0], [1], [0, 0, 1, 1], [], []>} : vector<2x32xf32>, vector<32x128xf32>, vector<2x128xf32> -> vector<2x128xf32>
    %445 = arith.addf %370, %444 : vector<2x128xf32>
    %446 = arith.negf %445 : vector<2x128xf32>
    %447 = math.exp %446 : vector<2x128xf32>
    %cst_110 = arith.constant 1.000000e+00 : f32
    %448 = vector.broadcast %cst_110 : f32 to vector<2x128xf32>
    %449 = arith.addf %448, %447 : vector<2x128xf32>
    %450 = arith.divf %448, %449 : vector<2x128xf32>
    %451 = math.tanh %445 : vector<2x128xf32>
    %452 = vector.extract_strided_slice %450 {offsets = [0, 0], sizes = [2, 32], strides = [1, 1]} : vector<2x128xf32> to vector<2x32xf32>
    %453 = vector.extract_strided_slice %450 {offsets = [0, 32], sizes = [2, 32], strides = [1, 1]} : vector<2x128xf32> to vector<2x32xf32>
    %454 = vector.extract_strided_slice %451 {offsets = [0, 64], sizes = [2, 32], strides = [1, 1]} : vector<2x128xf32> to vector<2x32xf32>
    %455 = vector.extract_strided_slice %450 {offsets = [0, 96], sizes = [2, 32], strides = [1, 1]} : vector<2x128xf32> to vector<2x32xf32>
    %456 = arith.mulf %453, %441 : vector<2x32xf32>
    %457 = arith.mulf %452, %454 : vector<2x32xf32>
    %458 = arith.addf %456, %457 : vector<2x32xf32>
    %459 = math.tanh %458 : vector<2x32xf32>
    %460 = arith.mulf %455, %459 : vector<2x32xf32>
    %cst_111 = arith.constant dense<0.000000e+00> : vector<2x128xf32>
    %461 = tpu.matmul %460, %347, %cst_111 {dimension_numbers = #tpu.dot_dimension_numbers<[1], [0], [0], [1], [0, 0, 1, 1], [], []>} : vector<2x32xf32>, vector<32x128xf32>, vector<2x128xf32> -> vector<2x128xf32>
    %462 = arith.addf %375, %461 : vector<2x128xf32>
    %463 = arith.negf %462 : vector<2x128xf32>
    %464 = math.exp %463 : vector<2x128xf32>
    %cst_112 = arith.constant 1.000000e+00 : f32
    %465 = vector.broadcast %cst_112 : f32 to vector<2x128xf32>
    %466 = arith.addf %465, %464 : vector<2x128xf32>
    %467 = arith.divf %465, %466 : vector<2x128xf32>
    %468 = math.tanh %462 : vector<2x128xf32>
    %469 = vector.extract_strided_slice %467 {offsets = [0, 0], sizes = [2, 32], strides = [1, 1]} : vector<2x128xf32> to vector<2x32xf32>
    %470 = vector.extract_strided_slice %467 {offsets = [0, 32], sizes = [2, 32], strides = [1, 1]} : vector<2x128xf32> to vector<2x32xf32>
    %471 = vector.extract_strided_slice %468 {offsets = [0, 64], sizes = [2, 32], strides = [1, 1]} : vector<2x128xf32> to vector<2x32xf32>
    %472 = vector.extract_strided_slice %467 {offsets = [0, 96], sizes = [2, 32], strides = [1, 1]} : vector<2x128xf32> to vector<2x32xf32>
    %473 = arith.mulf %470, %458 : vector<2x32xf32>
    %474 = arith.mulf %469, %471 : vector<2x32xf32>
    %475 = arith.addf %473, %474 : vector<2x32xf32>
    %476 = math.tanh %475 : vector<2x32xf32>
    %477 = arith.mulf %472, %476 : vector<2x32xf32>
    %cst_113 = arith.constant dense<0.000000e+00> : vector<2x128xf32>
    %478 = tpu.matmul %477, %347, %cst_113 {dimension_numbers = #tpu.dot_dimension_numbers<[1], [0], [0], [1], [0, 0, 1, 1], [], []>} : vector<2x32xf32>, vector<32x128xf32>, vector<2x128xf32> -> vector<2x128xf32>
    %479 = arith.addf %380, %478 : vector<2x128xf32>
    %480 = arith.negf %479 : vector<2x128xf32>
    %481 = math.exp %480 : vector<2x128xf32>
    %cst_114 = arith.constant 1.000000e+00 : f32
    %482 = vector.broadcast %cst_114 : f32 to vector<2x128xf32>
    %483 = arith.addf %482, %481 : vector<2x128xf32>
    %484 = arith.divf %482, %483 : vector<2x128xf32>
    %485 = math.tanh %479 : vector<2x128xf32>
    %486 = vector.extract_strided_slice %484 {offsets = [0, 0], sizes = [2, 32], strides = [1, 1]} : vector<2x128xf32> to vector<2x32xf32>
    %487 = vector.extract_strided_slice %484 {offsets = [0, 32], sizes = [2, 32], strides = [1, 1]} : vector<2x128xf32> to vector<2x32xf32>
    %488 = vector.extract_strided_slice %485 {offsets = [0, 64], sizes = [2, 32], strides = [1, 1]} : vector<2x128xf32> to vector<2x32xf32>
    %489 = vector.extract_strided_slice %484 {offsets = [0, 96], sizes = [2, 32], strides = [1, 1]} : vector<2x128xf32> to vector<2x32xf32>
    %490 = arith.mulf %487, %475 : vector<2x32xf32>
    %491 = arith.mulf %486, %488 : vector<2x32xf32>
    %492 = arith.addf %490, %491 : vector<2x32xf32>
    %493 = math.tanh %492 : vector<2x32xf32>
    %494 = arith.mulf %489, %493 : vector<2x32xf32>
    %cst_115 = arith.constant dense<0.000000e+00> : vector<2x128xf32>
    %495 = tpu.matmul %494, %347, %cst_115 {dimension_numbers = #tpu.dot_dimension_numbers<[1], [0], [0], [1], [0, 0, 1, 1], [], []>} : vector<2x32xf32>, vector<32x128xf32>, vector<2x128xf32> -> vector<2x128xf32>
    %496 = arith.addf %385, %495 : vector<2x128xf32>
    %497 = arith.negf %496 : vector<2x128xf32>
    %498 = math.exp %497 : vector<2x128xf32>
    %cst_116 = arith.constant 1.000000e+00 : f32
    %499 = vector.broadcast %cst_116 : f32 to vector<2x128xf32>
    %500 = arith.addf %499, %498 : vector<2x128xf32>
    %501 = arith.divf %499, %500 : vector<2x128xf32>
    %502 = math.tanh %496 : vector<2x128xf32>
    %503 = vector.extract_strided_slice %501 {offsets = [0, 0], sizes = [2, 32], strides = [1, 1]} : vector<2x128xf32> to vector<2x32xf32>
    %504 = vector.extract_strided_slice %501 {offsets = [0, 32], sizes = [2, 32], strides = [1, 1]} : vector<2x128xf32> to vector<2x32xf32>
    %505 = vector.extract_strided_slice %502 {offsets = [0, 64], sizes = [2, 32], strides = [1, 1]} : vector<2x128xf32> to vector<2x32xf32>
    %506 = vector.extract_strided_slice %501 {offsets = [0, 96], sizes = [2, 32], strides = [1, 1]} : vector<2x128xf32> to vector<2x32xf32>
    %507 = arith.mulf %504, %492 : vector<2x32xf32>
    %508 = arith.mulf %503, %505 : vector<2x32xf32>
    %509 = arith.addf %507, %508 : vector<2x32xf32>
    %510 = math.tanh %509 : vector<2x32xf32>
    %511 = arith.mulf %506, %510 : vector<2x32xf32>
    %cst_117 = arith.constant dense<0.000000e+00> : vector<2x128xf32>
    %512 = tpu.matmul %511, %347, %cst_117 {dimension_numbers = #tpu.dot_dimension_numbers<[1], [0], [0], [1], [0, 0, 1, 1], [], []>} : vector<2x32xf32>, vector<32x128xf32>, vector<2x128xf32> -> vector<2x128xf32>
    %513 = arith.addf %390, %512 : vector<2x128xf32>
    %514 = arith.negf %513 : vector<2x128xf32>
    %515 = math.exp %514 : vector<2x128xf32>
    %cst_118 = arith.constant 1.000000e+00 : f32
    %516 = vector.broadcast %cst_118 : f32 to vector<2x128xf32>
    %517 = arith.addf %516, %515 : vector<2x128xf32>
    %518 = arith.divf %516, %517 : vector<2x128xf32>
    %519 = math.tanh %513 : vector<2x128xf32>
    %520 = vector.extract_strided_slice %518 {offsets = [0, 0], sizes = [2, 32], strides = [1, 1]} : vector<2x128xf32> to vector<2x32xf32>
    %521 = vector.extract_strided_slice %518 {offsets = [0, 32], sizes = [2, 32], strides = [1, 1]} : vector<2x128xf32> to vector<2x32xf32>
    %522 = vector.extract_strided_slice %519 {offsets = [0, 64], sizes = [2, 32], strides = [1, 1]} : vector<2x128xf32> to vector<2x32xf32>
    %523 = vector.extract_strided_slice %518 {offsets = [0, 96], sizes = [2, 32], strides = [1, 1]} : vector<2x128xf32> to vector<2x32xf32>
    %524 = arith.mulf %521, %509 : vector<2x32xf32>
    %525 = arith.mulf %520, %522 : vector<2x32xf32>
    %526 = arith.addf %524, %525 : vector<2x32xf32>
    %527 = math.tanh %526 : vector<2x32xf32>
    %528 = arith.mulf %523, %527 : vector<2x32xf32>
    %c0_119 = arith.constant 0 : index
    %c0_120 = arith.constant 0 : index
    %529 = vector.load %arg12[%c0_119, %c0_120] : memref<64x128xf32, #tpu.memory_space<vmem>>, vector<64x128xf32>
    %c0_121 = arith.constant 0 : index
    %c0_122 = arith.constant 0 : index
    %530 = vector.load %arg13[%c0_121, %c0_122] : memref<32x128xf32, #tpu.memory_space<vmem>>, vector<32x128xf32>
    %c0_123 = arith.constant 0 : index
    %c0_124 = arith.constant 0 : index
    %531 = vector.load %arg14[%c0_123, %c0_124] : memref<1x128xf32, #tpu.memory_space<vmem>>, vector<1x128xf32>
    %532 = vector.extract_strided_slice %529 {offsets = [0, 0], sizes = [32, 128], strides = [1, 1]} : vector<64x128xf32> to vector<32x128xf32>
    %533 = vector.extract_strided_slice %529 {offsets = [32, 0], sizes = [32, 128], strides = [1, 1]} : vector<64x128xf32> to vector<32x128xf32>
    %cst_125 = arith.constant dense<0.000000e+00> : vector<2x128xf32>
    %534 = tpu.matmul %61, %532, %cst_125 {dimension_numbers = #tpu.dot_dimension_numbers<[1], [0], [0], [1], [0, 0, 1, 1], [], []>} : vector<2x32xf32>, vector<32x128xf32>, vector<2x128xf32> -> vector<2x128xf32>
    %cst_126 = arith.constant dense<0.000000e+00> : vector<2x128xf32>
    %535 = tpu.matmul %345, %533, %cst_126 {dimension_numbers = #tpu.dot_dimension_numbers<[1], [0], [0], [1], [0, 0, 1, 1], [], []>} : vector<2x32xf32>, vector<32x128xf32>, vector<2x128xf32> -> vector<2x128xf32>
    %536 = arith.addf %534, %535 : vector<2x128xf32>
    %537 = vector.broadcast %531 : vector<1x128xf32> to vector<2x128xf32>
    %538 = arith.addf %536, %537 : vector<2x128xf32>
    %cst_127 = arith.constant dense<0.000000e+00> : vector<2x128xf32>
    %539 = tpu.matmul %78, %532, %cst_127 {dimension_numbers = #tpu.dot_dimension_numbers<[1], [0], [0], [1], [0, 0, 1, 1], [], []>} : vector<2x32xf32>, vector<32x128xf32>, vector<2x128xf32> -> vector<2x128xf32>
    %cst_128 = arith.constant dense<0.000000e+00> : vector<2x128xf32>
    %540 = tpu.matmul %328, %533, %cst_128 {dimension_numbers = #tpu.dot_dimension_numbers<[1], [0], [0], [1], [0, 0, 1, 1], [], []>} : vector<2x32xf32>, vector<32x128xf32>, vector<2x128xf32> -> vector<2x128xf32>
    %541 = arith.addf %539, %540 : vector<2x128xf32>
    %542 = vector.broadcast %531 : vector<1x128xf32> to vector<2x128xf32>
    %543 = arith.addf %541, %542 : vector<2x128xf32>
    %cst_129 = arith.constant dense<0.000000e+00> : vector<2x128xf32>
    %544 = tpu.matmul %95, %532, %cst_129 {dimension_numbers = #tpu.dot_dimension_numbers<[1], [0], [0], [1], [0, 0, 1, 1], [], []>} : vector<2x32xf32>, vector<32x128xf32>, vector<2x128xf32> -> vector<2x128xf32>
    %cst_130 = arith.constant dense<0.000000e+00> : vector<2x128xf32>
    %545 = tpu.matmul %311, %533, %cst_130 {dimension_numbers = #tpu.dot_dimension_numbers<[1], [0], [0], [1], [0, 0, 1, 1], [], []>} : vector<2x32xf32>, vector<32x128xf32>, vector<2x128xf32> -> vector<2x128xf32>
    %546 = arith.addf %544, %545 : vector<2x128xf32>
    %547 = vector.broadcast %531 : vector<1x128xf32> to vector<2x128xf32>
    %548 = arith.addf %546, %547 : vector<2x128xf32>
    %cst_131 = arith.constant dense<0.000000e+00> : vector<2x128xf32>
    %549 = tpu.matmul %112, %532, %cst_131 {dimension_numbers = #tpu.dot_dimension_numbers<[1], [0], [0], [1], [0, 0, 1, 1], [], []>} : vector<2x32xf32>, vector<32x128xf32>, vector<2x128xf32> -> vector<2x128xf32>
    %cst_132 = arith.constant dense<0.000000e+00> : vector<2x128xf32>
    %550 = tpu.matmul %294, %533, %cst_132 {dimension_numbers = #tpu.dot_dimension_numbers<[1], [0], [0], [1], [0, 0, 1, 1], [], []>} : vector<2x32xf32>, vector<32x128xf32>, vector<2x128xf32> -> vector<2x128xf32>
    %551 = arith.addf %549, %550 : vector<2x128xf32>
    %552 = vector.broadcast %531 : vector<1x128xf32> to vector<2x128xf32>
    %553 = arith.addf %551, %552 : vector<2x128xf32>
    %cst_133 = arith.constant dense<0.000000e+00> : vector<2x128xf32>
    %554 = tpu.matmul %129, %532, %cst_133 {dimension_numbers = #tpu.dot_dimension_numbers<[1], [0], [0], [1], [0, 0, 1, 1], [], []>} : vector<2x32xf32>, vector<32x128xf32>, vector<2x128xf32> -> vector<2x128xf32>
    %cst_134 = arith.constant dense<0.000000e+00> : vector<2x128xf32>
    %555 = tpu.matmul %277, %533, %cst_134 {dimension_numbers = #tpu.dot_dimension_numbers<[1], [0], [0], [1], [0, 0, 1, 1], [], []>} : vector<2x32xf32>, vector<32x128xf32>, vector<2x128xf32> -> vector<2x128xf32>
    %556 = arith.addf %554, %555 : vector<2x128xf32>
    %557 = vector.broadcast %531 : vector<1x128xf32> to vector<2x128xf32>
    %558 = arith.addf %556, %557 : vector<2x128xf32>
    %cst_135 = arith.constant dense<0.000000e+00> : vector<2x128xf32>
    %559 = tpu.matmul %146, %532, %cst_135 {dimension_numbers = #tpu.dot_dimension_numbers<[1], [0], [0], [1], [0, 0, 1, 1], [], []>} : vector<2x32xf32>, vector<32x128xf32>, vector<2x128xf32> -> vector<2x128xf32>
    %cst_136 = arith.constant dense<0.000000e+00> : vector<2x128xf32>
    %560 = tpu.matmul %260, %533, %cst_136 {dimension_numbers = #tpu.dot_dimension_numbers<[1], [0], [0], [1], [0, 0, 1, 1], [], []>} : vector<2x32xf32>, vector<32x128xf32>, vector<2x128xf32> -> vector<2x128xf32>
    %561 = arith.addf %559, %560 : vector<2x128xf32>
    %562 = vector.broadcast %531 : vector<1x128xf32> to vector<2x128xf32>
    %563 = arith.addf %561, %562 : vector<2x128xf32>
    %cst_137 = arith.constant dense<0.000000e+00> : vector<2x128xf32>
    %564 = tpu.matmul %163, %532, %cst_137 {dimension_numbers = #tpu.dot_dimension_numbers<[1], [0], [0], [1], [0, 0, 1, 1], [], []>} : vector<2x32xf32>, vector<32x128xf32>, vector<2x128xf32> -> vector<2x128xf32>
    %cst_138 = arith.constant dense<0.000000e+00> : vector<2x128xf32>
    %565 = tpu.matmul %243, %533, %cst_138 {dimension_numbers = #tpu.dot_dimension_numbers<[1], [0], [0], [1], [0, 0, 1, 1], [], []>} : vector<2x32xf32>, vector<32x128xf32>, vector<2x128xf32> -> vector<2x128xf32>
    %566 = arith.addf %564, %565 : vector<2x128xf32>
    %567 = vector.broadcast %531 : vector<1x128xf32> to vector<2x128xf32>
    %568 = arith.addf %566, %567 : vector<2x128xf32>
    %cst_139 = arith.constant dense<0.000000e+00> : vector<2x128xf32>
    %569 = tpu.matmul %180, %532, %cst_139 {dimension_numbers = #tpu.dot_dimension_numbers<[1], [0], [0], [1], [0, 0, 1, 1], [], []>} : vector<2x32xf32>, vector<32x128xf32>, vector<2x128xf32> -> vector<2x128xf32>
    %cst_140 = arith.constant dense<0.000000e+00> : vector<2x128xf32>
    %570 = tpu.matmul %226, %533, %cst_140 {dimension_numbers = #tpu.dot_dimension_numbers<[1], [0], [0], [1], [0, 0, 1, 1], [], []>} : vector<2x32xf32>, vector<32x128xf32>, vector<2x128xf32> -> vector<2x128xf32>
    %571 = arith.addf %569, %570 : vector<2x128xf32>
    %572 = vector.broadcast %531 : vector<1x128xf32> to vector<2x128xf32>
    %573 = arith.addf %571, %572 : vector<2x128xf32>
    %cst_141 = arith.constant 0.000000e+00 : f32
    %574 = vector.broadcast %cst_141 : f32 to vector<2x32xf32>
    %cst_142 = arith.constant 0.000000e+00 : f32
    %575 = vector.broadcast %cst_142 : f32 to vector<2x32xf32>
    %cst_143 = arith.constant dense<0.000000e+00> : vector<2x128xf32>
    %576 = tpu.matmul %574, %530, %cst_143 {dimension_numbers = #tpu.dot_dimension_numbers<[1], [0], [0], [1], [0, 0, 1, 1], [], []>} : vector<2x32xf32>, vector<32x128xf32>, vector<2x128xf32> -> vector<2x128xf32>
    %577 = arith.addf %573, %576 : vector<2x128xf32>
    %578 = arith.negf %577 : vector<2x128xf32>
    %579 = math.exp %578 : vector<2x128xf32>
    %cst_144 = arith.constant 1.000000e+00 : f32
    %580 = vector.broadcast %cst_144 : f32 to vector<2x128xf32>
    %581 = arith.addf %580, %579 : vector<2x128xf32>
    %582 = arith.divf %580, %581 : vector<2x128xf32>
    %583 = math.tanh %577 : vector<2x128xf32>
    %584 = vector.extract_strided_slice %582 {offsets = [0, 0], sizes = [2, 32], strides = [1, 1]} : vector<2x128xf32> to vector<2x32xf32>
    %585 = vector.extract_strided_slice %582 {offsets = [0, 32], sizes = [2, 32], strides = [1, 1]} : vector<2x128xf32> to vector<2x32xf32>
    %586 = vector.extract_strided_slice %583 {offsets = [0, 64], sizes = [2, 32], strides = [1, 1]} : vector<2x128xf32> to vector<2x32xf32>
    %587 = vector.extract_strided_slice %582 {offsets = [0, 96], sizes = [2, 32], strides = [1, 1]} : vector<2x128xf32> to vector<2x32xf32>
    %588 = arith.mulf %585, %575 : vector<2x32xf32>
    %589 = arith.mulf %584, %586 : vector<2x32xf32>
    %590 = arith.addf %588, %589 : vector<2x32xf32>
    %591 = math.tanh %590 : vector<2x32xf32>
    %592 = arith.mulf %587, %591 : vector<2x32xf32>
    %cst_145 = arith.constant dense<0.000000e+00> : vector<2x128xf32>
    %593 = tpu.matmul %592, %530, %cst_145 {dimension_numbers = #tpu.dot_dimension_numbers<[1], [0], [0], [1], [0, 0, 1, 1], [], []>} : vector<2x32xf32>, vector<32x128xf32>, vector<2x128xf32> -> vector<2x128xf32>
    %594 = arith.addf %568, %593 : vector<2x128xf32>
    %595 = arith.negf %594 : vector<2x128xf32>
    %596 = math.exp %595 : vector<2x128xf32>
    %cst_146 = arith.constant 1.000000e+00 : f32
    %597 = vector.broadcast %cst_146 : f32 to vector<2x128xf32>
    %598 = arith.addf %597, %596 : vector<2x128xf32>
    %599 = arith.divf %597, %598 : vector<2x128xf32>
    %600 = math.tanh %594 : vector<2x128xf32>
    %601 = vector.extract_strided_slice %599 {offsets = [0, 0], sizes = [2, 32], strides = [1, 1]} : vector<2x128xf32> to vector<2x32xf32>
    %602 = vector.extract_strided_slice %599 {offsets = [0, 32], sizes = [2, 32], strides = [1, 1]} : vector<2x128xf32> to vector<2x32xf32>
    %603 = vector.extract_strided_slice %600 {offsets = [0, 64], sizes = [2, 32], strides = [1, 1]} : vector<2x128xf32> to vector<2x32xf32>
    %604 = vector.extract_strided_slice %599 {offsets = [0, 96], sizes = [2, 32], strides = [1, 1]} : vector<2x128xf32> to vector<2x32xf32>
    %605 = arith.mulf %602, %590 : vector<2x32xf32>
    %606 = arith.mulf %601, %603 : vector<2x32xf32>
    %607 = arith.addf %605, %606 : vector<2x32xf32>
    %608 = math.tanh %607 : vector<2x32xf32>
    %609 = arith.mulf %604, %608 : vector<2x32xf32>
    %cst_147 = arith.constant dense<0.000000e+00> : vector<2x128xf32>
    %610 = tpu.matmul %609, %530, %cst_147 {dimension_numbers = #tpu.dot_dimension_numbers<[1], [0], [0], [1], [0, 0, 1, 1], [], []>} : vector<2x32xf32>, vector<32x128xf32>, vector<2x128xf32> -> vector<2x128xf32>
    %611 = arith.addf %563, %610 : vector<2x128xf32>
    %612 = arith.negf %611 : vector<2x128xf32>
    %613 = math.exp %612 : vector<2x128xf32>
    %cst_148 = arith.constant 1.000000e+00 : f32
    %614 = vector.broadcast %cst_148 : f32 to vector<2x128xf32>
    %615 = arith.addf %614, %613 : vector<2x128xf32>
    %616 = arith.divf %614, %615 : vector<2x128xf32>
    %617 = math.tanh %611 : vector<2x128xf32>
    %618 = vector.extract_strided_slice %616 {offsets = [0, 0], sizes = [2, 32], strides = [1, 1]} : vector<2x128xf32> to vector<2x32xf32>
    %619 = vector.extract_strided_slice %616 {offsets = [0, 32], sizes = [2, 32], strides = [1, 1]} : vector<2x128xf32> to vector<2x32xf32>
    %620 = vector.extract_strided_slice %617 {offsets = [0, 64], sizes = [2, 32], strides = [1, 1]} : vector<2x128xf32> to vector<2x32xf32>
    %621 = vector.extract_strided_slice %616 {offsets = [0, 96], sizes = [2, 32], strides = [1, 1]} : vector<2x128xf32> to vector<2x32xf32>
    %622 = arith.mulf %619, %607 : vector<2x32xf32>
    %623 = arith.mulf %618, %620 : vector<2x32xf32>
    %624 = arith.addf %622, %623 : vector<2x32xf32>
    %625 = math.tanh %624 : vector<2x32xf32>
    %626 = arith.mulf %621, %625 : vector<2x32xf32>
    %cst_149 = arith.constant dense<0.000000e+00> : vector<2x128xf32>
    %627 = tpu.matmul %626, %530, %cst_149 {dimension_numbers = #tpu.dot_dimension_numbers<[1], [0], [0], [1], [0, 0, 1, 1], [], []>} : vector<2x32xf32>, vector<32x128xf32>, vector<2x128xf32> -> vector<2x128xf32>
    %628 = arith.addf %558, %627 : vector<2x128xf32>
    %629 = arith.negf %628 : vector<2x128xf32>
    %630 = math.exp %629 : vector<2x128xf32>
    %cst_150 = arith.constant 1.000000e+00 : f32
    %631 = vector.broadcast %cst_150 : f32 to vector<2x128xf32>
    %632 = arith.addf %631, %630 : vector<2x128xf32>
    %633 = arith.divf %631, %632 : vector<2x128xf32>
    %634 = math.tanh %628 : vector<2x128xf32>
    %635 = vector.extract_strided_slice %633 {offsets = [0, 0], sizes = [2, 32], strides = [1, 1]} : vector<2x128xf32> to vector<2x32xf32>
    %636 = vector.extract_strided_slice %633 {offsets = [0, 32], sizes = [2, 32], strides = [1, 1]} : vector<2x128xf32> to vector<2x32xf32>
    %637 = vector.extract_strided_slice %634 {offsets = [0, 64], sizes = [2, 32], strides = [1, 1]} : vector<2x128xf32> to vector<2x32xf32>
    %638 = vector.extract_strided_slice %633 {offsets = [0, 96], sizes = [2, 32], strides = [1, 1]} : vector<2x128xf32> to vector<2x32xf32>
    %639 = arith.mulf %636, %624 : vector<2x32xf32>
    %640 = arith.mulf %635, %637 : vector<2x32xf32>
    %641 = arith.addf %639, %640 : vector<2x32xf32>
    %642 = math.tanh %641 : vector<2x32xf32>
    %643 = arith.mulf %638, %642 : vector<2x32xf32>
    %cst_151 = arith.constant dense<0.000000e+00> : vector<2x128xf32>
    %644 = tpu.matmul %643, %530, %cst_151 {dimension_numbers = #tpu.dot_dimension_numbers<[1], [0], [0], [1], [0, 0, 1, 1], [], []>} : vector<2x32xf32>, vector<32x128xf32>, vector<2x128xf32> -> vector<2x128xf32>
    %645 = arith.addf %553, %644 : vector<2x128xf32>
    %646 = arith.negf %645 : vector<2x128xf32>
    %647 = math.exp %646 : vector<2x128xf32>
    %cst_152 = arith.constant 1.000000e+00 : f32
    %648 = vector.broadcast %cst_152 : f32 to vector<2x128xf32>
    %649 = arith.addf %648, %647 : vector<2x128xf32>
    %650 = arith.divf %648, %649 : vector<2x128xf32>
    %651 = math.tanh %645 : vector<2x128xf32>
    %652 = vector.extract_strided_slice %650 {offsets = [0, 0], sizes = [2, 32], strides = [1, 1]} : vector<2x128xf32> to vector<2x32xf32>
    %653 = vector.extract_strided_slice %650 {offsets = [0, 32], sizes = [2, 32], strides = [1, 1]} : vector<2x128xf32> to vector<2x32xf32>
    %654 = vector.extract_strided_slice %651 {offsets = [0, 64], sizes = [2, 32], strides = [1, 1]} : vector<2x128xf32> to vector<2x32xf32>
    %655 = vector.extract_strided_slice %650 {offsets = [0, 96], sizes = [2, 32], strides = [1, 1]} : vector<2x128xf32> to vector<2x32xf32>
    %656 = arith.mulf %653, %641 : vector<2x32xf32>
    %657 = arith.mulf %652, %654 : vector<2x32xf32>
    %658 = arith.addf %656, %657 : vector<2x32xf32>
    %659 = math.tanh %658 : vector<2x32xf32>
    %660 = arith.mulf %655, %659 : vector<2x32xf32>
    %cst_153 = arith.constant dense<0.000000e+00> : vector<2x128xf32>
    %661 = tpu.matmul %660, %530, %cst_153 {dimension_numbers = #tpu.dot_dimension_numbers<[1], [0], [0], [1], [0, 0, 1, 1], [], []>} : vector<2x32xf32>, vector<32x128xf32>, vector<2x128xf32> -> vector<2x128xf32>
    %662 = arith.addf %548, %661 : vector<2x128xf32>
    %663 = arith.negf %662 : vector<2x128xf32>
    %664 = math.exp %663 : vector<2x128xf32>
    %cst_154 = arith.constant 1.000000e+00 : f32
    %665 = vector.broadcast %cst_154 : f32 to vector<2x128xf32>
    %666 = arith.addf %665, %664 : vector<2x128xf32>
    %667 = arith.divf %665, %666 : vector<2x128xf32>
    %668 = math.tanh %662 : vector<2x128xf32>
    %669 = vector.extract_strided_slice %667 {offsets = [0, 0], sizes = [2, 32], strides = [1, 1]} : vector<2x128xf32> to vector<2x32xf32>
    %670 = vector.extract_strided_slice %667 {offsets = [0, 32], sizes = [2, 32], strides = [1, 1]} : vector<2x128xf32> to vector<2x32xf32>
    %671 = vector.extract_strided_slice %668 {offsets = [0, 64], sizes = [2, 32], strides = [1, 1]} : vector<2x128xf32> to vector<2x32xf32>
    %672 = vector.extract_strided_slice %667 {offsets = [0, 96], sizes = [2, 32], strides = [1, 1]} : vector<2x128xf32> to vector<2x32xf32>
    %673 = arith.mulf %670, %658 : vector<2x32xf32>
    %674 = arith.mulf %669, %671 : vector<2x32xf32>
    %675 = arith.addf %673, %674 : vector<2x32xf32>
    %676 = math.tanh %675 : vector<2x32xf32>
    %677 = arith.mulf %672, %676 : vector<2x32xf32>
    %cst_155 = arith.constant dense<0.000000e+00> : vector<2x128xf32>
    %678 = tpu.matmul %677, %530, %cst_155 {dimension_numbers = #tpu.dot_dimension_numbers<[1], [0], [0], [1], [0, 0, 1, 1], [], []>} : vector<2x32xf32>, vector<32x128xf32>, vector<2x128xf32> -> vector<2x128xf32>
    %679 = arith.addf %543, %678 : vector<2x128xf32>
    %680 = arith.negf %679 : vector<2x128xf32>
    %681 = math.exp %680 : vector<2x128xf32>
    %cst_156 = arith.constant 1.000000e+00 : f32
    %682 = vector.broadcast %cst_156 : f32 to vector<2x128xf32>
    %683 = arith.addf %682, %681 : vector<2x128xf32>
    %684 = arith.divf %682, %683 : vector<2x128xf32>
    %685 = math.tanh %679 : vector<2x128xf32>
    %686 = vector.extract_strided_slice %684 {offsets = [0, 0], sizes = [2, 32], strides = [1, 1]} : vector<2x128xf32> to vector<2x32xf32>
    %687 = vector.extract_strided_slice %684 {offsets = [0, 32], sizes = [2, 32], strides = [1, 1]} : vector<2x128xf32> to vector<2x32xf32>
    %688 = vector.extract_strided_slice %685 {offsets = [0, 64], sizes = [2, 32], strides = [1, 1]} : vector<2x128xf32> to vector<2x32xf32>
    %689 = vector.extract_strided_slice %684 {offsets = [0, 96], sizes = [2, 32], strides = [1, 1]} : vector<2x128xf32> to vector<2x32xf32>
    %690 = arith.mulf %687, %675 : vector<2x32xf32>
    %691 = arith.mulf %686, %688 : vector<2x32xf32>
    %692 = arith.addf %690, %691 : vector<2x32xf32>
    %693 = math.tanh %692 : vector<2x32xf32>
    %694 = arith.mulf %689, %693 : vector<2x32xf32>
    %cst_157 = arith.constant dense<0.000000e+00> : vector<2x128xf32>
    %695 = tpu.matmul %694, %530, %cst_157 {dimension_numbers = #tpu.dot_dimension_numbers<[1], [0], [0], [1], [0, 0, 1, 1], [], []>} : vector<2x32xf32>, vector<32x128xf32>, vector<2x128xf32> -> vector<2x128xf32>
    %696 = arith.addf %538, %695 : vector<2x128xf32>
    %697 = arith.negf %696 : vector<2x128xf32>
    %698 = math.exp %697 : vector<2x128xf32>
    %cst_158 = arith.constant 1.000000e+00 : f32
    %699 = vector.broadcast %cst_158 : f32 to vector<2x128xf32>
    %700 = arith.addf %699, %698 : vector<2x128xf32>
    %701 = arith.divf %699, %700 : vector<2x128xf32>
    %702 = math.tanh %696 : vector<2x128xf32>
    %703 = vector.extract_strided_slice %701 {offsets = [0, 0], sizes = [2, 32], strides = [1, 1]} : vector<2x128xf32> to vector<2x32xf32>
    %704 = vector.extract_strided_slice %701 {offsets = [0, 32], sizes = [2, 32], strides = [1, 1]} : vector<2x128xf32> to vector<2x32xf32>
    %705 = vector.extract_strided_slice %702 {offsets = [0, 64], sizes = [2, 32], strides = [1, 1]} : vector<2x128xf32> to vector<2x32xf32>
    %706 = vector.extract_strided_slice %701 {offsets = [0, 96], sizes = [2, 32], strides = [1, 1]} : vector<2x128xf32> to vector<2x32xf32>
    %707 = arith.mulf %704, %692 : vector<2x32xf32>
    %708 = arith.mulf %703, %705 : vector<2x32xf32>
    %709 = arith.addf %707, %708 : vector<2x32xf32>
    %710 = math.tanh %709 : vector<2x32xf32>
    %711 = arith.mulf %706, %710 : vector<2x32xf32>
    %712 = vector.shape_cast %409 : vector<2x32xf32> to vector<1x2x32xf32>
    %713 = vector.shape_cast %426 : vector<2x32xf32> to vector<1x2x32xf32>
    %714 = vector.shape_cast %443 : vector<2x32xf32> to vector<1x2x32xf32>
    %715 = vector.shape_cast %460 : vector<2x32xf32> to vector<1x2x32xf32>
    %716 = vector.shape_cast %477 : vector<2x32xf32> to vector<1x2x32xf32>
    %717 = vector.shape_cast %494 : vector<2x32xf32> to vector<1x2x32xf32>
    %718 = vector.shape_cast %511 : vector<2x32xf32> to vector<1x2x32xf32>
    %719 = vector.shape_cast %528 : vector<2x32xf32> to vector<1x2x32xf32>
    %720 = tpu.concatenate %712, %713, %714, %715, %716, %717, %718, %719 in 0 : vector<1x2x32xf32>, vector<1x2x32xf32>, vector<1x2x32xf32>, vector<1x2x32xf32>, vector<1x2x32xf32>, vector<1x2x32xf32>, vector<1x2x32xf32>, vector<1x2x32xf32> -> vector<8x2x32xf32>
    %721 = vector.shape_cast %711 : vector<2x32xf32> to vector<1x2x32xf32>
    %722 = vector.shape_cast %694 : vector<2x32xf32> to vector<1x2x32xf32>
    %723 = vector.shape_cast %677 : vector<2x32xf32> to vector<1x2x32xf32>
    %724 = vector.shape_cast %660 : vector<2x32xf32> to vector<1x2x32xf32>
    %725 = vector.shape_cast %643 : vector<2x32xf32> to vector<1x2x32xf32>
    %726 = vector.shape_cast %626 : vector<2x32xf32> to vector<1x2x32xf32>
    %727 = vector.shape_cast %609 : vector<2x32xf32> to vector<1x2x32xf32>
    %728 = vector.shape_cast %592 : vector<2x32xf32> to vector<1x2x32xf32>
    %729 = tpu.concatenate %721, %722, %723, %724, %725, %726, %727, %728 in 0 : vector<1x2x32xf32>, vector<1x2x32xf32>, vector<1x2x32xf32>, vector<1x2x32xf32>, vector<1x2x32xf32>, vector<1x2x32xf32>, vector<1x2x32xf32>, vector<1x2x32xf32> -> vector<8x2x32xf32>
    %730 = tpu.concatenate %720, %729 in 2 : vector<8x2x32xf32>, vector<8x2x32xf32> -> vector<8x2x64xf32>
    %c0_159 = arith.constant 0 : index
    %c0_160 = arith.constant 0 : index
    %c0_161 = arith.constant 0 : index
    %731 = vector.load %arg2[%c0_159, %c0_160, %c0_161] : memref<8x2x1xf32, #tpu.memory_space<vmem>>, vector<8x2x1xf32>
    %732 = vector.broadcast %731 : vector<8x2x1xf32> to vector<8x2x64xf32>
    %733 = arith.mulf %730, %732 : vector<8x2x64xf32>
    %c0_162 = arith.constant 0 : index
    %c0_163 = arith.constant 0 : index
    %c0_164 = arith.constant 0 : index
    %734 = vector.load %arg15[%c0_162, %c0_163, %c0_164] : memref<8x2x64xf32, #tpu.memory_space<vmem>>, vector<8x2x64xf32>
    tpu.vector_store %arg15[%c0_162, %c0_163, %c0_164], %733 {strides = array<i32>} : memref<8x2x64xf32, #tpu.memory_space<vmem>>, vector<8x2x64xf32>,
    return
  }
  func.func @transform_0(%arg0: i32) -> (i32, i32, i32) {
    %c0_i32 = arith.constant 0 : i32
    %c0_i32_0 = arith.constant 0 : i32
    %c0_i32_1 = arith.constant 0 : i32
    %c0_i32_2 = arith.constant 0 : i32
    return %c0_i32, %c0_i32_0, %c0_i32_1 : i32, i32, i32
  }
  func.func @transform_1(%arg0: i32) -> (i32, i32, i32) {
    %c0_i32 = arith.constant 0 : i32
    %c0_i32_0 = arith.constant 0 : i32
    %c0_i32_1 = arith.constant 0 : i32
    %c0_i32_2 = arith.constant 0 : i32
    return %c0_i32, %c0_i32_0, %c0_i32_1 : i32, i32, i32
  }
  func.func @transform_2(%arg0: i32) -> (i32, i32) {
    %c0_i32 = arith.constant 0 : i32
    %c0_i32_0 = arith.constant 0 : i32
    %c0_i32_1 = arith.constant 0 : i32
    return %c0_i32, %c0_i32_0 : i32, i32
  }
  func.func @transform_3(%arg0: i32) -> (i32, i32) {
    %c0_i32 = arith.constant 0 : i32
    %c0_i32_0 = arith.constant 0 : i32
    %c0_i32_1 = arith.constant 0 : i32
    return %c0_i32, %c0_i32_0 : i32, i32
  }
  func.func @transform_4(%arg0: i32) -> (i32, i32) {
    %c0_i32 = arith.constant 0 : i32
    %c0_i32_0 = arith.constant 0 : i32
    %c0_i32_1 = arith.constant 0 : i32
    return %c0_i32, %c0_i32_0 : i32, i32
  }
  func.func @transform_5(%arg0: i32) -> (i32, i32) {
    %c0_i32 = arith.constant 0 : i32
    %c0_i32_0 = arith.constant 0 : i32
    %c0_i32_1 = arith.constant 0 : i32
    return %c0_i32, %c0_i32_0 : i32, i32
  }
  func.func @transform_6(%arg0: i32) -> (i32, i32) {
    %c0_i32 = arith.constant 0 : i32
    %c0_i32_0 = arith.constant 0 : i32
    %c0_i32_1 = arith.constant 0 : i32
    return %c0_i32, %c0_i32_0 : i32, i32
  }
  func.func @transform_7(%arg0: i32) -> (i32, i32) {
    %c0_i32 = arith.constant 0 : i32
    %c0_i32_0 = arith.constant 0 : i32
    %c0_i32_1 = arith.constant 0 : i32
    return %c0_i32, %c0_i32_0 : i32, i32
  }
  func.func @transform_8(%arg0: i32) -> (i32, i32) {
    %c0_i32 = arith.constant 0 : i32
    %c0_i32_0 = arith.constant 0 : i32
    %c0_i32_1 = arith.constant 0 : i32
    return %c0_i32, %c0_i32_0 : i32, i32
  }
  func.func @transform_9(%arg0: i32) -> (i32, i32) {
    %c0_i32 = arith.constant 0 : i32
    %c0_i32_0 = arith.constant 0 : i32
    %c0_i32_1 = arith.constant 0 : i32
    return %c0_i32, %c0_i32_0 : i32, i32
  }
  func.func @transform_10(%arg0: i32) -> (i32, i32) {
    %c0_i32 = arith.constant 0 : i32
    %c0_i32_0 = arith.constant 0 : i32
    %c0_i32_1 = arith.constant 0 : i32
    return %c0_i32, %c0_i32_0 : i32, i32
  }
  func.func @transform_11(%arg0: i32) -> (i32, i32) {
    %c0_i32 = arith.constant 0 : i32
    %c0_i32_0 = arith.constant 0 : i32
    %c0_i32_1 = arith.constant 0 : i32
    return %c0_i32, %c0_i32_0 : i32, i32
  }
  func.func @transform_12(%arg0: i32) -> (i32, i32) {
    %c0_i32 = arith.constant 0 : i32
    %c0_i32_0 = arith.constant 0 : i32
    %c0_i32_1 = arith.constant 0 : i32
    return %c0_i32, %c0_i32_0 : i32, i32
  }
  func.func @transform_13(%arg0: i32) -> (i32, i32) {
    %c0_i32 = arith.constant 0 : i32
    %c0_i32_0 = arith.constant 0 : i32
    %c0_i32_1 = arith.constant 0 : i32
    return %c0_i32, %c0_i32_0 : i32, i32
  }
  func.func @transform_14(%arg0: i32) -> (i32, i32, i32) {
    %c0_i32 = arith.constant 0 : i32
    %c0_i32_0 = arith.constant 0 : i32
    %c0_i32_1 = arith.constant 0 : i32
    %c0_i32_2 = arith.constant 0 : i32
    return %c0_i32, %c0_i32_0, %c0_i32_1 : i32, i32, i32
  }
}

</mosaic_0001>

<llo_original>
// kernel: tpu_custom_call.1
$region0: #{tpu_custom_call.1}
  #allocation0 [shape = 'u32[]', space=smem, size = 0x4, offset = 0x4, fixed_abs, tag = 'smem constant byte address 0x4 - core index']
  #allocation1 [shape = 'u32[72,128]{1,0:T(1,128)}', space=vmem, size = 0x9000, scoped, tag = 'internal scratch']
  %s0 = inlined_call_operand.vmem [shape: f32[8,2,32], index: 0, kind: input, shape index: {}]
  %s1 = inlined_call_operand.vmem [shape: f32[8,2,1], index: 1, kind: input, shape index: {}]
  %s2 = inlined_call_operand.hbm [shape: f32[32,128], index: 2, kind: input, shape index: {}]
  %s3 = inlined_call_operand.hbm [shape: f32[32,128], index: 3, kind: input, shape index: {}]
  %s4 = inlined_call_operand.vmem [shape: f32[1,128], index: 4, kind: input, shape index: {}]
  %s5 = inlined_call_operand.hbm [shape: f32[32,128], index: 5, kind: input, shape index: {}]
  %s6 = inlined_call_operand.hbm [shape: f32[32,128], index: 6, kind: input, shape index: {}]
  %s7 = inlined_call_operand.vmem [shape: f32[1,128], index: 7, kind: input, shape index: {}]
  %s8 = inlined_call_operand.hbm [shape: f32[64,128], index: 8, kind: input, shape index: {}]
  %s9 = inlined_call_operand.hbm [shape: f32[32,128], index: 9, kind: input, shape index: {}]
  %s10 = inlined_call_operand.vmem [shape: f32[1,128], index: 10, kind: input, shape index: {}]
  %s11 = inlined_call_operand.hbm [shape: f32[64,128], index: 11, kind: input, shape index: {}]
  %s12 = inlined_call_operand.hbm [shape: f32[32,128], index: 12, kind: input, shape index: {}]
  %s13 = inlined_call_operand.vmem [shape: f32[1,128], index: 13, kind: input, shape index: {}]
  %s14 = inlined_call_operand.hbm [shape: f32[8,2,64], index: 14, kind: output, shape index: {}]
  %s15 = sld [smem:[#allocation0]]
  $region98: #{tpu_custom_call.1} parent=0
    _
  %s17 = ssub.s32 1, %s15
  %s18 = scalar_select 0, %s17, %s15
  $region1: #{tpu_custom_call.1} parent=0
    #allocation2 [shape = 'u8[16384]{0}', space=vmem, size = 0x4000, scoped, tag = 'input window, operand 2, single buffered']
    #allocation3 [shape = 's32[1]{0}', space=sflag, size = 0x4, scoped, tag = 'scoped memory for tpu_custom_call.1']
    #allocation4 [shape = 's32[1]{0}', space=sflag, size = 0x4, scoped, tag = 'scoped memory for tpu_custom_call.1']
    #allocation5 [shape = 'u8[16384]{0}', space=vmem, size = 0x4000, scoped, tag = 'input window, operand 3, single buffered']
    #allocation6 [shape = 's32[1]{0}', space=sflag, size = 0x4, scoped, tag = 'scoped memory for tpu_custom_call.1']
    #allocation7 [shape = 'u8[16384]{0}', space=vmem, size = 0x4000, scoped, tag = 'input window, operand 5, single buffered']
    #allocation8 [shape = 'u8[16384]{0}', space=vmem, size = 0x4000, scoped, tag = 'input window, operand 6, single buffered']
    #allocation9 [shape = 's32[1]{0}', space=sflag, size = 0x4, scoped, tag = 'scoped memory for tpu_custom_call.1']
    #allocation10 [shape = 'u8[32768]{0}', space=vmem, size = 0x8000, scoped, tag = 'input window, operand 8, single buffered']
    #allocation11 [shape = 'u8[16384]{0}', space=vmem, size = 0x4000, scoped, tag = 'input window, operand 9, single buffered']
    #allocation12 [shape = 's32[1]{0}', space=sflag, size = 0x4, scoped, tag = 'scoped memory for tpu_custom_call.1']
    #allocation13 [shape = 'u8[32768]{0}', space=vmem, size = 0x8000, scoped, tag = 'input window, operand 11, single buffered']
    #allocation14 [shape = 'u8[16384]{0}', space=vmem, size = 0x4000, scoped, tag = 'input window, operand 12, single buffered']
    #allocation15 [shape = 's32[1]{0}', space=sflag, size = 0x4, scoped, tag = 'scoped memory for tpu_custom_call.1']
    #allocation16 [shape = 'u8[8192]{0}', space=vmem, size = 0x2000, scoped, tag = 'output window, operand 0, single buffered']
    %19 = vsyncpa [#allocation3], 0
    %20 = vsyncpa [#allocation6], 0
    %21 = vsyncpa [#allocation9], 0
    %22 = vsyncpa [#allocation12], 0
    %23 = vsyncpa [#allocation15], 0
    %24 = vsyncpa [#allocation4], 0
    // Predicated region
    $region2: #{tpu_custom_call.1} parent=1 // pred_check
      _
    $region3: #{tpu_custom_call.1} parent=1 // pred_check_branch
      %26 = sbr.rel (0) target = $region5
    $region4: #{tpu_custom_call.1} parent=1 // pred_region
      _
    $region5: #{tpu_custom_call.1} parent=1 // pred_fallthru
      _
    // Predicated region
    $region6: #{tpu_custom_call.1} parent=1 // pred_check
      _
    $region7: #{tpu_custom_call.1} parent=1 // pred_check_branch
      %28 = sbr.rel (0) target = $region9
    $region8: #{tpu_custom_call.1} parent=1 // pred_region
      _
    $region9: #{tpu_custom_call.1} parent=1 // pred_fallthru
      _
    // Predicated region
    $region10: #{tpu_custom_call.1} parent=1 // pred_check
      _
    $region11: #{tpu_custom_call.1} parent=1 // pred_check_branch
      %30 = sbr.rel (0) target = $region13
    $region12: #{tpu_custom_call.1} parent=1 // pred_region
      %32 = vsyncadd [#allocation3], 0
      %s33 = sshll.u32 %s2, 4
      %s34 = int_to_ptr.hbm [resolvable:$true] %s33
      %s35 = sshll.u32 [#allocation2], 4
      %s36 = int_to_ptr.vmem [resolvable:$true] %s35
      %41 = dma.hbm_to_vmem [thread:$0]  %s34, 512, %s36, [#allocation3], 128, 128, 8
    $region13: #{tpu_custom_call.1} parent=1 // pred_fallthru
      _
    // Predicated region
    $region14: #{tpu_custom_call.1} parent=1 // pred_check
      _
    $region15: #{tpu_custom_call.1} parent=1 // pred_check_branch
      %43 = sbr.rel (0) target = $region17
    $region16: #{tpu_custom_call.1} parent=1 // pred_region
      %45 = vsyncadd [#allocation6], 0
      %s46 = sshll.u32 %s3, 4
      %s47 = int_to_ptr.hbm [resolvable:$true] %s46
      %s48 = sshll.u32 [#allocation5], 4
      %s49 = int_to_ptr.vmem [resolvable:$true] %s48
      %54 = dma.hbm_to_vmem [thread:$0]  %s47, 512, %s49, [#allocation6], 128, 128, 8
    $region17: #{tpu_custom_call.1} parent=1 // pred_fallthru
      _
    // Predicated region
    $region18: #{tpu_custom_call.1} parent=1 // pred_check
      _
    $region19: #{tpu_custom_call.1} parent=1 // pred_check_branch
      %56 = sbr.rel (0) target = $region21
    $region20: #{tpu_custom_call.1} parent=1 // pred_region
      _
    $region21: #{tpu_custom_call.1} parent=1 // pred_fallthru
      _
    // Predicated region
    $region22: #{tpu_custom_call.1} parent=1 // pred_check
      _
    $region23: #{tpu_custom_call.1} parent=1 // pred_check_branch
      %58 = sbr.rel (0) target = $region25
    $region24: #{tpu_custom_call.1} parent=1 // pred_region
      %60 = vsyncadd [#allocation6], 0
      %s61 = sshll.u32 %s5, 4
      %s62 = int_to_ptr.hbm [resolvable:$true] %s61
      %s63 = sshll.u32 [#allocation7], 4
      %s64 = int_to_ptr.vmem [resolvable:$true] %s63
      %69 = dma.hbm_to_vmem [thread:$0]  %s62, 512, %s64, [#allocation6], 128, 128, 8
    $region25: #{tpu_custom_call.1} parent=1 // pred_fallthru
      _
    // Predicated region
    $region26: #{tpu_custom_call.1} parent=1 // pred_check
      _
    $region27: #{tpu_custom_call.1} parent=1 // pred_check_branch
      %71 = sbr.rel (0) target = $region29
    $region28: #{tpu_custom_call.1} parent=1 // pred_region
      %73 = vsyncadd [#allocation9], 0
      %s74 = sshll.u32 %s6, 4
      %s75 = int_to_ptr.hbm [resolvable:$true] %s74
      %s76 = sshll.u32 [#allocation8], 4
      %s77 = int_to_ptr.vmem [resolvable:$true] %s76
      %82 = dma.hbm_to_vmem [thread:$0]  %s75, 512, %s77, [#allocation9], 128, 128, 8
    $region29: #{tpu_custom_call.1} parent=1 // pred_fallthru
      _
    // Predicated region
    $region30: #{tpu_custom_call.1} parent=1 // pred_check
      _
    $region31: #{tpu_custom_call.1} parent=1 // pred_check_branch
      %84 = sbr.rel (0) target = $region33
    $region32: #{tpu_custom_call.1} parent=1 // pred_region
      _
    $region33: #{tpu_custom_call.1} parent=1 // pred_fallthru
      _
    // Predicated region
    $region34: #{tpu_custom_call.1} parent=1 // pred_check
      _
    $region35: #{tpu_custom_call.1} parent=1 // pred_check_branch
      %86 = sbr.rel (0) target = $region37
    $region36: #{tpu_custom_call.1} parent=1 // pred_region
      %88 = vsyncadd [#allocation9], 0
      %s89 = sshll.u32 %s8, 4
      %s90 = int_to_ptr.hbm [resolvable:$true] %s89
      %s91 = sshll.u32 [#allocation10], 4
      %s92 = int_to_ptr.vmem [resolvable:$true] %s91
      %97 = dma.hbm_to_vmem [thread:$0]  %s90, 1024, %s92, [#allocation9], 128, 128, 8
    $region37: #{tpu_custom_call.1} parent=1 // pred_fallthru
      _
    // Predicated region
    $region38: #{tpu_custom_call.1} parent=1 // pred_check
      _
    $region39: #{tpu_custom_call.1} parent=1 // pred_check_branch
      %99 = sbr.rel (0) target = $region41
    $region40: #{tpu_custom_call.1} parent=1 // pred_region
      %101 = vsyncadd [#allocation12], 0
      %s102 = sshll.u32 %s9, 4
      %s103 = int_to_ptr.hbm [resolvable:$true] %s102
      %s104 = sshll.u32 [#allocation11], 4
      %s105 = int_to_ptr.vmem [resolvable:$true] %s104
      %110 = dma.hbm_to_vmem [thread:$0]  %s103, 512, %s105, [#allocation12], 128, 128, 8
    $region41: #{tpu_custom_call.1} parent=1 // pred_fallthru
      _
    // Predicated region
    $region42: #{tpu_custom_call.1} parent=1 // pred_check
      _
    $region43: #{tpu_custom_call.1} parent=1 // pred_check_branch
      %112 = sbr.rel (0) target = $region45
    $region44: #{tpu_custom_call.1} parent=1 // pred_region
      _
    $region45: #{tpu_custom_call.1} parent=1 // pred_fallthru
      _
    // Predicated region
    $region46: #{tpu_custom_call.1} parent=1 // pred_check
      _
    $region47: #{tpu_custom_call.1} parent=1 // pred_check_branch
      %114 = sbr.rel (0) target = $region49
    $region48: #{tpu_custom_call.1} parent=1 // pred_region
      %116 = vsyncadd [#allocation12], 0
      %s117 = sshll.u32 %s11, 4
      %s118 = int_to_ptr.hbm [resolvable:$true] %s117
      %s119 = sshll.u32 [#allocation13], 4
      %s120 = int_to_ptr.vmem [resolvable:$true] %s119
      %125 = dma.hbm_to_vmem [thread:$0]  %s118, 1024, %s120, [#allocation12], 128, 128, 8
    $region49: #{tpu_custom_call.1} parent=1 // pred_fallthru
      _
    // Predicated region
    $region50: #{tpu_custom_call.1} parent=1 // pred_check
      _
    $region51: #{tpu_custom_call.1} parent=1 // pred_check_branch
      %127 = sbr.rel (0) target = $region53
    $region52: #{tpu_custom_call.1} parent=1 // pred_region
      %129 = vsyncadd [#allocation15], 0
      %s130 = sshll.u32 %s12, 4
      %s131 = int_to_ptr.hbm [resolvable:$true] %s130
      %s132 = sshll.u32 [#allocation14], 4
      %s133 = int_to_ptr.vmem [resolvable:$true] %s132
      %138 = dma.hbm_to_vmem [thread:$0]  %s131, 512, %s133, [#allocation15], 128, 128, 8
    $region53: #{tpu_custom_call.1} parent=1 // pred_fallthru
      _
    // Predicated region
    $region54: #{tpu_custom_call.1} parent=1 // pred_check
      _
    $region55: #{tpu_custom_call.1} parent=1 // pred_check_branch
      %140 = sbr.rel (0) target = $region57
    $region56: #{tpu_custom_call.1} parent=1 // pred_region
      _
    $region57: #{tpu_custom_call.1} parent=1 // pred_fallthru
      _
    // Predicated region
    $region58: #{tpu_custom_call.1} parent=1 // pred_check
      _
    $region59: #{tpu_custom_call.1} parent=1 // pred_check_branch
      %142 = sbr.rel (0) target = $region61
    $region60: #{tpu_custom_call.1} parent=1 // pred_region
      %144 = dma.done [#allocation3], 512
    $region61: #{tpu_custom_call.1} parent=1 // pred_fallthru
      _
    // Predicated region
    $region62: #{tpu_custom_call.1} parent=1 // pred_check
      _
    $region63: #{tpu_custom_call.1} parent=1 // pred_check_branch
      %146 = sbr.rel (0) target = $region65
    $region64: #{tpu_custom_call.1} parent=1 // pred_region
      %148 = dma.done [#allocation6], 512
    $region65: #{tpu_custom_call.1} parent=1 // pred_fallthru
      _
    // Predicated region
    $region66: #{tpu_custom_call.1} parent=1 // pred_check
      _
    $region67: #{tpu_custom_call.1} parent=1 // pred_check_branch
      %150 = sbr.rel (0) target = $region69
    $region68: #{tpu_custom_call.1} parent=1 // pred_region
      %152 = dma.done [#allocation6], 512
    $region69: #{tpu_custom_call.1} parent=1 // pred_fallthru
      _
    // Predicated region
    $region70: #{tpu_custom_call.1} parent=1 // pred_check
      _
    $region71: #{tpu_custom_call.1} parent=1 // pred_check_branch
      %154 = sbr.rel (0) target = $region73
    $region72: #{tpu_custom_call.1} parent=1 // pred_region
      %156 = dma.done [#allocation9], 512
    $region73: #{tpu_custom_call.1} parent=1 // pred_fallthru
      _
    // Predicated region
    $region74: #{tpu_custom_call.1} parent=1 // pred_check
      _
    $region75: #{tpu_custom_call.1} parent=1 // pred_check_branch
      %158 = sbr.rel (0) target = $region77
    $region76: #{tpu_custom_call.1} parent=1 // pred_region
      %160 = dma.done [#allocation9], 1024
    $region77: #{tpu_custom_call.1} parent=1 // pred_fallthru
      _
    // Predicated region
    $region78: #{tpu_custom_call.1} parent=1 // pred_check
      _
    $region79: #{tpu_custom_call.1} parent=1 // pred_check_branch
      %162 = sbr.rel (0) target = $region81
    $region80: #{tpu_custom_call.1} parent=1 // pred_region
      %164 = dma.done [#allocation12], 512
    $region81: #{tpu_custom_call.1} parent=1 // pred_fallthru
      _
    // Predicated region
    $region82: #{tpu_custom_call.1} parent=1 // pred_check
      _
    $region83: #{tpu_custom_call.1} parent=1 // pred_check_branch
      %166 = sbr.rel (0) target = $region85
    $region84: #{tpu_custom_call.1} parent=1 // pred_region
      %168 = dma.done [#allocation12], 1024
    $region85: #{tpu_custom_call.1} parent=1 // pred_fallthru
      _
    // Predicated region
    $region86: #{tpu_custom_call.1} parent=1 // pred_check
      _
    $region87: #{tpu_custom_call.1} parent=1 // pred_check_branch
      %170 = sbr.rel (0) target = $region89
    $region88: #{tpu_custom_call.1} parent=1 // pred_region
      %172 = dma.done [#allocation15], 512
    $region89: #{tpu_custom_call.1} parent=1 // pred_fallthru
      _
    %v173 = vld [vmem:[%s0] sm:$0x3]
    %s174 = scalar_lea.vmem %s0, 2
    %v175 = vld [vmem:[%s174] sm:$0x3]
    %s176 = scalar_lea.vmem %s0, 4
    %v177 = vld [vmem:[%s176] sm:$0x3]
    %s178 = scalar_lea.vmem %s0, 6
    %v179 = vld [vmem:[%s178] sm:$0x3]
    %s180 = scalar_lea.vmem %s0, 8
    %v181 = vld [vmem:[%s180] sm:$0x3]
    %s182 = scalar_lea.vmem %s0, 10
    %v183 = vld [vmem:[%s182] sm:$0x3]
    %s184 = scalar_lea.vmem %s0, 12
    %v185 = vld [vmem:[%s184] sm:$0x3]
    %s186 = scalar_lea.vmem %s0, 14
    %v187 = vld [vmem:[%s186] sm:$0x3]
    %v188 = vld [vmem:[#allocation2] sm:$0xff]
    %v189 = vld [vmem:[#allocation2 + $0x8] sm:$0xff]
    %v190 = vld [vmem:[#allocation2 + $0x10] sm:$0xff]
    %v191 = vld [vmem:[#allocation2 + $0x18] sm:$0xff]
    %v192 = vld [vmem:[#allocation5] sm:$0xff]
    %v193 = vld [vmem:[#allocation5 + $0x8] sm:$0xff]
    %v194 = vld [vmem:[#allocation5 + $0x10] sm:$0xff]
    %v195 = vld [vmem:[#allocation5 + $0x18] sm:$0xff]
    %v196 = vld [vmem:[%s4] sm:$0x1]
    %v198 = vperm.slane %v196, 0
    %vm200 = vcmask 261120
    %v202 = vsel %vm200, %v173, 0
    %204 = vmatpush.msra.mxu0 0.0
    %205 = vmatpush.msra.mxu0 0.0
    %206 = vmatpush.msra.mxu0 0.0
    %207 = vmatpush.msra.mxu0 0.0
    %208 = vmatpush.msra.mxu0 0.0
    %209 = vmatpush.msra.mxu0 0.0
    %210 = vmatpush.msra.mxu0 0.0
    %211 = vmatpush.msra.mxu0 0.0
    %212 = vmatpush.msra.mxu0 0.0
    %213 = vmatpush.msra.mxu0 0.0
    %214 = vmatpush.msra.mxu0 0.0
    %215 = vmatpush.msra.mxu0 0.0
    %216 = vmatpush.msra.mxu0 %v191
    %217 = vmatpush.msra.mxu0 %v190
    %218 = vmatpush.msra.mxu0 %v189
    %219 = vmatpush.msra.mxu0 %v188
    %220 = vmatmul.f32.gmra.mxu0 %v202
    %v221 = vpop.f32.mrf.mxu0
    %v222 = vadd.f32 %v198, %v221
    %223 = vdwg.mxu0
    %v225 = vsel %vm200, %v175, 0
    %227 = vmatpush.msra.mxu0 0.0
    %228 = vmatpush.msra.mxu0 0.0
    %229 = vmatpush.msra.mxu0 0.0
    %230 = vmatpush.msra.mxu0 0.0
    %231 = vmatpush.msra.mxu0 0.0
    %232 = vmatpush.msra.mxu0 0.0
    %233 = vmatpush.msra.mxu0 0.0
    %234 = vmatpush.msra.mxu0 0.0
    %235 = vmatpush.msra.mxu0 0.0
    %236 = vmatpush.msra.mxu0 0.0
    %237 = vmatpush.msra.mxu0 0.0
    %238 = vmatpush.msra.mxu0 0.0
    %239 = vmatpush.msra.mxu0 %v191
    %240 = vmatpush.msra.mxu0 %v190
    %241 = vmatpush.msra.mxu0 %v189
    %242 = vmatpush.msra.mxu0 %v188
    %243 = vmatmul.f32.gmra.mxu0 %v225
    %v244 = vpop.f32.mrf.mxu0
    %v245 = vadd.f32 %v198, %v244
    %246 = vdwg.mxu0
    %v248 = vsel %vm200, %v177, 0
    %250 = vmatpush.msra.mxu0 0.0
    %251 = vmatpush.msra.mxu0 0.0
    %252 = vmatpush.msra.mxu0 0.0
    %253 = vmatpush.msra.mxu0 0.0
    %254 = vmatpush.msra.mxu0 0.0
    %255 = vmatpush.msra.mxu0 0.0
    %256 = vmatpush.msra.mxu0 0.0
    %257 = vmatpush.msra.mxu0 0.0
    %258 = vmatpush.msra.mxu0 0.0
    %259 = vmatpush.msra.mxu0 0.0
    %260 = vmatpush.msra.mxu0 0.0
    %261 = vmatpush.msra.mxu0 0.0
    %262 = vmatpush.msra.mxu0 %v191
    %263 = vmatpush.msra.mxu0 %v190
    %264 = vmatpush.msra.mxu0 %v189
    %265 = vmatpush.msra.mxu0 %v188
    %266 = vmatmul.f32.gmra.mxu0 %v248
    %v267 = vpop.f32.mrf.mxu0
    %v268 = vadd.f32 %v198, %v267
    %269 = vdwg.mxu0
    %v271 = vsel %vm200, %v179, 0
    %273 = vmatpush.msra.mxu0 0.0
    %274 = vmatpush.msra.mxu0 0.0
    %275 = vmatpush.msra.mxu0 0.0
    %276 = vmatpush.msra.mxu0 0.0
    %277 = vmatpush.msra.mxu0 0.0
    %278 = vmatpush.msra.mxu0 0.0
    %279 = vmatpush.msra.mxu0 0.0
    %280 = vmatpush.msra.mxu0 0.0
    %281 = vmatpush.msra.mxu0 0.0
    %282 = vmatpush.msra.mxu0 0.0
    %283 = vmatpush.msra.mxu0 0.0
    %284 = vmatpush.msra.mxu0 0.0
    %285 = vmatpush.msra.mxu0 %v191
    %286 = vmatpush.msra.mxu0 %v190
    %287 = vmatpush.msra.mxu0 %v189
    %288 = vmatpush.msra.mxu0 %v188
    %289 = vmatmul.f32.gmra.mxu0 %v271
    %v290 = vpop.f32.mrf.mxu0
    %v291 = vadd.f32 %v198, %v290
    %292 = vdwg.mxu0
    %v294 = vsel %vm200, %v181, 0
    %296 = vmatpush.msra.mxu0 0.0
    %297 = vmatpush.msra.mxu0 0.0
    %298 = vmatpush.msra.mxu0 0.0
    %299 = vmatpush.msra.mxu0 0.0
    %300 = vmatpush.msra.mxu0 0.0
    %301 = vmatpush.msra.mxu0 0.0
    %302 = vmatpush.msra.mxu0 0.0
    %303 = vmatpush.msra.mxu0 0.0
    %304 = vmatpush.msra.mxu0 0.0
    %305 = vmatpush.msra.mxu0 0.0
    %306 = vmatpush.msra.mxu0 0.0
    %307 = vmatpush.msra.mxu0 0.0
    %308 = vmatpush.msra.mxu0 %v191
    %309 = vmatpush.msra.mxu0 %v190
    %310 = vmatpush.msra.mxu0 %v189
    %311 = vmatpush.msra.mxu0 %v188
    %312 = vmatmul.f32.gmra.mxu0 %v294
    %v313 = vpop.f32.mrf.mxu0
    %v314 = vadd.f32 %v198, %v313
    %315 = vdwg.mxu0
    %v317 = vsel %vm200, %v183, 0
    %319 = vmatpush.msra.mxu0 0.0
    %320 = vmatpush.msra.mxu0 0.0
    %321 = vmatpush.msra.mxu0 0.0
    %322 = vmatpush.msra.mxu0 0.0
    %323 = vmatpush.msra.mxu0 0.0
    %324 = vmatpush.msra.mxu0 0.0
    %325 = vmatpush.msra.mxu0 0.0
    %326 = vmatpush.msra.mxu0 0.0
    %327 = vmatpush.msra.mxu0 0.0
    %328 = vmatpush.msra.mxu0 0.0
    %329 = vmatpush.msra.mxu0 0.0
    %330 = vmatpush.msra.mxu0 0.0
    %331 = vmatpush.msra.mxu0 %v191
    %332 = vmatpush.msra.mxu0 %v190
    %333 = vmatpush.msra.mxu0 %v189
    %334 = vmatpush.msra.mxu0 %v188
    %335 = vmatmul.f32.gmra.mxu0 %v317
    %v336 = vpop.f32.mrf.mxu0
    %v337 = vadd.f32 %v198, %v336
    %338 = vdwg.mxu0
    %v340 = vsel %vm200, %v185, 0
    %342 = vmatpush.msra.mxu0 0.0
    %343 = vmatpush.msra.mxu0 0.0
    %344 = vmatpush.msra.mxu0 0.0
    %345 = vmatpush.msra.mxu0 0.0
    %346 = vmatpush.msra.mxu0 0.0
    %347 = vmatpush.msra.mxu0 0.0
    %348 = vmatpush.msra.mxu0 0.0
    %349 = vmatpush.msra.mxu0 0.0
    %350 = vmatpush.msra.mxu0 0.0
    %351 = vmatpush.msra.mxu0 0.0
    %352 = vmatpush.msra.mxu0 0.0
    %353 = vmatpush.msra.mxu0 0.0
    %354 = vmatpush.msra.mxu0 %v191
    %355 = vmatpush.msra.mxu0 %v190
    %356 = vmatpush.msra.mxu0 %v189
    %357 = vmatpush.msra.mxu0 %v188
    %358 = vmatmul.f32.gmra.mxu0 %v340
    %v359 = vpop.f32.mrf.mxu0
    %v360 = vadd.f32 %v198, %v359
    %361 = vdwg.mxu0
    %v363 = vsel %vm200, %v187, 0
    %365 = vmatpush.msra.mxu0 0.0
    %366 = vmatpush.msra.mxu0 0.0
    %367 = vmatpush.msra.mxu0 0.0
    %368 = vmatpush.msra.mxu0 0.0
    %369 = vmatpush.msra.mxu0 0.0
    %370 = vmatpush.msra.mxu0 0.0
    %371 = vmatpush.msra.mxu0 0.0
    %372 = vmatpush.msra.mxu0 0.0
    %373 = vmatpush.msra.mxu0 0.0
    %374 = vmatpush.msra.mxu0 0.0
    %375 = vmatpush.msra.mxu0 0.0
    %376 = vmatpush.msra.mxu0 0.0
    %377 = vmatpush.msra.mxu0 %v191
    %378 = vmatpush.msra.mxu0 %v190
    %379 = vmatpush.msra.mxu0 %v189
    %380 = vmatpush.msra.mxu0 %v188
    %381 = vmatmul.f32.gmra.mxu0 %v363
    %v382 = vpop.f32.mrf.mxu0
    %v383 = vadd.f32 %v198, %v382
    %384 = vdwg.mxu0
    %v386 = vsel %vm200, 0.0, 0
    %388 = vmatpush.msra.mxu0 0.0
    %389 = vmatpush.msra.mxu0 0.0
    %390 = vmatpush.msra.mxu0 0.0
    %391 = vmatpush.msra.mxu0 0.0
    %392 = vmatpush.msra.mxu0 0.0
    %393 = vmatpush.msra.mxu0 0.0
    %394 = vmatpush.msra.mxu0 0.0
    %395 = vmatpush.msra.mxu0 0.0
    %396 = vmatpush.msra.mxu0 0.0
    %397 = vmatpush.msra.mxu0 0.0
    %398 = vmatpush.msra.mxu0 0.0
    %399 = vmatpush.msra.mxu0 0.0
    %400 = vmatpush.msra.mxu0 %v195
    %401 = vmatpush.msra.mxu0 %v194
    %402 = vmatpush.msra.mxu0 %v193
    %403 = vmatpush.msra.mxu0 %v192
    %404 = vmatmul.f32.gmra.mxu0 %v386
    %v405 = vpop.f32.mrf.mxu0
    %v406 = vadd.f32 0.0, %v405
    %407 = vdwg.mxu0
    %v408 = vadd.f32 %v222, %v406
    %v409 = vxor.u32 %v408, 2147483648
    %v410 = vmul.f32 %v409, 1.442695
    %v411 = vpow.pop %v410
    %v412 = vadd.f32 %v411, 1.0
    %v413 = vrcp.pop %v412
    %v414 = vmul.f32 %v412, %v413
    %v415 = vsub.f32 1.0, %v414
    %v416 = vmul.f32 %v413, %v415
    %v417 = vadd.f32 %v413, %v416
    %vm418 = vweird.f32 %v412
    %vm419 = vweird.f32 %v413
    %vm420 = vmor %vm418, %vm419
    %v421 = vsel %vm420, %v413, %v417
    %v422 = vand.u32 2147483647, %v412
    %vm423 = vcmp.eq.f32.partialorder %v422, 8.507059e+37
    %v424 = vand.u32 %v412, 2147483648
    %v425 = vor.u32 1.1754944e-38, %v424
    %v426 = vsel %vm423, %v425, %v421
    %v427 = vmul.f32 1.0, %v426
    %v428 = vtanh.pop %v408
    %v429 = vmul.f32 %v427, 0.0
    %431 = vrot.lane.b32.xlu0 %v428, 64
    %v432 = vpop.permute.xlu0 %431
    %v434 = vmul.f32 %v427, %v432
    %436 = vrot.lane.b32.xlu0 %v434, 32
    %v437 = vpop.permute.xlu0 %436
    %v439 = vadd.f32 %v429, %v437
    %v440 = vtanh.pop %v439
    %442 = vrot.lane.b32.xlu0 %v440, 64
    %v443 = vpop.permute.xlu0 %442
    %v445 = vmul.f32 %v427, %v443
    %447 = vrot.lane.b32.xlu0 %v445, 32
    %v448 = vpop.permute.xlu0 %447
    %v449 = vsel %vm200, %v448, 0
    %451 = vmatpush.msra.mxu0 0.0
    %452 = vmatpush.msra.mxu0 0.0
    %453 = vmatpush.msra.mxu0 0.0
    %454 = vmatpush.msra.mxu0 0.0
    %455 = vmatpush.msra.mxu0 0.0
    %456 = vmatpush.msra.mxu0 0.0
    %457 = vmatpush.msra.mxu0 0.0
    %458 = vmatpush.msra.mxu0 0.0
    %459 = vmatpush.msra.mxu0 0.0
    %460 = vmatpush.msra.mxu0 0.0
    %461 = vmatpush.msra.mxu0 0.0
    %462 = vmatpush.msra.mxu0 0.0
    %463 = vmatpush.msra.mxu0 %v195
    %464 = vmatpush.msra.mxu0 %v194
    %465 = vmatpush.msra.mxu0 %v193
    %466 = vmatpush.msra.mxu0 %v192
    %467 = vmatmul.f32.gmra.mxu0 %v449
    %v468 = vpop.f32.mrf.mxu0
    %v469 = vadd.f32 0.0, %v468
    %470 = vdwg.mxu0
    %v471 = vadd.f32 %v245, %v469
    %v472 = vxor.u32 %v471, 2147483648
    %v473 = vmul.f32 %v472, 1.442695
    %v474 = vpow.pop %v473
    %v475 = vadd.f32 %v474, 1.0
    %v476 = vrcp.pop %v475
    %v477 = vmul.f32 %v475, %v476
    %v478 = vsub.f32 1.0, %v477
    %v479 = vmul.f32 %v476, %v478
    %v480 = vadd.f32 %v476, %v479
    %vm481 = vweird.f32 %v475
    %vm482 = vweird.f32 %v476
    %vm483 = vmor %vm481, %vm482
    %v484 = vsel %vm483, %v476, %v480
    %v485 = vand.u32 2147483647, %v475
    %vm486 = vcmp.eq.f32.partialorder %v485, 8.507059e+37
    %v487 = vand.u32 %v475, 2147483648
    %v488 = vor.u32 1.1754944e-38, %v487
    %v489 = vsel %vm486, %v488, %v484
    %v490 = vmul.f32 1.0, %v489
    %v491 = vtanh.pop %v471
    %v492 = vmul.f32 %v490, %v439
    %494 = vrot.lane.b32.xlu0 %v491, 64
    %v495 = vpop.permute.xlu0 %494
    %v497 = vmul.f32 %v490, %v495
    %499 = vrot.lane.b32.xlu0 %v497, 32
    %v500 = vpop.permute.xlu0 %499
    %v502 = vadd.f32 %v492, %v500
    %v503 = vtanh.pop %v502
    %505 = vrot.lane.b32.xlu0 %v503, 64
    %v506 = vpop.permute.xlu0 %505
    %v508 = vmul.f32 %v490, %v506
    %510 = vrot.lane.b32.xlu0 %v508, 32
    %v511 = vpop.permute.xlu0 %510
    %v512 = vsel %vm200, %v511, 0
    %514 = vmatpush.msra.mxu0 0.0
    %515 = vmatpush.msra.mxu0 0.0
    %516 = vmatpush.msra.mxu0 0.0
    %517 = vmatpush.msra.mxu0 0.0
    %518 = vmatpush.msra.mxu0 0.0
    %519 = vmatpush.msra.mxu0 0.0
    %520 = vmatpush.msra.mxu0 0.0
    %521 = vmatpush.msra.mxu0 0.0
    %522 = vmatpush.msra.mxu0 0.0
    %523 = vmatpush.msra.mxu0 0.0
    %524 = vmatpush.msra.mxu0 0.0
    %525 = vmatpush.msra.mxu0 0.0
    %526 = vmatpush.msra.mxu0 %v195
    %527 = vmatpush.msra.mxu0 %v194
    %528 = vmatpush.msra.mxu0 %v193
    %529 = vmatpush.msra.mxu0 %v192
    %530 = vmatmul.f32.gmra.mxu0 %v512
    %v531 = vpop.f32.mrf.mxu0
    %v532 = vadd.f32 0.0, %v531
    %533 = vdwg.mxu0
    %v534 = vadd.f32 %v268, %v532
    %v535 = vxor.u32 %v534, 2147483648
    %v536 = vmul.f32 %v535, 1.442695
    %v537 = vpow.pop %v536
    %v538 = vadd.f32 %v537, 1.0
    %v539 = vrcp.pop %v538
    %v540 = vmul.f32 %v538, %v539
    %v541 = vsub.f32 1.0, %v540
    %v542 = vmul.f32 %v539, %v541
    %v543 = vadd.f32 %v539, %v542
    %vm544 = vweird.f32 %v538
    %vm545 = vweird.f32 %v539
    %vm546 = vmor %vm544, %vm545
    %v547 = vsel %vm546, %v539, %v543
    %v548 = vand.u32 2147483647, %v538
    %vm549 = vcmp.eq.f32.partialorder %v548, 8.507059e+37
    %v550 = vand.u32 %v538, 2147483648
    %v551 = vor.u32 1.1754944e-38, %v550
    %v552 = vsel %vm549, %v551, %v547
    %v553 = vmul.f32 1.0, %v552
    %v554 = vtanh.pop %v534
    %v555 = vmul.f32 %v553, %v502
    %557 = vrot.lane.b32.xlu0 %v554, 64
    %v558 = vpop.permute.xlu0 %557
    %v560 = vmul.f32 %v553, %v558
    %562 = vrot.lane.b32.xlu0 %v560, 32
    %v563 = vpop.permute.xlu0 %562
    %v565 = vadd.f32 %v555, %v563
    %v566 = vtanh.pop %v565
    %568 = vrot.lane.b32.xlu0 %v566, 64
    %v569 = vpop.permute.xlu0 %568
    %v571 = vmul.f32 %v553, %v569
    %573 = vrot.lane.b32.xlu0 %v571, 32
    %v574 = vpop.permute.xlu0 %573
    %v575 = vsel %vm200, %v574, 0
    %577 = vmatpush.msra.mxu0 0.0
    %578 = vmatpush.msra.mxu0 0.0
    %579 = vmatpush.msra.mxu0 0.0
    %580 = vmatpush.msra.mxu0 0.0
    %581 = vmatpush.msra.mxu0 0.0
    %582 = vmatpush.msra.mxu0 0.0
    %583 = vmatpush.msra.mxu0 0.0
    %584 = vmatpush.msra.mxu0 0.0
    %585 = vmatpush.msra.mxu0 0.0
    %586 = vmatpush.msra.mxu0 0.0
    %587 = vmatpush.msra.mxu0 0.0
    %588 = vmatpush.msra.mxu0 0.0
    %589 = vmatpush.msra.mxu0 %v195
    %590 = vmatpush.msra.mxu0 %v194
    %591 = vmatpush.msra.mxu0 %v193
    %592 = vmatpush.msra.mxu0 %v192
    %593 = vmatmul.f32.gmra.mxu0 %v575
    %v594 = vpop.f32.mrf.mxu0
    %v595 = vadd.f32 0.0, %v594
    %596 = vdwg.mxu0
    %v597 = vadd.f32 %v291, %v595
    %v598 = vxor.u32 %v597, 2147483648
    %v599 = vmul.f32 %v598, 1.442695
    %v600 = vpow.pop %v599
    %v601 = vadd.f32 %v600, 1.0
    %v602 = vrcp.pop %v601
    %v603 = vmul.f32 %v601, %v602
    %v604 = vsub.f32 1.0, %v603
    %v605 = vmul.f32 %v602, %v604
    %v606 = vadd.f32 %v602, %v605
    %vm607 = vweird.f32 %v601
    %vm608 = vweird.f32 %v602
    %vm609 = vmor %vm607, %vm608
    %v610 = vsel %vm609, %v602, %v606
    %v611 = vand.u32 2147483647, %v601
    %vm612 = vcmp.eq.f32.partialorder %v611, 8.507059e+37
    %v613 = vand.u32 %v601, 2147483648
    %v614 = vor.u32 1.1754944e-38, %v613
    %v615 = vsel %vm612, %v614, %v610
    %v616 = vmul.f32 1.0, %v615
    %v617 = vtanh.pop %v597
    %v618 = vmul.f32 %v616, %v565
    %620 = vrot.lane.b32.xlu0 %v617, 64
    %v621 = vpop.permute.xlu0 %620
    %v623 = vmul.f32 %v616, %v621
    %625 = vrot.lane.b32.xlu0 %v623, 32
    %v626 = vpop.permute.xlu0 %625
    %v628 = vadd.f32 %v618, %v626
    %v629 = vtanh.pop %v628
    %631 = vrot.lane.b32.xlu0 %v629, 64
    %v632 = vpop.permute.xlu0 %631
    %v634 = vmul.f32 %v616, %v632
    %636 = vrot.lane.b32.xlu0 %v634, 32
    %v637 = vpop.permute.xlu0 %636
    %v638 = vsel %vm200, %v637, 0
    %640 = vmatpush.msra.mxu0 0.0
    %641 = vmatpush.msra.mxu0 0.0
    %642 = vmatpush.msra.mxu0 0.0
    %643 = vmatpush.msra.mxu0 0.0
    %644 = vmatpush.msra.mxu0 0.0
    %645 = vmatpush.msra.mxu0 0.0
    %646 = vmatpush.msra.mxu0 0.0
    %647 = vmatpush.msra.mxu0 0.0
    %648 = vmatpush.msra.mxu0 0.0
    %649 = vmatpush.msra.mxu0 0.0
    %650 = vmatpush.msra.mxu0 0.0
    %651 = vmatpush.msra.mxu0 0.0
    %652 = vmatpush.msra.mxu0 %v195
    %653 = vmatpush.msra.mxu0 %v194
    %654 = vmatpush.msra.mxu0 %v193
    %655 = vmatpush.msra.mxu0 %v192
    %656 = vmatmul.f32.gmra.mxu0 %v638
    %v657 = vpop.f32.mrf.mxu0
    %v658 = vadd.f32 0.0, %v657
    %659 = vdwg.mxu0
    %v660 = vadd.f32 %v314, %v658
    %v661 = vxor.u32 %v660, 2147483648
    %v662 = vmul.f32 %v661, 1.442695
    %v663 = vpow.pop %v662
    %v664 = vadd.f32 %v663, 1.0
    %v665 = vrcp.pop %v664
    %v666 = vmul.f32 %v664, %v665
    %v667 = vsub.f32 1.0, %v666
    %v668 = vmul.f32 %v665, %v667
    %v669 = vadd.f32 %v665, %v668
    %vm670 = vweird.f32 %v664
    %vm671 = vweird.f32 %v665
    %vm672 = vmor %vm670, %vm671
    %v673 = vsel %vm672, %v665, %v669
    %v674 = vand.u32 2147483647, %v664
    %vm675 = vcmp.eq.f32.partialorder %v674, 8.507059e+37
    %v676 = vand.u32 %v664, 2147483648
    %v677 = vor.u32 1.1754944e-38, %v676
    %v678 = vsel %vm675, %v677, %v673
    %v679 = vmul.f32 1.0, %v678
    %v680 = vtanh.pop %v660
    %v681 = vmul.f32 %v679, %v628
    %683 = vrot.lane.b32.xlu0 %v680, 64
    %v684 = vpop.permute.xlu0 %683
    %v686 = vmul.f32 %v679, %v684
    %688 = vrot.lane.b32.xlu0 %v686, 32
    %v689 = vpop.permute.xlu0 %688
    %v691 = vadd.f32 %v681, %v689
    %v692 = vtanh.pop %v691
    %694 = vrot.lane.b32.xlu0 %v692, 64
    %v695 = vpop.permute.xlu0 %694
    %v697 = vmul.f32 %v679, %v695
    %699 = vrot.lane.b32.xlu0 %v697, 32
    %v700 = vpop.permute.xlu0 %699
    %v701 = vsel %vm200, %v700, 0
    %703 = vmatpush.msra.mxu0 0.0
    %704 = vmatpush.msra.mxu0 0.0
    %705 = vmatpush.msra.mxu0 0.0
    %706 = vmatpush.msra.mxu0 0.0
    %707 = vmatpush.msra.mxu0 0.0
    %708 = vmatpush.msra.mxu0 0.0
    %709 = vmatpush.msra.mxu0 0.0
    %710 = vmatpush.msra.mxu0 0.0
    %711 = vmatpush.msra.mxu0 0.0
    %712 = vmatpush.msra.mxu0 0.0
    %713 = vmatpush.msra.mxu0 0.0
    %714 = vmatpush.msra.mxu0 0.0
    %715 = vmatpush.msra.mxu0 %v195
    %716 = vmatpush.msra.mxu0 %v194
    %717 = vmatpush.msra.mxu0 %v193
    %718 = vmatpush.msra.mxu0 %v192
    %719 = vmatmul.f32.gmra.mxu0 %v701
    %v720 = vpop.f32.mrf.mxu0
    %v721 = vadd.f32 0.0, %v720
    %722 = vdwg.mxu0
    %v723 = vadd.f32 %v337, %v721
    %v724 = vxor.u32 %v723, 2147483648
    %v725 = vmul.f32 %v724, 1.442695
    %v726 = vpow.pop %v725
    %v727 = vadd.f32 %v726, 1.0
    %v728 = vrcp.pop %v727
    %v729 = vmul.f32 %v727, %v728
    %v730 = vsub.f32 1.0, %v729
    %v731 = vmul.f32 %v728, %v730
    %v732 = vadd.f32 %v728, %v731
    %vm733 = vweird.f32 %v727
    %vm734 = vweird.f32 %v728
    %vm735 = vmor %vm733, %vm734
    %v736 = vsel %vm735, %v728, %v732
    %v737 = vand.u32 2147483647, %v727
    %vm738 = vcmp.eq.f32.partialorder %v737, 8.507059e+37
    %v739 = vand.u32 %v727, 2147483648
    %v740 = vor.u32 1.1754944e-38, %v739
    %v741 = vsel %vm738, %v740, %v736
    %v742 = vmul.f32 1.0, %v741
    %v743 = vtanh.pop %v723
    %v744 = vmul.f32 %v742, %v691
    %746 = vrot.lane.b32.xlu0 %v743, 64
    %v747 = vpop.permute.xlu0 %746
    %v749 = vmul.f32 %v742, %v747
    %751 = vrot.lane.b32.xlu0 %v749, 32
    %v752 = vpop.permute.xlu0 %751
    %v754 = vadd.f32 %v744, %v752
    %v755 = vtanh.pop %v754
    %757 = vrot.lane.b32.xlu0 %v755, 64
    %v758 = vpop.permute.xlu0 %757
    %v760 = vmul.f32 %v742, %v758
    %762 = vrot.lane.b32.xlu0 %v760, 32
    %v763 = vpop.permute.xlu0 %762
    %v764 = vsel %vm200, %v763, 0
    %766 = vmatpush.msra.mxu0 0.0
    %767 = vmatpush.msra.mxu0 0.0
    %768 = vmatpush.msra.mxu0 0.0
    %769 = vmatpush.msra.mxu0 0.0
    %770 = vmatpush.msra.mxu0 0.0
    %771 = vmatpush.msra.mxu0 0.0
    %772 = vmatpush.msra.mxu0 0.0
    %773 = vmatpush.msra.mxu0 0.0
    %774 = vmatpush.msra.mxu0 0.0
    %775 = vmatpush.msra.mxu0 0.0
    %776 = vmatpush.msra.mxu0 0.0
    %777 = vmatpush.msra.mxu0 0.0
    %778 = vmatpush.msra.mxu0 %v195
    %779 = vmatpush.msra.mxu0 %v194
    %780 = vmatpush.msra.mxu0 %v193
    %781 = vmatpush.msra.mxu0 %v192
    %782 = vmatmul.f32.gmra.mxu0 %v764
    %v783 = vpop.f32.mrf.mxu0
    %v784 = vadd.f32 0.0, %v783
    %785 = vdwg.mxu0
    %v786 = vadd.f32 %v360, %v784
    %v787 = vxor.u32 %v786, 2147483648
    %v788 = vmul.f32 %v787, 1.442695
    %v789 = vpow.pop %v788
    %v790 = vadd.f32 %v789, 1.0
    %v791 = vrcp.pop %v790
    %v792 = vmul.f32 %v790, %v791
    %v793 = vsub.f32 1.0, %v792
    %v794 = vmul.f32 %v791, %v793
    %v795 = vadd.f32 %v791, %v794
    %vm796 = vweird.f32 %v790
    %vm797 = vweird.f32 %v791
    %vm798 = vmor %vm796, %vm797
    %v799 = vsel %vm798, %v791, %v795
    %v800 = vand.u32 2147483647, %v790
    %vm801 = vcmp.eq.f32.partialorder %v800, 8.507059e+37
    %v802 = vand.u32 %v790, 2147483648
    %v803 = vor.u32 1.1754944e-38, %v802
    %v804 = vsel %vm801, %v803, %v799
    %v805 = vmul.f32 1.0, %v804
    %v806 = vtanh.pop %v786
    %v807 = vmul.f32 %v805, %v754
    %809 = vrot.lane.b32.xlu0 %v806, 64
    %v810 = vpop.permute.xlu0 %809
    %v812 = vmul.f32 %v805, %v810
    %814 = vrot.lane.b32.xlu0 %v812, 32
    %v815 = vpop.permute.xlu0 %814
    %v817 = vadd.f32 %v807, %v815
    %v818 = vtanh.pop %v817
    %820 = vrot.lane.b32.xlu0 %v818, 64
    %v821 = vpop.permute.xlu0 %820
    %v823 = vmul.f32 %v805, %v821
    %825 = vrot.lane.b32.xlu0 %v823, 32
    %v826 = vpop.permute.xlu0 %825
    %v827 = vsel %vm200, %v826, 0
    %829 = vmatpush.msra.mxu0 0.0
    %830 = vmatpush.msra.mxu0 0.0
    %831 = vmatpush.msra.mxu0 0.0
    %832 = vmatpush.msra.mxu0 0.0
    %833 = vmatpush.msra.mxu0 0.0
    %834 = vmatpush.msra.mxu0 0.0
    %835 = vmatpush.msra.mxu0 0.0
    %836 = vmatpush.msra.mxu0 0.0
    %837 = vmatpush.msra.mxu0 0.0
    %838 = vmatpush.msra.mxu0 0.0
    %839 = vmatpush.msra.mxu0 0.0
    %840 = vmatpush.msra.mxu0 0.0
    %841 = vmatpush.msra.mxu0 %v195
    %842 = vmatpush.msra.mxu0 %v194
    %843 = vmatpush.msra.mxu0 %v193
    %844 = vmatpush.msra.mxu0 %v192
    %845 = vmatmul.f32.gmra.mxu0 %v827
    %v846 = vpop.f32.mrf.mxu0
    %v847 = vadd.f32 0.0, %v846
    %848 = vdwg.mxu0
    %v849 = vadd.f32 %v383, %v847
    %v850 = vxor.u32 %v849, 2147483648
    %v851 = vmul.f32 %v850, 1.442695
    %v852 = vpow.pop %v851
    %v853 = vadd.f32 %v852, 1.0
    %v854 = vrcp.pop %v853
    %v855 = vmul.f32 %v853, %v854
    %v856 = vsub.f32 1.0, %v855
    %v857 = vmul.f32 %v854, %v856
    %v858 = vadd.f32 %v854, %v857
    %vm859 = vweird.f32 %v853
    %vm860 = vweird.f32 %v854
    %vm861 = vmor %vm859, %vm860
    %v862 = vsel %vm861, %v854, %v858
    %v863 = vand.u32 2147483647, %v853
    %vm864 = vcmp.eq.f32.partialorder %v863, 8.507059e+37
    %v865 = vand.u32 %v853, 2147483648
    %v866 = vor.u32 1.1754944e-38, %v865
    %v867 = vsel %vm864, %v866, %v862
    %v868 = vmul.f32 1.0, %v867
    %v869 = vtanh.pop %v849
    %v870 = vmul.f32 %v868, %v817
    %872 = vrot.lane.b32.xlu0 %v869, 64
    %v873 = vpop.permute.xlu0 %872
    %v875 = vmul.f32 %v868, %v873
    %877 = vrot.lane.b32.xlu0 %v875, 32
    %v878 = vpop.permute.xlu0 %877
    %v880 = vadd.f32 %v870, %v878
    %v881 = vtanh.pop %v880
    %883 = vrot.lane.b32.xlu0 %v881, 64
    %v884 = vpop.permute.xlu0 %883
    %v886 = vmul.f32 %v868, %v884
    %v887 = vld [vmem:[#allocation7] sm:$0xff]
    %v888 = vld [vmem:[#allocation7 + $0x8] sm:$0xff]
    %v889 = vld [vmem:[#allocation7 + $0x10] sm:$0xff]
    %v890 = vld [vmem:[#allocation7 + $0x18] sm:$0xff]
    %v891 = vld [vmem:[#allocation8] sm:$0xff]
    %v892 = vld [vmem:[#allocation8 + $0x8] sm:$0xff]
    %v893 = vld [vmem:[#allocation8 + $0x10] sm:$0xff]
    %v894 = vld [vmem:[#allocation8 + $0x18] sm:$0xff]
    %v895 = vld [vmem:[%s7] sm:$0x1]
    %v897 = vperm.slane %v895, 0
    %899 = vmatpush.msra.mxu0 0.0
    %900 = vmatpush.msra.mxu0 0.0
    %901 = vmatpush.msra.mxu0 0.0
    %902 = vmatpush.msra.mxu0 0.0
    %903 = vmatpush.msra.mxu0 0.0
    %904 = vmatpush.msra.mxu0 0.0
    %905 = vmatpush.msra.mxu0 0.0
    %906 = vmatpush.msra.mxu0 0.0
    %907 = vmatpush.msra.mxu0 0.0
    %908 = vmatpush.msra.mxu0 0.0
    %909 = vmatpush.msra.mxu0 0.0
    %910 = vmatpush.msra.mxu0 0.0
    %911 = vmatpush.msra.mxu0 %v890
    %912 = vmatpush.msra.mxu0 %v889
    %913 = vmatpush.msra.mxu0 %v888
    %914 = vmatpush.msra.mxu0 %v887
    %915 = vmatmul.f32.gmra.mxu0 %v202
    %v916 = vpop.f32.mrf.mxu0
    %v917 = vadd.f32 %v897, %v916
    %918 = vdwg.mxu0
    %919 = vmatpush.msra.mxu0 0.0
    %920 = vmatpush.msra.mxu0 0.0
    %921 = vmatpush.msra.mxu0 0.0
    %922 = vmatpush.msra.mxu0 0.0
    %923 = vmatpush.msra.mxu0 0.0
    %924 = vmatpush.msra.mxu0 0.0
    %925 = vmatpush.msra.mxu0 0.0
    %926 = vmatpush.msra.mxu0 0.0
    %927 = vmatpush.msra.mxu0 0.0
    %928 = vmatpush.msra.mxu0 0.0
    %929 = vmatpush.msra.mxu0 0.0
    %930 = vmatpush.msra.mxu0 0.0
    %931 = vmatpush.msra.mxu0 %v890
    %932 = vmatpush.msra.mxu0 %v889
    %933 = vmatpush.msra.mxu0 %v888
    %934 = vmatpush.msra.mxu0 %v887
    %935 = vmatmul.f32.gmra.mxu0 %v225
    %v936 = vpop.f32.mrf.mxu0
    %v937 = vadd.f32 %v897, %v936
    %938 = vdwg.mxu0
    %939 = vmatpush.msra.mxu0 0.0
    %940 = vmatpush.msra.mxu0 0.0
    %941 = vmatpush.msra.mxu0 0.0
    %942 = vmatpush.msra.mxu0 0.0
    %943 = vmatpush.msra.mxu0 0.0
    %944 = vmatpush.msra.mxu0 0.0
    %945 = vmatpush.msra.mxu0 0.0
    %946 = vmatpush.msra.mxu0 0.0
    %947 = vmatpush.msra.mxu0 0.0
    %948 = vmatpush.msra.mxu0 0.0
    %949 = vmatpush.msra.mxu0 0.0
    %950 = vmatpush.msra.mxu0 0.0
    %951 = vmatpush.msra.mxu0 %v890
    %952 = vmatpush.msra.mxu0 %v889
    %953 = vmatpush.msra.mxu0 %v888
    %954 = vmatpush.msra.mxu0 %v887
    %955 = vmatmul.f32.gmra.mxu0 %v248
    %v956 = vpop.f32.mrf.mxu0
    %v957 = vadd.f32 %v897, %v956
    %958 = vdwg.mxu0
    %959 = vmatpush.msra.mxu0 0.0
    %960 = vmatpush.msra.mxu0 0.0
    %961 = vmatpush.msra.mxu0 0.0
    %962 = vmatpush.msra.mxu0 0.0
    %963 = vmatpush.msra.mxu0 0.0
    %964 = vmatpush.msra.mxu0 0.0
    %965 = vmatpush.msra.mxu0 0.0
    %966 = vmatpush.msra.mxu0 0.0
    %967 = vmatpush.msra.mxu0 0.0
    %968 = vmatpush.msra.mxu0 0.0
    %969 = vmatpush.msra.mxu0 0.0
    %970 = vmatpush.msra.mxu0 0.0
    %971 = vmatpush.msra.mxu0 %v890
    %972 = vmatpush.msra.mxu0 %v889
    %973 = vmatpush.msra.mxu0 %v888
    %974 = vmatpush.msra.mxu0 %v887
    %975 = vmatmul.f32.gmra.mxu0 %v271
    %v976 = vpop.f32.mrf.mxu0
    %v977 = vadd.f32 %v897, %v976
    %978 = vdwg.mxu0
    %979 = vmatpush.msra.mxu0 0.0
    %980 = vmatpush.msra.mxu0 0.0
    %981 = vmatpush.msra.mxu0 0.0
    %982 = vmatpush.msra.mxu0 0.0
    %983 = vmatpush.msra.mxu0 0.0
    %984 = vmatpush.msra.mxu0 0.0
    %985 = vmatpush.msra.mxu0 0.0
    %986 = vmatpush.msra.mxu0 0.0
    %987 = vmatpush.msra.mxu0 0.0
    %988 = vmatpush.msra.mxu0 0.0
    %989 = vmatpush.msra.mxu0 0.0
    %990 = vmatpush.msra.mxu0 0.0
    %991 = vmatpush.msra.mxu0 %v890
    %992 = vmatpush.msra.mxu0 %v889
    %993 = vmatpush.msra.mxu0 %v888
    %994 = vmatpush.msra.mxu0 %v887
    %995 = vmatmul.f32.gmra.mxu0 %v294
    %v996 = vpop.f32.mrf.mxu0
    %v997 = vadd.f32 %v897, %v996
    %998 = vdwg.mxu0
    %999 = vmatpush.msra.mxu0 0.0
    %1000 = vmatpush.msra.mxu0 0.0
    %1001 = vmatpush.msra.mxu0 0.0
    %1002 = vmatpush.msra.mxu0 0.0
    %1003 = vmatpush.msra.mxu0 0.0
    %1004 = vmatpush.msra.mxu0 0.0
    %1005 = vmatpush.msra.mxu0 0.0
    %1006 = vmatpush.msra.mxu0 0.0
    %1007 = vmatpush.msra.mxu0 0.0
    %1008 = vmatpush.msra.mxu0 0.0
    %1009 = vmatpush.msra.mxu0 0.0
    %1010 = vmatpush.msra.mxu0 0.0
    %1011 = vmatpush.msra.mxu0 %v890
    %1012 = vmatpush.msra.mxu0 %v889
    %1013 = vmatpush.msra.mxu0 %v888
    %1014 = vmatpush.msra.mxu0 %v887
    %1015 = vmatmul.f32.gmra.mxu0 %v317
    %v1016 = vpop.f32.mrf.mxu0
    %v1017 = vadd.f32 %v897, %v1016
    %1018 = vdwg.mxu0
    %1019 = vmatpush.msra.mxu0 0.0
    %1020 = vmatpush.msra.mxu0 0.0
    %1021 = vmatpush.msra.mxu0 0.0
    %1022 = vmatpush.msra.mxu0 0.0
    %1023 = vmatpush.msra.mxu0 0.0
    %1024 = vmatpush.msra.mxu0 0.0
    %1025 = vmatpush.msra.mxu0 0.0
    %1026 = vmatpush.msra.mxu0 0.0
    %1027 = vmatpush.msra.mxu0 0.0
    %1028 = vmatpush.msra.mxu0 0.0
    %1029 = vmatpush.msra.mxu0 0.0
    %1030 = vmatpush.msra.mxu0 0.0
    %1031 = vmatpush.msra.mxu0 %v890
    %1032 = vmatpush.msra.mxu0 %v889
    %1033 = vmatpush.msra.mxu0 %v888
    %1034 = vmatpush.msra.mxu0 %v887
    %1035 = vmatmul.f32.gmra.mxu0 %v340
    %v1036 = vpop.f32.mrf.mxu0
    %v1037 = vadd.f32 %v897, %v1036
    %1038 = vdwg.mxu0
    %1039 = vmatpush.msra.mxu0 0.0
    %1040 = vmatpush.msra.mxu0 0.0
    %1041 = vmatpush.msra.mxu0 0.0
    %1042 = vmatpush.msra.mxu0 0.0
    %1043 = vmatpush.msra.mxu0 0.0
    %1044 = vmatpush.msra.mxu0 0.0
    %1045 = vmatpush.msra.mxu0 0.0
    %1046 = vmatpush.msra.mxu0 0.0
    %1047 = vmatpush.msra.mxu0 0.0
    %1048 = vmatpush.msra.mxu0 0.0
    %1049 = vmatpush.msra.mxu0 0.0
    %1050 = vmatpush.msra.mxu0 0.0
    %1051 = vmatpush.msra.mxu0 %v890
    %1052 = vmatpush.msra.mxu0 %v889
    %1053 = vmatpush.msra.mxu0 %v888
    %1054 = vmatpush.msra.mxu0 %v887
    %1055 = vmatmul.f32.gmra.mxu0 %v363
    %v1056 = vpop.f32.mrf.mxu0
    %v1057 = vadd.f32 %v897, %v1056
    %1058 = vdwg.mxu0
    %1059 = vmatpush.msra.mxu0 0.0
    %1060 = vmatpush.msra.mxu0 0.0
    %1061 = vmatpush.msra.mxu0 0.0
    %1062 = vmatpush.msra.mxu0 0.0
    %1063 = vmatpush.msra.mxu0 0.0
    %1064 = vmatpush.msra.mxu0 0.0
    %1065 = vmatpush.msra.mxu0 0.0
    %1066 = vmatpush.msra.mxu0 0.0
    %1067 = vmatpush.msra.mxu0 0.0
    %1068 = vmatpush.msra.mxu0 0.0
    %1069 = vmatpush.msra.mxu0 0.0
    %1070 = vmatpush.msra.mxu0 0.0
    %1071 = vmatpush.msra.mxu0 %v894
    %1072 = vmatpush.msra.mxu0 %v893
    %1073 = vmatpush.msra.mxu0 %v892
    %1074 = vmatpush.msra.mxu0 %v891
    %1075 = vmatmul.f32.gmra.mxu0 %v386
    %v1076 = vpop.f32.mrf.mxu0
    %v1077 = vadd.f32 0.0, %v1076
    %1078 = vdwg.mxu0
    %v1079 = vadd.f32 %v1057, %v1077
    %v1080 = vxor.u32 %v1079, 2147483648
    %v1081 = vmul.f32 %v1080, 1.442695
    %v1082 = vpow.pop %v1081
    %v1083 = vadd.f32 %v1082, 1.0
    %v1084 = vrcp.pop %v1083
    %v1085 = vmul.f32 %v1083, %v1084
    %v1086 = vsub.f32 1.0, %v1085
    %v1087 = vmul.f32 %v1084, %v1086
    %v1088 = vadd.f32 %v1084, %v1087
    %vm1089 = vweird.f32 %v1083
    %vm1090 = vweird.f32 %v1084
    %vm1091 = vmor %vm1089, %vm1090
    %v1092 = vsel %vm1091, %v1084, %v1088
    %v1093 = vand.u32 2147483647, %v1083
    %vm1094 = vcmp.eq.f32.partialorder %v1093, 8.507059e+37
    %v1095 = vand.u32 %v1083, 2147483648
    %v1096 = vor.u32 1.1754944e-38, %v1095
    %v1097 = vsel %vm1094, %v1096, %v1092
    %v1098 = vmul.f32 1.0, %v1097
    %v1099 = vtanh.pop %v1079
    %v1100 = vmul.f32 %v1098, 0.0
    %1102 = vrot.lane.b32.xlu0 %v1099, 64
    %v1103 = vpop.permute.xlu0 %1102
    %v1105 = vmul.f32 %v1098, %v1103
    %1107 = vrot.lane.b32.xlu0 %v1105, 32
    %v1108 = vpop.permute.xlu0 %1107
    %v1110 = vadd.f32 %v1100, %v1108
    %v1111 = vtanh.pop %v1110
    %1113 = vrot.lane.b32.xlu0 %v1111, 64
    %v1114 = vpop.permute.xlu0 %1113
    %v1116 = vmul.f32 %v1098, %v1114
    %1118 = vrot.lane.b32.xlu0 %v1116, 32
    %v1119 = vpop.permute.xlu0 %1118
    %v1120 = vsel %vm200, %v1119, 0
    %1122 = vmatpush.msra.mxu0 0.0
    %1123 = vmatpush.msra.mxu0 0.0
    %1124 = vmatpush.msra.mxu0 0.0
    %1125 = vmatpush.msra.mxu0 0.0
    %1126 = vmatpush.msra.mxu0 0.0
    %1127 = vmatpush.msra.mxu0 0.0
    %1128 = vmatpush.msra.mxu0 0.0
    %1129 = vmatpush.msra.mxu0 0.0
    %1130 = vmatpush.msra.mxu0 0.0
    %1131 = vmatpush.msra.mxu0 0.0
    %1132 = vmatpush.msra.mxu0 0.0
    %1133 = vmatpush.msra.mxu0 0.0
    %1134 = vmatpush.msra.mxu0 %v894
    %1135 = vmatpush.msra.mxu0 %v893
    %1136 = vmatpush.msra.mxu0 %v892
    %1137 = vmatpush.msra.mxu0 %v891
    %1138 = vmatmul.f32.gmra.mxu0 %v1120
    %v1139 = vpop.f32.mrf.mxu0
    %v1140 = vadd.f32 0.0, %v1139
    %1141 = vdwg.mxu0
    %v1142 = vadd.f32 %v1037, %v1140
    %v1143 = vxor.u32 %v1142, 2147483648
    %v1144 = vmul.f32 %v1143, 1.442695
    %v1145 = vpow.pop %v1144
    %v1146 = vadd.f32 %v1145, 1.0
    %v1147 = vrcp.pop %v1146
    %v1148 = vmul.f32 %v1146, %v1147
    %v1149 = vsub.f32 1.0, %v1148
    %v1150 = vmul.f32 %v1147, %v1149
    %v1151 = vadd.f32 %v1147, %v1150
    %vm1152 = vweird.f32 %v1146
    %vm1153 = vweird.f32 %v1147
    %vm1154 = vmor %vm1152, %vm1153
    %v1155 = vsel %vm1154, %v1147, %v1151
    %v1156 = vand.u32 2147483647, %v1146
    %vm1157 = vcmp.eq.f32.partialorder %v1156, 8.507059e+37
    %v1158 = vand.u32 %v1146, 2147483648
    %v1159 = vor.u32 1.1754944e-38, %v1158
    %v1160 = vsel %vm1157, %v1159, %v1155
    %v1161 = vmul.f32 1.0, %v1160
    %v1162 = vtanh.pop %v1142
    %v1163 = vmul.f32 %v1161, %v1110
    %1165 = vrot.lane.b32.xlu0 %v1162, 64
    %v1166 = vpop.permute.xlu0 %1165
    %v1168 = vmul.f32 %v1161, %v1166
    %1170 = vrot.lane.b32.xlu0 %v1168, 32
    %v1171 = vpop.permute.xlu0 %1170
    %v1173 = vadd.f32 %v1163, %v1171
    %v1174 = vtanh.pop %v1173
    %1176 = vrot.lane.b32.xlu0 %v1174, 64
    %v1177 = vpop.permute.xlu0 %1176
    %v1179 = vmul.f32 %v1161, %v1177
    %1181 = vrot.lane.b32.xlu0 %v1179, 32
    %v1182 = vpop.permute.xlu0 %1181
    %v1183 = vsel %vm200, %v1182, 0
    %1185 = vmatpush.msra.mxu0 0.0
    %1186 = vmatpush.msra.mxu0 0.0
    %1187 = vmatpush.msra.mxu0 0.0
    %1188 = vmatpush.msra.mxu0 0.0
    %1189 = vmatpush.msra.mxu0 0.0
    %1190 = vmatpush.msra.mxu0 0.0
    %1191 = vmatpush.msra.mxu0 0.0
    %1192 = vmatpush.msra.mxu0 0.0
    %1193 = vmatpush.msra.mxu0 0.0
    %1194 = vmatpush.msra.mxu0 0.0
    %1195 = vmatpush.msra.mxu0 0.0
    %1196 = vmatpush.msra.mxu0 0.0
    %1197 = vmatpush.msra.mxu0 %v894
    %1198 = vmatpush.msra.mxu0 %v893
    %1199 = vmatpush.msra.mxu0 %v892
    %1200 = vmatpush.msra.mxu0 %v891
    %1201 = vmatmul.f32.gmra.mxu0 %v1183
    %v1202 = vpop.f32.mrf.mxu0
    %v1203 = vadd.f32 0.0, %v1202
    %1204 = vdwg.mxu0
    %v1205 = vadd.f32 %v1017, %v1203
    %v1206 = vxor.u32 %v1205, 2147483648
    %v1207 = vmul.f32 %v1206, 1.442695
    %v1208 = vpow.pop %v1207
    %v1209 = vadd.f32 %v1208, 1.0
    %v1210 = vrcp.pop %v1209
    %v1211 = vmul.f32 %v1209, %v1210
    %v1212 = vsub.f32 1.0, %v1211
    %v1213 = vmul.f32 %v1210, %v1212
    %v1214 = vadd.f32 %v1210, %v1213
    %vm1215 = vweird.f32 %v1209
    %vm1216 = vweird.f32 %v1210
    %vm1217 = vmor %vm1215, %vm1216
    %v1218 = vsel %vm1217, %v1210, %v1214
    %v1219 = vand.u32 2147483647, %v1209
    %vm1220 = vcmp.eq.f32.partialorder %v1219, 8.507059e+37
    %v1221 = vand.u32 %v1209, 2147483648
    %v1222 = vor.u32 1.1754944e-38, %v1221
    %v1223 = vsel %vm1220, %v1222, %v1218
    %v1224 = vmul.f32 1.0, %v1223
    %v1225 = vtanh.pop %v1205
    %v1226 = vmul.f32 %v1224, %v1173
    %1228 = vrot.lane.b32.xlu0 %v1225, 64
    %v1229 = vpop.permute.xlu0 %1228
    %v1231 = vmul.f32 %v1224, %v1229
    %1233 = vrot.lane.b32.xlu0 %v1231, 32
    %v1234 = vpop.permute.xlu0 %1233
    %v1236 = vadd.f32 %v1226, %v1234
    %v1237 = vtanh.pop %v1236
    %1239 = vrot.lane.b32.xlu0 %v1237, 64
    %v1240 = vpop.permute.xlu0 %1239
    %v1242 = vmul.f32 %v1224, %v1240
    %1244 = vrot.lane.b32.xlu0 %v1242, 32
    %v1245 = vpop.permute.xlu0 %1244
    %v1246 = vsel %vm200, %v1245, 0
    %1248 = vmatpush.msra.mxu0 0.0
    %1249 = vmatpush.msra.mxu0 0.0
    %1250 = vmatpush.msra.mxu0 0.0
    %1251 = vmatpush.msra.mxu0 0.0
    %1252 = vmatpush.msra.mxu0 0.0
    %1253 = vmatpush.msra.mxu0 0.0
    %1254 = vmatpush.msra.mxu0 0.0
    %1255 = vmatpush.msra.mxu0 0.0
    %1256 = vmatpush.msra.mxu0 0.0
    %1257 = vmatpush.msra.mxu0 0.0
    %1258 = vmatpush.msra.mxu0 0.0
    %1259 = vmatpush.msra.mxu0 0.0
    %1260 = vmatpush.msra.mxu0 %v894
    %1261 = vmatpush.msra.mxu0 %v893
    %1262 = vmatpush.msra.mxu0 %v892
    %1263 = vmatpush.msra.mxu0 %v891
    %1264 = vmatmul.f32.gmra.mxu0 %v1246
    %v1265 = vpop.f32.mrf.mxu0
    %v1266 = vadd.f32 0.0, %v1265
    %1267 = vdwg.mxu0
    %v1268 = vadd.f32 %v997, %v1266
    %v1269 = vxor.u32 %v1268, 2147483648
    %v1270 = vmul.f32 %v1269, 1.442695
    %v1271 = vpow.pop %v1270
    %v1272 = vadd.f32 %v1271, 1.0
    %v1273 = vrcp.pop %v1272
    %v1274 = vmul.f32 %v1272, %v1273
    %v1275 = vsub.f32 1.0, %v1274
    %v1276 = vmul.f32 %v1273, %v1275
    %v1277 = vadd.f32 %v1273, %v1276
    %vm1278 = vweird.f32 %v1272
    %vm1279 = vweird.f32 %v1273
    %vm1280 = vmor %vm1278, %vm1279
    %v1281 = vsel %vm1280, %v1273, %v1277
    %v1282 = vand.u32 2147483647, %v1272
    %vm1283 = vcmp.eq.f32.partialorder %v1282, 8.507059e+37
    %v1284 = vand.u32 %v1272, 2147483648
    %v1285 = vor.u32 1.1754944e-38, %v1284
    %v1286 = vsel %vm1283, %v1285, %v1281
    %v1287 = vmul.f32 1.0, %v1286
    %v1288 = vtanh.pop %v1268
    %v1289 = vmul.f32 %v1287, %v1236
    %1291 = vrot.lane.b32.xlu0 %v1288, 64
    %v1292 = vpop.permute.xlu0 %1291
    %v1294 = vmul.f32 %v1287, %v1292
    %1296 = vrot.lane.b32.xlu0 %v1294, 32
    %v1297 = vpop.permute.xlu0 %1296
    %v1299 = vadd.f32 %v1289, %v1297
    %v1300 = vtanh.pop %v1299
    %1302 = vrot.lane.b32.xlu0 %v1300, 64
    %v1303 = vpop.permute.xlu0 %1302
    %v1305 = vmul.f32 %v1287, %v1303
    %1307 = vrot.lane.b32.xlu0 %v1305, 32
    %v1308 = vpop.permute.xlu0 %1307
    %v1309 = vsel %vm200, %v1308, 0
    %1311 = vmatpush.msra.mxu0 0.0
    %1312 = vmatpush.msra.mxu0 0.0
    %1313 = vmatpush.msra.mxu0 0.0
    %1314 = vmatpush.msra.mxu0 0.0
    %1315 = vmatpush.msra.mxu0 0.0
    %1316 = vmatpush.msra.mxu0 0.0
    %1317 = vmatpush.msra.mxu0 0.0
    %1318 = vmatpush.msra.mxu0 0.0
    %1319 = vmatpush.msra.mxu0 0.0
    %1320 = vmatpush.msra.mxu0 0.0
    %1321 = vmatpush.msra.mxu0 0.0
    %1322 = vmatpush.msra.mxu0 0.0
    %1323 = vmatpush.msra.mxu0 %v894
    %1324 = vmatpush.msra.mxu0 %v893
    %1325 = vmatpush.msra.mxu0 %v892
    %1326 = vmatpush.msra.mxu0 %v891
    %1327 = vmatmul.f32.gmra.mxu0 %v1309
    %v1328 = vpop.f32.mrf.mxu0
    %v1329 = vadd.f32 0.0, %v1328
    %1330 = vdwg.mxu0
    %v1331 = vadd.f32 %v977, %v1329
    %v1332 = vxor.u32 %v1331, 2147483648
    %v1333 = vmul.f32 %v1332, 1.442695
    %v1334 = vpow.pop %v1333
    %v1335 = vadd.f32 %v1334, 1.0
    %v1336 = vrcp.pop %v1335
    %v1337 = vmul.f32 %v1335, %v1336
    %v1338 = vsub.f32 1.0, %v1337
    %v1339 = vmul.f32 %v1336, %v1338
    %v1340 = vadd.f32 %v1336, %v1339
    %vm1341 = vweird.f32 %v1335
    %vm1342 = vweird.f32 %v1336
    %vm1343 = vmor %vm1341, %vm1342
    %v1344 = vsel %vm1343, %v1336, %v1340
    %v1345 = vand.u32 2147483647, %v1335
    %vm1346 = vcmp.eq.f32.partialorder %v1345, 8.507059e+37
    %v1347 = vand.u32 %v1335, 2147483648
    %v1348 = vor.u32 1.1754944e-38, %v1347
    %v1349 = vsel %vm1346, %v1348, %v1344
    %v1350 = vmul.f32 1.0, %v1349
    %v1351 = vtanh.pop %v1331
    %v1352 = vmul.f32 %v1350, %v1299
    %1354 = vrot.lane.b32.xlu0 %v1351, 64
    %v1355 = vpop.permute.xlu0 %1354
    %v1357 = vmul.f32 %v1350, %v1355
    %1359 = vrot.lane.b32.xlu0 %v1357, 32
    %v1360 = vpop.permute.xlu0 %1359
    %v1362 = vadd.f32 %v1352, %v1360
    %v1363 = vtanh.pop %v1362
    %1365 = vrot.lane.b32.xlu0 %v1363, 64
    %v1366 = vpop.permute.xlu0 %1365
    %v1368 = vmul.f32 %v1350, %v1366
    %1370 = vrot.lane.b32.xlu0 %v1368, 32
    %v1371 = vpop.permute.xlu0 %1370
    %v1372 = vsel %vm200, %v1371, 0
    %1374 = vmatpush.msra.mxu0 0.0
    %1375 = vmatpush.msra.mxu0 0.0
    %1376 = vmatpush.msra.mxu0 0.0
    %1377 = vmatpush.msra.mxu0 0.0
    %1378 = vmatpush.msra.mxu0 0.0
    %1379 = vmatpush.msra.mxu0 0.0
    %1380 = vmatpush.msra.mxu0 0.0
    %1381 = vmatpush.msra.mxu0 0.0
    %1382 = vmatpush.msra.mxu0 0.0
    %1383 = vmatpush.msra.mxu0 0.0
    %1384 = vmatpush.msra.mxu0 0.0
    %1385 = vmatpush.msra.mxu0 0.0
    %1386 = vmatpush.msra.mxu0 %v894
    %1387 = vmatpush.msra.mxu0 %v893
    %1388 = vmatpush.msra.mxu0 %v892
    %1389 = vmatpush.msra.mxu0 %v891
    %1390 = vmatmul.f32.gmra.mxu0 %v1372
    %v1391 = vpop.f32.mrf.mxu0
    %v1392 = vadd.f32 0.0, %v1391
    %1393 = vdwg.mxu0
    %v1394 = vadd.f32 %v957, %v1392
    %v1395 = vxor.u32 %v1394, 2147483648
    %v1396 = vmul.f32 %v1395, 1.442695
    %v1397 = vpow.pop %v1396
    %v1398 = vadd.f32 %v1397, 1.0
    %v1399 = vrcp.pop %v1398
    %v1400 = vmul.f32 %v1398, %v1399
    %v1401 = vsub.f32 1.0, %v1400
    %v1402 = vmul.f32 %v1399, %v1401
    %v1403 = vadd.f32 %v1399, %v1402
    %vm1404 = vweird.f32 %v1398
    %vm1405 = vweird.f32 %v1399
    %vm1406 = vmor %vm1404, %vm1405
    %v1407 = vsel %vm1406, %v1399, %v1403
    %v1408 = vand.u32 2147483647, %v1398
    %vm1409 = vcmp.eq.f32.partialorder %v1408, 8.507059e+37
    %v1410 = vand.u32 %v1398, 2147483648
    %v1411 = vor.u32 1.1754944e-38, %v1410
    %v1412 = vsel %vm1409, %v1411, %v1407
    %v1413 = vmul.f32 1.0, %v1412
    %v1414 = vtanh.pop %v1394
    %v1415 = vmul.f32 %v1413, %v1362
    %1417 = vrot.lane.b32.xlu0 %v1414, 64
    %v1418 = vpop.permute.xlu0 %1417
    %v1420 = vmul.f32 %v1413, %v1418
    %1422 = vrot.lane.b32.xlu0 %v1420, 32
    %v1423 = vpop.permute.xlu0 %1422
    %v1425 = vadd.f32 %v1415, %v1423
    %v1426 = vtanh.pop %v1425
    %1428 = vrot.lane.b32.xlu0 %v1426, 64
    %v1429 = vpop.permute.xlu0 %1428
    %v1431 = vmul.f32 %v1413, %v1429
    %1433 = vrot.lane.b32.xlu0 %v1431, 32
    %v1434 = vpop.permute.xlu0 %1433
    %v1435 = vsel %vm200, %v1434, 0
    %1437 = vmatpush.msra.mxu0 0.0
    %1438 = vmatpush.msra.mxu0 0.0
    %1439 = vmatpush.msra.mxu0 0.0
    %1440 = vmatpush.msra.mxu0 0.0
    %1441 = vmatpush.msra.mxu0 0.0
    %1442 = vmatpush.msra.mxu0 0.0
    %1443 = vmatpush.msra.mxu0 0.0
    %1444 = vmatpush.msra.mxu0 0.0
    %1445 = vmatpush.msra.mxu0 0.0
    %1446 = vmatpush.msra.mxu0 0.0
    %1447 = vmatpush.msra.mxu0 0.0
    %1448 = vmatpush.msra.mxu0 0.0
    %1449 = vmatpush.msra.mxu0 %v894
    %1450 = vmatpush.msra.mxu0 %v893
    %1451 = vmatpush.msra.mxu0 %v892
    %1452 = vmatpush.msra.mxu0 %v891
    %1453 = vmatmul.f32.gmra.mxu0 %v1435
    %v1454 = vpop.f32.mrf.mxu0
    %v1455 = vadd.f32 0.0, %v1454
    %1456 = vdwg.mxu0
    %v1457 = vadd.f32 %v937, %v1455
    %v1458 = vxor.u32 %v1457, 2147483648
    %v1459 = vmul.f32 %v1458, 1.442695
    %v1460 = vpow.pop %v1459
    %v1461 = vadd.f32 %v1460, 1.0
    %v1462 = vrcp.pop %v1461
    %v1463 = vmul.f32 %v1461, %v1462
    %v1464 = vsub.f32 1.0, %v1463
    %v1465 = vmul.f32 %v1462, %v1464
    %v1466 = vadd.f32 %v1462, %v1465
    %vm1467 = vweird.f32 %v1461
    %vm1468 = vweird.f32 %v1462
    %vm1469 = vmor %vm1467, %vm1468
    %v1470 = vsel %vm1469, %v1462, %v1466
    %v1471 = vand.u32 2147483647, %v1461
    %vm1472 = vcmp.eq.f32.partialorder %v1471, 8.507059e+37
    %v1473 = vand.u32 %v1461, 2147483648
    %v1474 = vor.u32 1.1754944e-38, %v1473
    %v1475 = vsel %vm1472, %v1474, %v1470
    %v1476 = vmul.f32 1.0, %v1475
    %v1477 = vtanh.pop %v1457
    %v1478 = vmul.f32 %v1476, %v1425
    %1480 = vrot.lane.b32.xlu0 %v1477, 64
    %v1481 = vpop.permute.xlu0 %1480
    %v1483 = vmul.f32 %v1476, %v1481
    %1485 = vrot.lane.b32.xlu0 %v1483, 32
    %v1486 = vpop.permute.xlu0 %1485
    %v1488 = vadd.f32 %v1478, %v1486
    %v1489 = vtanh.pop %v1488
    %1491 = vrot.lane.b32.xlu0 %v1489, 64
    %v1492 = vpop.permute.xlu0 %1491
    %v1494 = vmul.f32 %v1476, %v1492
    %1496 = vrot.lane.b32.xlu0 %v1494, 32
    %v1497 = vpop.permute.xlu0 %1496
    %v1498 = vsel %vm200, %v1497, 0
    %1500 = vmatpush.msra.mxu0 0.0
    %1501 = vmatpush.msra.mxu0 0.0
    %1502 = vmatpush.msra.mxu0 0.0
    %1503 = vmatpush.msra.mxu0 0.0
    %1504 = vmatpush.msra.mxu0 0.0
    %1505 = vmatpush.msra.mxu0 0.0
    %1506 = vmatpush.msra.mxu0 0.0
    %1507 = vmatpush.msra.mxu0 0.0
    %1508 = vmatpush.msra.mxu0 0.0
    %1509 = vmatpush.msra.mxu0 0.0
    %1510 = vmatpush.msra.mxu0 0.0
    %1511 = vmatpush.msra.mxu0 0.0
    %1512 = vmatpush.msra.mxu0 %v894
    %1513 = vmatpush.msra.mxu0 %v893
    %1514 = vmatpush.msra.mxu0 %v892
    %1515 = vmatpush.msra.mxu0 %v891
    %1516 = vmatmul.f32.gmra.mxu0 %v1498
    %v1517 = vpop.f32.mrf.mxu0
    %v1518 = vadd.f32 0.0, %v1517
    %1519 = vdwg.mxu0
    %v1520 = vadd.f32 %v917, %v1518
    %v1521 = vxor.u32 %v1520, 2147483648
    %v1522 = vmul.f32 %v1521, 1.442695
    %v1523 = vpow.pop %v1522
    %v1524 = vadd.f32 %v1523, 1.0
    %v1525 = vrcp.pop %v1524
    %v1526 = vmul.f32 %v1524, %v1525
    %v1527 = vsub.f32 1.0, %v1526
    %v1528 = vmul.f32 %v1525, %v1527
    %v1529 = vadd.f32 %v1525, %v1528
    %vm1530 = vweird.f32 %v1524
    %vm1531 = vweird.f32 %v1525
    %vm1532 = vmor %vm1530, %vm1531
    %v1533 = vsel %vm1532, %v1525, %v1529
    %v1534 = vand.u32 2147483647, %v1524
    %vm1535 = vcmp.eq.f32.partialorder %v1534, 8.507059e+37
    %v1536 = vand.u32 %v1524, 2147483648
    %v1537 = vor.u32 1.1754944e-38, %v1536
    %v1538 = vsel %vm1535, %v1537, %v1533
    %v1539 = vmul.f32 1.0, %v1538
    %v1540 = vtanh.pop %v1520
    %v1541 = vmul.f32 %v1539, %v1488
    %1543 = vrot.lane.b32.xlu0 %v1540, 64
    %v1544 = vpop.permute.xlu0 %1543
    %v1546 = vmul.f32 %v1539, %v1544
    %1548 = vrot.lane.b32.xlu0 %v1546, 32
    %v1549 = vpop.permute.xlu0 %1548
    %v1551 = vadd.f32 %v1541, %v1549
    %v1552 = vtanh.pop %v1551
    %1554 = vrot.lane.b32.xlu0 %v1552, 64
    %v1555 = vpop.permute.xlu0 %1554
    %v1557 = vmul.f32 %v1539, %v1555
    %v1558 = vld [vmem:[#allocation10] sm:$0xff]
    %v1559 = vld [vmem:[#allocation10 + $0x8] sm:$0xff]
    %v1560 = vld [vmem:[#allocation10 + $0x10] sm:$0xff]
    %v1561 = vld [vmem:[#allocation10 + $0x18] sm:$0xff]
    %v1562 = vld [vmem:[#allocation10 + $0x20] sm:$0xff]
    %v1563 = vld [vmem:[#allocation10 + $0x28] sm:$0xff]
    %v1564 = vld [vmem:[#allocation10 + $0x30] sm:$0xff]
    %v1565 = vld [vmem:[#allocation10 + $0x38] sm:$0xff]
    %v1566 = vld [vmem:[#allocation11] sm:$0xff]
    %v1567 = vld [vmem:[#allocation11 + $0x8] sm:$0xff]
    %v1568 = vld [vmem:[#allocation11 + $0x10] sm:$0xff]
    %v1569 = vld [vmem:[#allocation11 + $0x18] sm:$0xff]
    %v1570 = vld [vmem:[%s10] sm:$0x1]
    %1572 = vrot.lane.b32.xlu0 %v1557, 32
    %v1573 = vpop.permute.xlu0 %1572
    %v1574 = vsel %vm200, %v1573, 0
    %1576 = vmatpush.msra.mxu0 0.0
    %1577 = vmatpush.msra.mxu0 0.0
    %1578 = vmatpush.msra.mxu0 0.0
    %1579 = vmatpush.msra.mxu0 0.0
    %1580 = vmatpush.msra.mxu0 0.0
    %1581 = vmatpush.msra.mxu0 0.0
    %1582 = vmatpush.msra.mxu0 0.0
    %1583 = vmatpush.msra.mxu0 0.0
    %1584 = vmatpush.msra.mxu0 0.0
    %1585 = vmatpush.msra.mxu0 0.0
    %1586 = vmatpush.msra.mxu0 0.0
    %1587 = vmatpush.msra.mxu0 0.0
    %1588 = vmatpush.msra.mxu0 %v1565
    %1589 = vmatpush.msra.mxu0 %v1564
    %1590 = vmatpush.msra.mxu0 %v1563
    %1591 = vmatpush.msra.mxu0 %v1562
    %1592 = vmatmul.f32.gmra.mxu0 %v1574
    %v1593 = vpop.f32.mrf.mxu0
    %v1594 = vadd.f32 0.0, %v1593
    %1595 = vdwg.mxu0
    %1596 = vmatpush.msra.mxu0 0.0
    %1597 = vmatpush.msra.mxu0 0.0
    %1598 = vmatpush.msra.mxu0 0.0
    %1599 = vmatpush.msra.mxu0 0.0
    %1600 = vmatpush.msra.mxu0 0.0
    %1601 = vmatpush.msra.mxu0 0.0
    %1602 = vmatpush.msra.mxu0 0.0
    %1603 = vmatpush.msra.mxu0 0.0
    %1604 = vmatpush.msra.mxu0 0.0
    %1605 = vmatpush.msra.mxu0 0.0
    %1606 = vmatpush.msra.mxu0 0.0
    %1607 = vmatpush.msra.mxu0 0.0
    %1608 = vmatpush.msra.mxu0 %v1561
    %1609 = vmatpush.msra.mxu0 %v1560
    %1610 = vmatpush.msra.mxu0 %v1559
    %1611 = vmatpush.msra.mxu0 %v1558
    %1612 = vmatmul.f32.gmra.mxu0 %v449
    %v1613 = vpop.f32.mrf.mxu0
    %v1614 = vadd.f32 %v1594, %v1613
    %1615 = vdwg.mxu0
    %v1617 = vperm.slane %v1570, 0
    %v1619 = vadd.f32 %v1614, %v1617
    %1620 = vmatpush.msra.mxu0 0.0
    %1621 = vmatpush.msra.mxu0 0.0
    %1622 = vmatpush.msra.mxu0 0.0
    %1623 = vmatpush.msra.mxu0 0.0
    %1624 = vmatpush.msra.mxu0 0.0
    %1625 = vmatpush.msra.mxu0 0.0
    %1626 = vmatpush.msra.mxu0 0.0
    %1627 = vmatpush.msra.mxu0 0.0
    %1628 = vmatpush.msra.mxu0 0.0
    %1629 = vmatpush.msra.mxu0 0.0
    %1630 = vmatpush.msra.mxu0 0.0
    %1631 = vmatpush.msra.mxu0 0.0
    %1632 = vmatpush.msra.mxu0 %v1565
    %1633 = vmatpush.msra.mxu0 %v1564
    %1634 = vmatpush.msra.mxu0 %v1563
    %1635 = vmatpush.msra.mxu0 %v1562
    %1636 = vmatmul.f32.gmra.mxu0 %v1498
    %v1637 = vpop.f32.mrf.mxu0
    %v1638 = vadd.f32 0.0, %v1637
    %1639 = vdwg.mxu0
    %1640 = vmatpush.msra.mxu0 0.0
    %1641 = vmatpush.msra.mxu0 0.0
    %1642 = vmatpush.msra.mxu0 0.0
    %1643 = vmatpush.msra.mxu0 0.0
    %1644 = vmatpush.msra.mxu0 0.0
    %1645 = vmatpush.msra.mxu0 0.0
    %1646 = vmatpush.msra.mxu0 0.0
    %1647 = vmatpush.msra.mxu0 0.0
    %1648 = vmatpush.msra.mxu0 0.0
    %1649 = vmatpush.msra.mxu0 0.0
    %1650 = vmatpush.msra.mxu0 0.0
    %1651 = vmatpush.msra.mxu0 0.0
    %1652 = vmatpush.msra.mxu0 %v1561
    %1653 = vmatpush.msra.mxu0 %v1560
    %1654 = vmatpush.msra.mxu0 %v1559
    %1655 = vmatpush.msra.mxu0 %v1558
    %1656 = vmatmul.f32.gmra.mxu0 %v512
    %v1657 = vpop.f32.mrf.mxu0
    %v1658 = vadd.f32 %v1638, %v1657
    %1659 = vdwg.mxu0
    %v1660 = vadd.f32 %v1658, %v1617
    %1661 = vmatpush.msra.mxu0 0.0
    %1662 = vmatpush.msra.mxu0 0.0
    %1663 = vmatpush.msra.mxu0 0.0
    %1664 = vmatpush.msra.mxu0 0.0
    %1665 = vmatpush.msra.mxu0 0.0
    %1666 = vmatpush.msra.mxu0 0.0
    %1667 = vmatpush.msra.mxu0 0.0
    %1668 = vmatpush.msra.mxu0 0.0
    %1669 = vmatpush.msra.mxu0 0.0
    %1670 = vmatpush.msra.mxu0 0.0
    %1671 = vmatpush.msra.mxu0 0.0
    %1672 = vmatpush.msra.mxu0 0.0
    %1673 = vmatpush.msra.mxu0 %v1565
    %1674 = vmatpush.msra.mxu0 %v1564
    %1675 = vmatpush.msra.mxu0 %v1563
    %1676 = vmatpush.msra.mxu0 %v1562
    %1677 = vmatmul.f32.gmra.mxu0 %v1435
    %v1678 = vpop.f32.mrf.mxu0
    %v1679 = vadd.f32 0.0, %v1678
    %1680 = vdwg.mxu0
    %1681 = vmatpush.msra.mxu0 0.0
    %1682 = vmatpush.msra.mxu0 0.0
    %1683 = vmatpush.msra.mxu0 0.0
    %1684 = vmatpush.msra.mxu0 0.0
    %1685 = vmatpush.msra.mxu0 0.0
    %1686 = vmatpush.msra.mxu0 0.0
    %1687 = vmatpush.msra.mxu0 0.0
    %1688 = vmatpush.msra.mxu0 0.0
    %1689 = vmatpush.msra.mxu0 0.0
    %1690 = vmatpush.msra.mxu0 0.0
    %1691 = vmatpush.msra.mxu0 0.0
    %1692 = vmatpush.msra.mxu0 0.0
    %1693 = vmatpush.msra.mxu0 %v1561
    %1694 = vmatpush.msra.mxu0 %v1560
    %1695 = vmatpush.msra.mxu0 %v1559
    %1696 = vmatpush.msra.mxu0 %v1558
    %1697 = vmatmul.f32.gmra.mxu0 %v575
    %v1698 = vpop.f32.mrf.mxu0
    %v1699 = vadd.f32 %v1679, %v1698
    %1700 = vdwg.mxu0
    %v1701 = vadd.f32 %v1699, %v1617
    %1702 = vmatpush.msra.mxu0 0.0
    %1703 = vmatpush.msra.mxu0 0.0
    %1704 = vmatpush.msra.mxu0 0.0
    %1705 = vmatpush.msra.mxu0 0.0
    %1706 = vmatpush.msra.mxu0 0.0
    %1707 = vmatpush.msra.mxu0 0.0
    %1708 = vmatpush.msra.mxu0 0.0
    %1709 = vmatpush.msra.mxu0 0.0
    %1710 = vmatpush.msra.mxu0 0.0
    %1711 = vmatpush.msra.mxu0 0.0
    %1712 = vmatpush.msra.mxu0 0.0
    %1713 = vmatpush.msra.mxu0 0.0
    %1714 = vmatpush.msra.mxu0 %v1565
    %1715 = vmatpush.msra.mxu0 %v1564
    %1716 = vmatpush.msra.mxu0 %v1563
    %1717 = vmatpush.msra.mxu0 %v1562
    %1718 = vmatmul.f32.gmra.mxu0 %v1372
    %v1719 = vpop.f32.mrf.mxu0
    %v1720 = vadd.f32 0.0, %v1719
    %1721 = vdwg.mxu0
    %1722 = vmatpush.msra.mxu0 0.0
    %1723 = vmatpush.msra.mxu0 0.0
    %1724 = vmatpush.msra.mxu0 0.0
    %1725 = vmatpush.msra.mxu0 0.0
    %1726 = vmatpush.msra.mxu0 0.0
    %1727 = vmatpush.msra.mxu0 0.0
    %1728 = vmatpush.msra.mxu0 0.0
    %1729 = vmatpush.msra.mxu0 0.0
    %1730 = vmatpush.msra.mxu0 0.0
    %1731 = vmatpush.msra.mxu0 0.0
    %1732 = vmatpush.msra.mxu0 0.0
    %1733 = vmatpush.msra.mxu0 0.0
    %1734 = vmatpush.msra.mxu0 %v1561
    %1735 = vmatpush.msra.mxu0 %v1560
    %1736 = vmatpush.msra.mxu0 %v1559
    %1737 = vmatpush.msra.mxu0 %v1558
    %1738 = vmatmul.f32.gmra.mxu0 %v638
    %v1739 = vpop.f32.mrf.mxu0
    %v1740 = vadd.f32 %v1720, %v1739
    %1741 = vdwg.mxu0
    %v1742 = vadd.f32 %v1740, %v1617
    %1743 = vmatpush.msra.mxu0 0.0
    %1744 = vmatpush.msra.mxu0 0.0
    %1745 = vmatpush.msra.mxu0 0.0
    %1746 = vmatpush.msra.mxu0 0.0
    %1747 = vmatpush.msra.mxu0 0.0
    %1748 = vmatpush.msra.mxu0 0.0
    %1749 = vmatpush.msra.mxu0 0.0
    %1750 = vmatpush.msra.mxu0 0.0
    %1751 = vmatpush.msra.mxu0 0.0
    %1752 = vmatpush.msra.mxu0 0.0
    %1753 = vmatpush.msra.mxu0 0.0
    %1754 = vmatpush.msra.mxu0 0.0
    %1755 = vmatpush.msra.mxu0 %v1565
    %1756 = vmatpush.msra.mxu0 %v1564
    %1757 = vmatpush.msra.mxu0 %v1563
    %1758 = vmatpush.msra.mxu0 %v1562
    %1759 = vmatmul.f32.gmra.mxu0 %v1309
    %v1760 = vpop.f32.mrf.mxu0
    %v1761 = vadd.f32 0.0, %v1760
    %1762 = vdwg.mxu0
    %1763 = vmatpush.msra.mxu0 0.0
    %1764 = vmatpush.msra.mxu0 0.0
    %1765 = vmatpush.msra.mxu0 0.0
    %1766 = vmatpush.msra.mxu0 0.0
    %1767 = vmatpush.msra.mxu0 0.0
    %1768 = vmatpush.msra.mxu0 0.0
    %1769 = vmatpush.msra.mxu0 0.0
    %1770 = vmatpush.msra.mxu0 0.0
    %1771 = vmatpush.msra.mxu0 0.0
    %1772 = vmatpush.msra.mxu0 0.0
    %1773 = vmatpush.msra.mxu0 0.0
    %1774 = vmatpush.msra.mxu0 0.0
    %1775 = vmatpush.msra.mxu0 %v1561
    %1776 = vmatpush.msra.mxu0 %v1560
    %1777 = vmatpush.msra.mxu0 %v1559
    %1778 = vmatpush.msra.mxu0 %v1558
    %1779 = vmatmul.f32.gmra.mxu0 %v701
    %v1780 = vpop.f32.mrf.mxu0
    %v1781 = vadd.f32 %v1761, %v1780
    %1782 = vdwg.mxu0
    %v1783 = vadd.f32 %v1781, %v1617
    %1784 = vmatpush.msra.mxu0 0.0
    %1785 = vmatpush.msra.mxu0 0.0
    %1786 = vmatpush.msra.mxu0 0.0
    %1787 = vmatpush.msra.mxu0 0.0
    %1788 = vmatpush.msra.mxu0 0.0
    %1789 = vmatpush.msra.mxu0 0.0
    %1790 = vmatpush.msra.mxu0 0.0
    %1791 = vmatpush.msra.mxu0 0.0
    %1792 = vmatpush.msra.mxu0 0.0
    %1793 = vmatpush.msra.mxu0 0.0
    %1794 = vmatpush.msra.mxu0 0.0
    %1795 = vmatpush.msra.mxu0 0.0
    %1796 = vmatpush.msra.mxu0 %v1565
    %1797 = vmatpush.msra.mxu0 %v1564
    %1798 = vmatpush.msra.mxu0 %v1563
    %1799 = vmatpush.msra.mxu0 %v1562
    %1800 = vmatmul.f32.gmra.mxu0 %v1246
    %v1801 = vpop.f32.mrf.mxu0
    %v1802 = vadd.f32 0.0, %v1801
    %1803 = vdwg.mxu0
    %1804 = vmatpush.msra.mxu0 0.0
    %1805 = vmatpush.msra.mxu0 0.0
    %1806 = vmatpush.msra.mxu0 0.0
    %1807 = vmatpush.msra.mxu0 0.0
    %1808 = vmatpush.msra.mxu0 0.0
    %1809 = vmatpush.msra.mxu0 0.0
    %1810 = vmatpush.msra.mxu0 0.0
    %1811 = vmatpush.msra.mxu0 0.0
    %1812 = vmatpush.msra.mxu0 0.0
    %1813 = vmatpush.msra.mxu0 0.0
    %1814 = vmatpush.msra.mxu0 0.0
    %1815 = vmatpush.msra.mxu0 0.0
    %1816 = vmatpush.msra.mxu0 %v1561
    %1817 = vmatpush.msra.mxu0 %v1560
    %1818 = vmatpush.msra.mxu0 %v1559
    %1819 = vmatpush.msra.mxu0 %v1558
    %1820 = vmatmul.f32.gmra.mxu0 %v764
    %v1821 = vpop.f32.mrf.mxu0
    %v1822 = vadd.f32 %v1802, %v1821
    %1823 = vdwg.mxu0
    %v1824 = vadd.f32 %v1822, %v1617
    %1825 = vmatpush.msra.mxu0 0.0
    %1826 = vmatpush.msra.mxu0 0.0
    %1827 = vmatpush.msra.mxu0 0.0
    %1828 = vmatpush.msra.mxu0 0.0
    %1829 = vmatpush.msra.mxu0 0.0
    %1830 = vmatpush.msra.mxu0 0.0
    %1831 = vmatpush.msra.mxu0 0.0
    %1832 = vmatpush.msra.mxu0 0.0
    %1833 = vmatpush.msra.mxu0 0.0
    %1834 = vmatpush.msra.mxu0 0.0
    %1835 = vmatpush.msra.mxu0 0.0
    %1836 = vmatpush.msra.mxu0 0.0
    %1837 = vmatpush.msra.mxu0 %v1565
    %1838 = vmatpush.msra.mxu0 %v1564
    %1839 = vmatpush.msra.mxu0 %v1563
    %1840 = vmatpush.msra.mxu0 %v1562
    %1841 = vmatmul.f32.gmra.mxu0 %v1183
    %v1842 = vpop.f32.mrf.mxu0
    %v1843 = vadd.f32 0.0, %v1842
    %1844 = vdwg.mxu0
    %1845 = vmatpush.msra.mxu0 0.0
    %1846 = vmatpush.msra.mxu0 0.0
    %1847 = vmatpush.msra.mxu0 0.0
    %1848 = vmatpush.msra.mxu0 0.0
    %1849 = vmatpush.msra.mxu0 0.0
    %1850 = vmatpush.msra.mxu0 0.0
    %1851 = vmatpush.msra.mxu0 0.0
    %1852 = vmatpush.msra.mxu0 0.0
    %1853 = vmatpush.msra.mxu0 0.0
    %1854 = vmatpush.msra.mxu0 0.0
    %1855 = vmatpush.msra.mxu0 0.0
    %1856 = vmatpush.msra.mxu0 0.0
    %1857 = vmatpush.msra.mxu0 %v1561
    %1858 = vmatpush.msra.mxu0 %v1560
    %1859 = vmatpush.msra.mxu0 %v1559
    %1860 = vmatpush.msra.mxu0 %v1558
    %1861 = vmatmul.f32.gmra.mxu0 %v827
    %v1862 = vpop.f32.mrf.mxu0
    %v1863 = vadd.f32 %v1843, %v1862
    %1864 = vdwg.mxu0
    %v1865 = vadd.f32 %v1863, %v1617
    %1866 = vmatpush.msra.mxu0 0.0
    %1867 = vmatpush.msra.mxu0 0.0
    %1868 = vmatpush.msra.mxu0 0.0
    %1869 = vmatpush.msra.mxu0 0.0
    %1870 = vmatpush.msra.mxu0 0.0
    %1871 = vmatpush.msra.mxu0 0.0
    %1872 = vmatpush.msra.mxu0 0.0
    %1873 = vmatpush.msra.mxu0 0.0
    %1874 = vmatpush.msra.mxu0 0.0
    %1875 = vmatpush.msra.mxu0 0.0
    %1876 = vmatpush.msra.mxu0 0.0
    %1877 = vmatpush.msra.mxu0 0.0
    %1878 = vmatpush.msra.mxu0 %v1565
    %1879 = vmatpush.msra.mxu0 %v1564
    %1880 = vmatpush.msra.mxu0 %v1563
    %1881 = vmatpush.msra.mxu0 %v1562
    %1882 = vmatmul.f32.gmra.mxu0 %v1120
    %v1883 = vpop.f32.mrf.mxu0
    %v1884 = vadd.f32 0.0, %v1883
    %1885 = vdwg.mxu0
    %1887 = vrot.lane.b32.xlu0 %v886, 32
    %v1888 = vpop.permute.xlu0 %1887
    %v1889 = vsel %vm200, %v1888, 0
    %1891 = vmatpush.msra.mxu0 0.0
    %1892 = vmatpush.msra.mxu0 0.0
    %1893 = vmatpush.msra.mxu0 0.0
    %1894 = vmatpush.msra.mxu0 0.0
    %1895 = vmatpush.msra.mxu0 0.0
    %1896 = vmatpush.msra.mxu0 0.0
    %1897 = vmatpush.msra.mxu0 0.0
    %1898 = vmatpush.msra.mxu0 0.0
    %1899 = vmatpush.msra.mxu0 0.0
    %1900 = vmatpush.msra.mxu0 0.0
    %1901 = vmatpush.msra.mxu0 0.0
    %1902 = vmatpush.msra.mxu0 0.0
    %1903 = vmatpush.msra.mxu0 %v1561
    %1904 = vmatpush.msra.mxu0 %v1560
    %1905 = vmatpush.msra.mxu0 %v1559
    %1906 = vmatpush.msra.mxu0 %v1558
    %1907 = vmatmul.f32.gmra.mxu0 %v1889
    %v1908 = vpop.f32.mrf.mxu0
    %v1909 = vadd.f32 %v1884, %v1908
    %1910 = vdwg.mxu0
    %v1911 = vadd.f32 %v1909, %v1617
    %1912 = vmatpush.msra.mxu0 0.0
    %1913 = vmatpush.msra.mxu0 0.0
    %1914 = vmatpush.msra.mxu0 0.0
    %1915 = vmatpush.msra.mxu0 0.0
    %1916 = vmatpush.msra.mxu0 0.0
    %1917 = vmatpush.msra.mxu0 0.0
    %1918 = vmatpush.msra.mxu0 0.0
    %1919 = vmatpush.msra.mxu0 0.0
    %1920 = vmatpush.msra.mxu0 0.0
    %1921 = vmatpush.msra.mxu0 0.0
    %1922 = vmatpush.msra.mxu0 0.0
    %1923 = vmatpush.msra.mxu0 0.0
    %1924 = vmatpush.msra.mxu0 %v1569
    %1925 = vmatpush.msra.mxu0 %v1568
    %1926 = vmatpush.msra.mxu0 %v1567
    %1927 = vmatpush.msra.mxu0 %v1566
    %1928 = vmatmul.f32.gmra.mxu0 %v386
    %v1929 = vpop.f32.mrf.mxu0
    %v1930 = vadd.f32 0.0, %v1929
    %1931 = vdwg.mxu0
    %v1932 = vadd.f32 %v1619, %v1930
    %v1933 = vxor.u32 %v1932, 2147483648
    %v1934 = vmul.f32 %v1933, 1.442695
    %v1935 = vpow.pop %v1934
    %v1936 = vadd.f32 %v1935, 1.0
    %v1937 = vrcp.pop %v1936
    %v1938 = vmul.f32 %v1936, %v1937
    %v1939 = vsub.f32 1.0, %v1938
    %v1940 = vmul.f32 %v1937, %v1939
    %v1941 = vadd.f32 %v1937, %v1940
    %vm1942 = vweird.f32 %v1936
    %vm1943 = vweird.f32 %v1937
    %vm1944 = vmor %vm1942, %vm1943
    %v1945 = vsel %vm1944, %v1937, %v1941
    %v1946 = vand.u32 2147483647, %v1936
    %vm1947 = vcmp.eq.f32.partialorder %v1946, 8.507059e+37
    %v1948 = vand.u32 %v1936, 2147483648
    %v1949 = vor.u32 1.1754944e-38, %v1948
    %v1950 = vsel %vm1947, %v1949, %v1945
    %v1951 = vmul.f32 1.0, %v1950
    %v1952 = vtanh.pop %v1932
    %v1953 = vmul.f32 %v1951, 0.0
    %1955 = vrot.lane.b32.xlu0 %v1952, 64
    %v1956 = vpop.permute.xlu0 %1955
    %v1958 = vmul.f32 %v1951, %v1956
    %1960 = vrot.lane.b32.xlu0 %v1958, 32
    %v1961 = vpop.permute.xlu0 %1960
    %v1963 = vadd.f32 %v1953, %v1961
    %v1964 = vtanh.pop %v1963
    %1966 = vrot.lane.b32.xlu0 %v1964, 64
    %v1967 = vpop.permute.xlu0 %1966
    %v1969 = vmul.f32 %v1951, %v1967
    %1971 = vrot.lane.b32.xlu0 %v1969, 32
    %v1972 = vpop.permute.xlu0 %1971
    %v1973 = vsel %vm200, %v1972, 0
    %1975 = vmatpush.msra.mxu0 0.0
    %1976 = vmatpush.msra.mxu0 0.0
    %1977 = vmatpush.msra.mxu0 0.0
    %1978 = vmatpush.msra.mxu0 0.0
    %1979 = vmatpush.msra.mxu0 0.0
    %1980 = vmatpush.msra.mxu0 0.0
    %1981 = vmatpush.msra.mxu0 0.0
    %1982 = vmatpush.msra.mxu0 0.0
    %1983 = vmatpush.msra.mxu0 0.0
    %1984 = vmatpush.msra.mxu0 0.0
    %1985 = vmatpush.msra.mxu0 0.0
    %1986 = vmatpush.msra.mxu0 0.0
    %1987 = vmatpush.msra.mxu0 %v1569
    %1988 = vmatpush.msra.mxu0 %v1568
    %1989 = vmatpush.msra.mxu0 %v1567
    %1990 = vmatpush.msra.mxu0 %v1566
    %1991 = vmatmul.f32.gmra.mxu0 %v1973
    %v1992 = vpop.f32.mrf.mxu0
    %v1993 = vadd.f32 0.0, %v1992
    %1994 = vdwg.mxu0
    %v1995 = vadd.f32 %v1660, %v1993
    %v1996 = vxor.u32 %v1995, 2147483648
    %v1997 = vmul.f32 %v1996, 1.442695
    %v1998 = vpow.pop %v1997
    %v1999 = vadd.f32 %v1998, 1.0
    %v2000 = vrcp.pop %v1999
    %v2001 = vmul.f32 %v1999, %v2000
    %v2002 = vsub.f32 1.0, %v2001
    %v2003 = vmul.f32 %v2000, %v2002
    %v2004 = vadd.f32 %v2000, %v2003
    %vm2005 = vweird.f32 %v1999
    %vm2006 = vweird.f32 %v2000
    %vm2007 = vmor %vm2005, %vm2006
    %v2008 = vsel %vm2007, %v2000, %v2004
    %v2009 = vand.u32 2147483647, %v1999
    %vm2010 = vcmp.eq.f32.partialorder %v2009, 8.507059e+37
    %v2011 = vand.u32 %v1999, 2147483648
    %v2012 = vor.u32 1.1754944e-38, %v2011
    %v2013 = vsel %vm2010, %v2012, %v2008
    %v2014 = vmul.f32 1.0, %v2013
    %v2015 = vtanh.pop %v1995
    %v2016 = vmul.f32 %v2014, %v1963
    %2018 = vrot.lane.b32.xlu0 %v2015, 64
    %v2019 = vpop.permute.xlu0 %2018
    %v2021 = vmul.f32 %v2014, %v2019
    %2023 = vrot.lane.b32.xlu0 %v2021, 32
    %v2024 = vpop.permute.xlu0 %2023
    %v2026 = vadd.f32 %v2016, %v2024
    %v2027 = vtanh.pop %v2026
    %2029 = vrot.lane.b32.xlu0 %v2027, 64
    %v2030 = vpop.permute.xlu0 %2029
    %v2032 = vmul.f32 %v2014, %v2030
    %2034 = vrot.lane.b32.xlu0 %v2032, 32
    %v2035 = vpop.permute.xlu0 %2034
    %v2036 = vsel %vm200, %v2035, 0
    %2038 = vmatpush.msra.mxu0 0.0
    %2039 = vmatpush.msra.mxu0 0.0
    %2040 = vmatpush.msra.mxu0 0.0
    %2041 = vmatpush.msra.mxu0 0.0
    %2042 = vmatpush.msra.mxu0 0.0
    %2043 = vmatpush.msra.mxu0 0.0
    %2044 = vmatpush.msra.mxu0 0.0
    %2045 = vmatpush.msra.mxu0 0.0
    %2046 = vmatpush.msra.mxu0 0.0
    %2047 = vmatpush.msra.mxu0 0.0
    %2048 = vmatpush.msra.mxu0 0.0
    %2049 = vmatpush.msra.mxu0 0.0
    %2050 = vmatpush.msra.mxu0 %v1569
    %2051 = vmatpush.msra.mxu0 %v1568
    %2052 = vmatpush.msra.mxu0 %v1567
    %2053 = vmatpush.msra.mxu0 %v1566
    %2054 = vmatmul.f32.gmra.mxu0 %v2036
    %v2055 = vpop.f32.mrf.mxu0
    %v2056 = vadd.f32 0.0, %v2055
    %2057 = vdwg.mxu0
    %v2058 = vadd.f32 %v1701, %v2056
    %v2059 = vxor.u32 %v2058, 2147483648
    %v2060 = vmul.f32 %v2059, 1.442695
    %v2061 = vpow.pop %v2060
    %v2062 = vadd.f32 %v2061, 1.0
    %v2063 = vrcp.pop %v2062
    %v2064 = vmul.f32 %v2062, %v2063
    %v2065 = vsub.f32 1.0, %v2064
    %v2066 = vmul.f32 %v2063, %v2065
    %v2067 = vadd.f32 %v2063, %v2066
    %vm2068 = vweird.f32 %v2062
    %vm2069 = vweird.f32 %v2063
    %vm2070 = vmor %vm2068, %vm2069
    %v2071 = vsel %vm2070, %v2063, %v2067
    %v2072 = vand.u32 2147483647, %v2062
    %vm2073 = vcmp.eq.f32.partialorder %v2072, 8.507059e+37
    %v2074 = vand.u32 %v2062, 2147483648
    %v2075 = vor.u32 1.1754944e-38, %v2074
    %v2076 = vsel %vm2073, %v2075, %v2071
    %v2077 = vmul.f32 1.0, %v2076
    %v2078 = vtanh.pop %v2058
    %v2079 = vmul.f32 %v2077, %v2026
    %2081 = vrot.lane.b32.xlu0 %v2078, 64
    %v2082 = vpop.permute.xlu0 %2081
    %v2084 = vmul.f32 %v2077, %v2082
    %2086 = vrot.lane.b32.xlu0 %v2084, 32
    %v2087 = vpop.permute.xlu0 %2086
    %v2089 = vadd.f32 %v2079, %v2087
    %v2090 = vtanh.pop %v2089
    %2092 = vrot.lane.b32.xlu0 %v2090, 64
    %v2093 = vpop.permute.xlu0 %2092
    %v2095 = vmul.f32 %v2077, %v2093
    %2097 = vrot.lane.b32.xlu0 %v2095, 32
    %v2098 = vpop.permute.xlu0 %2097
    %v2099 = vsel %vm200, %v2098, 0
    %2101 = vmatpush.msra.mxu0 0.0
    %2102 = vmatpush.msra.mxu0 0.0
    %2103 = vmatpush.msra.mxu0 0.0
    %2104 = vmatpush.msra.mxu0 0.0
    %2105 = vmatpush.msra.mxu0 0.0
    %2106 = vmatpush.msra.mxu0 0.0
    %2107 = vmatpush.msra.mxu0 0.0
    %2108 = vmatpush.msra.mxu0 0.0
    %2109 = vmatpush.msra.mxu0 0.0
    %2110 = vmatpush.msra.mxu0 0.0
    %2111 = vmatpush.msra.mxu0 0.0
    %2112 = vmatpush.msra.mxu0 0.0
    %2113 = vmatpush.msra.mxu0 %v1569
    %2114 = vmatpush.msra.mxu0 %v1568
    %2115 = vmatpush.msra.mxu0 %v1567
    %2116 = vmatpush.msra.mxu0 %v1566
    %2117 = vmatmul.f32.gmra.mxu0 %v2099
    %v2118 = vpop.f32.mrf.mxu0
    %v2119 = vadd.f32 0.0, %v2118
    %2120 = vdwg.mxu0
    %v2121 = vadd.f32 %v1742, %v2119
    %v2122 = vxor.u32 %v2121, 2147483648
    %v2123 = vmul.f32 %v2122, 1.442695
    %v2124 = vpow.pop %v2123
    %v2125 = vadd.f32 %v2124, 1.0
    %v2126 = vrcp.pop %v2125
    %v2127 = vmul.f32 %v2125, %v2126
    %v2128 = vsub.f32 1.0, %v2127
    %v2129 = vmul.f32 %v2126, %v2128
    %v2130 = vadd.f32 %v2126, %v2129
    %vm2131 = vweird.f32 %v2125
    %vm2132 = vweird.f32 %v2126
    %vm2133 = vmor %vm2131, %vm2132
    %v2134 = vsel %vm2133, %v2126, %v2130
    %v2135 = vand.u32 2147483647, %v2125
    %vm2136 = vcmp.eq.f32.partialorder %v2135, 8.507059e+37
    %v2137 = vand.u32 %v2125, 2147483648
    %v2138 = vor.u32 1.1754944e-38, %v2137
    %v2139 = vsel %vm2136, %v2138, %v2134
    %v2140 = vmul.f32 1.0, %v2139
    %v2141 = vtanh.pop %v2121
    %v2142 = vmul.f32 %v2140, %v2089
    %2144 = vrot.lane.b32.xlu0 %v2141, 64
    %v2145 = vpop.permute.xlu0 %2144
    %v2147 = vmul.f32 %v2140, %v2145
    %2149 = vrot.lane.b32.xlu0 %v2147, 32
    %v2150 = vpop.permute.xlu0 %2149
    %v2152 = vadd.f32 %v2142, %v2150
    %v2153 = vtanh.pop %v2152
    %2155 = vrot.lane.b32.xlu0 %v2153, 64
    %v2156 = vpop.permute.xlu0 %2155
    %v2158 = vmul.f32 %v2140, %v2156
    %2160 = vrot.lane.b32.xlu0 %v2158, 32
    %v2161 = vpop.permute.xlu0 %2160
    %v2162 = vsel %vm200, %v2161, 0
    %2164 = vmatpush.msra.mxu0 0.0
    %2165 = vmatpush.msra.mxu0 0.0
    %2166 = vmatpush.msra.mxu0 0.0
    %2167 = vmatpush.msra.mxu0 0.0
    %2168 = vmatpush.msra.mxu0 0.0
    %2169 = vmatpush.msra.mxu0 0.0
    %2170 = vmatpush.msra.mxu0 0.0
    %2171 = vmatpush.msra.mxu0 0.0
    %2172 = vmatpush.msra.mxu0 0.0
    %2173 = vmatpush.msra.mxu0 0.0
    %2174 = vmatpush.msra.mxu0 0.0
    %2175 = vmatpush.msra.mxu0 0.0
    %2176 = vmatpush.msra.mxu0 %v1569
    %2177 = vmatpush.msra.mxu0 %v1568
    %2178 = vmatpush.msra.mxu0 %v1567
    %2179 = vmatpush.msra.mxu0 %v1566
    %2180 = vmatmul.f32.gmra.mxu0 %v2162
    %v2181 = vpop.f32.mrf.mxu0
    %v2182 = vadd.f32 0.0, %v2181
    %2183 = vdwg.mxu0
    %v2184 = vadd.f32 %v1783, %v2182
    %v2185 = vxor.u32 %v2184, 2147483648
    %v2186 = vmul.f32 %v2185, 1.442695
    %v2187 = vpow.pop %v2186
    %v2188 = vadd.f32 %v2187, 1.0
    %v2189 = vrcp.pop %v2188
    %v2190 = vmul.f32 %v2188, %v2189
    %v2191 = vsub.f32 1.0, %v2190
    %v2192 = vmul.f32 %v2189, %v2191
    %v2193 = vadd.f32 %v2189, %v2192
    %vm2194 = vweird.f32 %v2188
    %vm2195 = vweird.f32 %v2189
    %vm2196 = vmor %vm2194, %vm2195
    %v2197 = vsel %vm2196, %v2189, %v2193
    %v2198 = vand.u32 2147483647, %v2188
    %vm2199 = vcmp.eq.f32.partialorder %v2198, 8.507059e+37
    %v2200 = vand.u32 %v2188, 2147483648
    %v2201 = vor.u32 1.1754944e-38, %v2200
    %v2202 = vsel %vm2199, %v2201, %v2197
    %v2203 = vmul.f32 1.0, %v2202
    %v2204 = vtanh.pop %v2184
    %v2205 = vmul.f32 %v2203, %v2152
    %2207 = vrot.lane.b32.xlu0 %v2204, 64
    %v2208 = vpop.permute.xlu0 %2207
    %v2210 = vmul.f32 %v2203, %v2208
    %2212 = vrot.lane.b32.xlu0 %v2210, 32
    %v2213 = vpop.permute.xlu0 %2212
    %v2215 = vadd.f32 %v2205, %v2213
    %v2216 = vtanh.pop %v2215
    %2218 = vrot.lane.b32.xlu0 %v2216, 64
    %v2219 = vpop.permute.xlu0 %2218
    %v2221 = vmul.f32 %v2203, %v2219
    %2223 = vrot.lane.b32.xlu0 %v2221, 32
    %v2224 = vpop.permute.xlu0 %2223
    %v2225 = vsel %vm200, %v2224, 0
    %2227 = vmatpush.msra.mxu0 0.0
    %2228 = vmatpush.msra.mxu0 0.0
    %2229 = vmatpush.msra.mxu0 0.0
    %2230 = vmatpush.msra.mxu0 0.0
    %2231 = vmatpush.msra.mxu0 0.0
    %2232 = vmatpush.msra.mxu0 0.0
    %2233 = vmatpush.msra.mxu0 0.0
    %2234 = vmatpush.msra.mxu0 0.0
    %2235 = vmatpush.msra.mxu0 0.0
    %2236 = vmatpush.msra.mxu0 0.0
    %2237 = vmatpush.msra.mxu0 0.0
    %2238 = vmatpush.msra.mxu0 0.0
    %2239 = vmatpush.msra.mxu0 %v1569
    %2240 = vmatpush.msra.mxu0 %v1568
    %2241 = vmatpush.msra.mxu0 %v1567
    %2242 = vmatpush.msra.mxu0 %v1566
    %2243 = vmatmul.f32.gmra.mxu0 %v2225
    %v2244 = vpop.f32.mrf.mxu0
    %v2245 = vadd.f32 0.0, %v2244
    %2246 = vdwg.mxu0
    %v2247 = vadd.f32 %v1824, %v2245
    %v2248 = vxor.u32 %v2247, 2147483648
    %v2249 = vmul.f32 %v2248, 1.442695
    %v2250 = vpow.pop %v2249
    %v2251 = vadd.f32 %v2250, 1.0
    %v2252 = vrcp.pop %v2251
    %v2253 = vmul.f32 %v2251, %v2252
    %v2254 = vsub.f32 1.0, %v2253
    %v2255 = vmul.f32 %v2252, %v2254
    %v2256 = vadd.f32 %v2252, %v2255
    %vm2257 = vweird.f32 %v2251
    %vm2258 = vweird.f32 %v2252
    %vm2259 = vmor %vm2257, %vm2258
    %v2260 = vsel %vm2259, %v2252, %v2256
    %v2261 = vand.u32 2147483647, %v2251
    %vm2262 = vcmp.eq.f32.partialorder %v2261, 8.507059e+37
    %v2263 = vand.u32 %v2251, 2147483648
    %v2264 = vor.u32 1.1754944e-38, %v2263
    %v2265 = vsel %vm2262, %v2264, %v2260
    %v2266 = vmul.f32 1.0, %v2265
    %v2267 = vtanh.pop %v2247
    %v2268 = vmul.f32 %v2266, %v2215
    %2270 = vrot.lane.b32.xlu0 %v2267, 64
    %v2271 = vpop.permute.xlu0 %2270
    %v2273 = vmul.f32 %v2266, %v2271
    %2275 = vrot.lane.b32.xlu0 %v2273, 32
    %v2276 = vpop.permute.xlu0 %2275
    %v2278 = vadd.f32 %v2268, %v2276
    %v2279 = vtanh.pop %v2278
    %2281 = vrot.lane.b32.xlu0 %v2279, 64
    %v2282 = vpop.permute.xlu0 %2281
    %v2284 = vmul.f32 %v2266, %v2282
    %2286 = vrot.lane.b32.xlu0 %v2284, 32
    %v2287 = vpop.permute.xlu0 %2286
    %v2288 = vsel %vm200, %v2287, 0
    %2290 = vmatpush.msra.mxu0 0.0
    %2291 = vmatpush.msra.mxu0 0.0
    %2292 = vmatpush.msra.mxu0 0.0
    %2293 = vmatpush.msra.mxu0 0.0
    %2294 = vmatpush.msra.mxu0 0.0
    %2295 = vmatpush.msra.mxu0 0.0
    %2296 = vmatpush.msra.mxu0 0.0
    %2297 = vmatpush.msra.mxu0 0.0
    %2298 = vmatpush.msra.mxu0 0.0
    %2299 = vmatpush.msra.mxu0 0.0
    %2300 = vmatpush.msra.mxu0 0.0
    %2301 = vmatpush.msra.mxu0 0.0
    %2302 = vmatpush.msra.mxu0 %v1569
    %2303 = vmatpush.msra.mxu0 %v1568
    %2304 = vmatpush.msra.mxu0 %v1567
    %2305 = vmatpush.msra.mxu0 %v1566
    %2306 = vmatmul.f32.gmra.mxu0 %v2288
    %v2307 = vpop.f32.mrf.mxu0
    %v2308 = vadd.f32 0.0, %v2307
    %2309 = vdwg.mxu0
    %v2310 = vadd.f32 %v1865, %v2308
    %v2311 = vxor.u32 %v2310, 2147483648
    %v2312 = vmul.f32 %v2311, 1.442695
    %v2313 = vpow.pop %v2312
    %v2314 = vadd.f32 %v2313, 1.0
    %v2315 = vrcp.pop %v2314
    %v2316 = vmul.f32 %v2314, %v2315
    %v2317 = vsub.f32 1.0, %v2316
    %v2318 = vmul.f32 %v2315, %v2317
    %v2319 = vadd.f32 %v2315, %v2318
    %vm2320 = vweird.f32 %v2314
    %vm2321 = vweird.f32 %v2315
    %vm2322 = vmor %vm2320, %vm2321
    %v2323 = vsel %vm2322, %v2315, %v2319
    %v2324 = vand.u32 2147483647, %v2314
    %vm2325 = vcmp.eq.f32.partialorder %v2324, 8.507059e+37
    %v2326 = vand.u32 %v2314, 2147483648
    %v2327 = vor.u32 1.1754944e-38, %v2326
    %v2328 = vsel %vm2325, %v2327, %v2323
    %v2329 = vmul.f32 1.0, %v2328
    %v2330 = vtanh.pop %v2310
    %v2331 = vmul.f32 %v2329, %v2278
    %2333 = vrot.lane.b32.xlu0 %v2330, 64
    %v2334 = vpop.permute.xlu0 %2333
    %v2336 = vmul.f32 %v2329, %v2334
    %2338 = vrot.lane.b32.xlu0 %v2336, 32
    %v2339 = vpop.permute.xlu0 %2338
    %v2341 = vadd.f32 %v2331, %v2339
    %v2342 = vtanh.pop %v2341
    %2344 = vrot.lane.b32.xlu0 %v2342, 64
    %v2345 = vpop.permute.xlu0 %2344
    %v2347 = vmul.f32 %v2329, %v2345
    %2349 = vrot.lane.b32.xlu0 %v2347, 32
    %v2350 = vpop.permute.xlu0 %2349
    %v2351 = vsel %vm200, %v2350, 0
    %2353 = vmatpush.msra.mxu0 0.0
    %2354 = vmatpush.msra.mxu0 0.0
    %2355 = vmatpush.msra.mxu0 0.0
    %2356 = vmatpush.msra.mxu0 0.0
    %2357 = vmatpush.msra.mxu0 0.0
    %2358 = vmatpush.msra.mxu0 0.0
    %2359 = vmatpush.msra.mxu0 0.0
    %2360 = vmatpush.msra.mxu0 0.0
    %2361 = vmatpush.msra.mxu0 0.0
    %2362 = vmatpush.msra.mxu0 0.0
    %2363 = vmatpush.msra.mxu0 0.0
    %2364 = vmatpush.msra.mxu0 0.0
    %2365 = vmatpush.msra.mxu0 %v1569
    %2366 = vmatpush.msra.mxu0 %v1568
    %2367 = vmatpush.msra.mxu0 %v1567
    %2368 = vmatpush.msra.mxu0 %v1566
    %2369 = vmatmul.f32.gmra.mxu0 %v2351
    %v2370 = vpop.f32.mrf.mxu0
    %v2371 = vadd.f32 0.0, %v2370
    %2372 = vdwg.mxu0
    %v2373 = vadd.f32 %v1911, %v2371
    %v2374 = vxor.u32 %v2373, 2147483648
    %v2375 = vmul.f32 %v2374, 1.442695
    %v2376 = vpow.pop %v2375
    %v2377 = vadd.f32 %v2376, 1.0
    %v2378 = vrcp.pop %v2377
    %v2379 = vmul.f32 %v2377, %v2378
    %v2380 = vsub.f32 1.0, %v2379
    %v2381 = vmul.f32 %v2378, %v2380
    %v2382 = vadd.f32 %v2378, %v2381
    %vm2383 = vweird.f32 %v2377
    %vm2384 = vweird.f32 %v2378
    %vm2385 = vmor %vm2383, %vm2384
    %v2386 = vsel %vm2385, %v2378, %v2382
    %v2387 = vand.u32 2147483647, %v2377
    %vm2388 = vcmp.eq.f32.partialorder %v2387, 8.507059e+37
    %v2389 = vand.u32 %v2377, 2147483648
    %v2390 = vor.u32 1.1754944e-38, %v2389
    %v2391 = vsel %vm2388, %v2390, %v2386
    %v2392 = vmul.f32 1.0, %v2391
    %v2393 = vtanh.pop %v2373
    %v2394 = vmul.f32 %v2392, %v2341
    %2396 = vrot.lane.b32.xlu0 %v2393, 64
    %v2397 = vpop.permute.xlu0 %2396
    %v2399 = vmul.f32 %v2392, %v2397
    %2401 = vrot.lane.b32.xlu0 %v2399, 32
    %v2402 = vpop.permute.xlu0 %2401
    %v2404 = vadd.f32 %v2394, %v2402
    %v2405 = vtanh.pop %v2404
    %2407 = vrot.lane.b32.xlu0 %v2405, 64
    %v2408 = vpop.permute.xlu0 %2407
    %v2410 = vmul.f32 %v2392, %v2408
    %v2411 = vld [vmem:[#allocation13] sm:$0xff]
    %v2412 = vld [vmem:[#allocation13 + $0x8] sm:$0xff]
    %v2413 = vld [vmem:[#allocation13 + $0x10] sm:$0xff]
    %v2414 = vld [vmem:[#allocation13 + $0x18] sm:$0xff]
    %v2415 = vld [vmem:[#allocation13 + $0x20] sm:$0xff]
    %v2416 = vld [vmem:[#allocation13 + $0x28] sm:$0xff]
    %v2417 = vld [vmem:[#allocation13 + $0x30] sm:$0xff]
    %v2418 = vld [vmem:[#allocation13 + $0x38] sm:$0xff]
    %v2419 = vld [vmem:[#allocation14] sm:$0xff]
    %v2420 = vld [vmem:[#allocation14 + $0x8] sm:$0xff]
    %v2421 = vld [vmem:[#allocation14 + $0x10] sm:$0xff]
    %v2422 = vld [vmem:[#allocation14 + $0x18] sm:$0xff]
    %v2423 = vld [vmem:[%s13] sm:$0x1]
    %2424 = vmatpush.msra.mxu0 0.0
    %2425 = vmatpush.msra.mxu0 0.0
    %2426 = vmatpush.msra.mxu0 0.0
    %2427 = vmatpush.msra.mxu0 0.0
    %2428 = vmatpush.msra.mxu0 0.0
    %2429 = vmatpush.msra.mxu0 0.0
    %2430 = vmatpush.msra.mxu0 0.0
    %2431 = vmatpush.msra.mxu0 0.0
    %2432 = vmatpush.msra.mxu0 0.0
    %2433 = vmatpush.msra.mxu0 0.0
    %2434 = vmatpush.msra.mxu0 0.0
    %2435 = vmatpush.msra.mxu0 0.0
    %2436 = vmatpush.msra.mxu0 %v2418
    %2437 = vmatpush.msra.mxu0 %v2417
    %2438 = vmatpush.msra.mxu0 %v2416
    %2439 = vmatpush.msra.mxu0 %v2415
    %2440 = vmatmul.f32.gmra.mxu0 %v1574
    %v2441 = vpop.f32.mrf.mxu0
    %v2442 = vadd.f32 0.0, %v2441
    %2443 = vdwg.mxu0
    %2444 = vmatpush.msra.mxu0 0.0
    %2445 = vmatpush.msra.mxu0 0.0
    %2446 = vmatpush.msra.mxu0 0.0
    %2447 = vmatpush.msra.mxu0 0.0
    %2448 = vmatpush.msra.mxu0 0.0
    %2449 = vmatpush.msra.mxu0 0.0
    %2450 = vmatpush.msra.mxu0 0.0
    %2451 = vmatpush.msra.mxu0 0.0
    %2452 = vmatpush.msra.mxu0 0.0
    %2453 = vmatpush.msra.mxu0 0.0
    %2454 = vmatpush.msra.mxu0 0.0
    %2455 = vmatpush.msra.mxu0 0.0
    %2456 = vmatpush.msra.mxu0 %v2414
    %2457 = vmatpush.msra.mxu0 %v2413
    %2458 = vmatpush.msra.mxu0 %v2412
    %2459 = vmatpush.msra.mxu0 %v2411
    %2460 = vmatmul.f32.gmra.mxu0 %v449
    %v2461 = vpop.f32.mrf.mxu0
    %v2462 = vadd.f32 %v2442, %v2461
    %2463 = vdwg.mxu0
    %v2465 = vperm.slane %v2423, 0
    %v2467 = vadd.f32 %v2462, %v2465
    %2468 = vmatpush.msra.mxu0 0.0
    %2469 = vmatpush.msra.mxu0 0.0
    %2470 = vmatpush.msra.mxu0 0.0
    %2471 = vmatpush.msra.mxu0 0.0
    %2472 = vmatpush.msra.mxu0 0.0
    %2473 = vmatpush.msra.mxu0 0.0
    %2474 = vmatpush.msra.mxu0 0.0
    %2475 = vmatpush.msra.mxu0 0.0
    %2476 = vmatpush.msra.mxu0 0.0
    %2477 = vmatpush.msra.mxu0 0.0
    %2478 = vmatpush.msra.mxu0 0.0
    %2479 = vmatpush.msra.mxu0 0.0
    %2480 = vmatpush.msra.mxu0 %v2418
    %2481 = vmatpush.msra.mxu0 %v2417
    %2482 = vmatpush.msra.mxu0 %v2416
    %2483 = vmatpush.msra.mxu0 %v2415
    %2484 = vmatmul.f32.gmra.mxu0 %v1498
    %v2485 = vpop.f32.mrf.mxu0
    %v2486 = vadd.f32 0.0, %v2485
    %2487 = vdwg.mxu0
    %2488 = vmatpush.msra.mxu0 0.0
    %2489 = vmatpush.msra.mxu0 0.0
    %2490 = vmatpush.msra.mxu0 0.0
    %2491 = vmatpush.msra.mxu0 0.0
    %2492 = vmatpush.msra.mxu0 0.0
    %2493 = vmatpush.msra.mxu0 0.0
    %2494 = vmatpush.msra.mxu0 0.0
    %2495 = vmatpush.msra.mxu0 0.0
    %2496 = vmatpush.msra.mxu0 0.0
    %2497 = vmatpush.msra.mxu0 0.0
    %2498 = vmatpush.msra.mxu0 0.0
    %2499 = vmatpush.msra.mxu0 0.0
    %2500 = vmatpush.msra.mxu0 %v2414
    %2501 = vmatpush.msra.mxu0 %v2413
    %2502 = vmatpush.msra.mxu0 %v2412
    %2503 = vmatpush.msra.mxu0 %v2411
    %2504 = vmatmul.f32.gmra.mxu0 %v512
    %v2505 = vpop.f32.mrf.mxu0
    %v2506 = vadd.f32 %v2486, %v2505
    %2507 = vdwg.mxu0
    %v2508 = vadd.f32 %v2506, %v2465
    %2509 = vmatpush.msra.mxu0 0.0
    %2510 = vmatpush.msra.mxu0 0.0
    %2511 = vmatpush.msra.mxu0 0.0
    %2512 = vmatpush.msra.mxu0 0.0
    %2513 = vmatpush.msra.mxu0 0.0
    %2514 = vmatpush.msra.mxu0 0.0
    %2515 = vmatpush.msra.mxu0 0.0
    %2516 = vmatpush.msra.mxu0 0.0
    %2517 = vmatpush.msra.mxu0 0.0
    %2518 = vmatpush.msra.mxu0 0.0
    %2519 = vmatpush.msra.mxu0 0.0
    %2520 = vmatpush.msra.mxu0 0.0
    %2521 = vmatpush.msra.mxu0 %v2418
    %2522 = vmatpush.msra.mxu0 %v2417
    %2523 = vmatpush.msra.mxu0 %v2416
    %2524 = vmatpush.msra.mxu0 %v2415
    %2525 = vmatmul.f32.gmra.mxu0 %v1435
    %v2526 = vpop.f32.mrf.mxu0
    %v2527 = vadd.f32 0.0, %v2526
    %2528 = vdwg.mxu0
    %2529 = vmatpush.msra.mxu0 0.0
    %2530 = vmatpush.msra.mxu0 0.0
    %2531 = vmatpush.msra.mxu0 0.0
    %2532 = vmatpush.msra.mxu0 0.0
    %2533 = vmatpush.msra.mxu0 0.0
    %2534 = vmatpush.msra.mxu0 0.0
    %2535 = vmatpush.msra.mxu0 0.0
    %2536 = vmatpush.msra.mxu0 0.0
    %2537 = vmatpush.msra.mxu0 0.0
    %2538 = vmatpush.msra.mxu0 0.0
    %2539 = vmatpush.msra.mxu0 0.0
    %2540 = vmatpush.msra.mxu0 0.0
    %2541 = vmatpush.msra.mxu0 %v2414
    %2542 = vmatpush.msra.mxu0 %v2413
    %2543 = vmatpush.msra.mxu0 %v2412
    %2544 = vmatpush.msra.mxu0 %v2411
    %2545 = vmatmul.f32.gmra.mxu0 %v575
    %v2546 = vpop.f32.mrf.mxu0
    %v2547 = vadd.f32 %v2527, %v2546
    %2548 = vdwg.mxu0
    %v2549 = vadd.f32 %v2547, %v2465
    %2550 = vmatpush.msra.mxu0 0.0
    %2551 = vmatpush.msra.mxu0 0.0
    %2552 = vmatpush.msra.mxu0 0.0
    %2553 = vmatpush.msra.mxu0 0.0
    %2554 = vmatpush.msra.mxu0 0.0
    %2555 = vmatpush.msra.mxu0 0.0
    %2556 = vmatpush.msra.mxu0 0.0
    %2557 = vmatpush.msra.mxu0 0.0
    %2558 = vmatpush.msra.mxu0 0.0
    %2559 = vmatpush.msra.mxu0 0.0
    %2560 = vmatpush.msra.mxu0 0.0
    %2561 = vmatpush.msra.mxu0 0.0
    %2562 = vmatpush.msra.mxu0 %v2418
    %2563 = vmatpush.msra.mxu0 %v2417
    %2564 = vmatpush.msra.mxu0 %v2416
    %2565 = vmatpush.msra.mxu0 %v2415
    %2566 = vmatmul.f32.gmra.mxu0 %v1372
    %v2567 = vpop.f32.mrf.mxu0
    %v2568 = vadd.f32 0.0, %v2567
    %2569 = vdwg.mxu0
    %2570 = vmatpush.msra.mxu0 0.0
    %2571 = vmatpush.msra.mxu0 0.0
    %2572 = vmatpush.msra.mxu0 0.0
    %2573 = vmatpush.msra.mxu0 0.0
    %2574 = vmatpush.msra.mxu0 0.0
    %2575 = vmatpush.msra.mxu0 0.0
    %2576 = vmatpush.msra.mxu0 0.0
    %2577 = vmatpush.msra.mxu0 0.0
    %2578 = vmatpush.msra.mxu0 0.0
    %2579 = vmatpush.msra.mxu0 0.0
    %2580 = vmatpush.msra.mxu0 0.0
    %2581 = vmatpush.msra.mxu0 0.0
    %2582 = vmatpush.msra.mxu0 %v2414
    %2583 = vmatpush.msra.mxu0 %v2413
    %2584 = vmatpush.msra.mxu0 %v2412
    %2585 = vmatpush.msra.mxu0 %v2411
    %2586 = vmatmul.f32.gmra.mxu0 %v638
    %v2587 = vpop.f32.mrf.mxu0
    %v2588 = vadd.f32 %v2568, %v2587
    %2589 = vdwg.mxu0
    %v2590 = vadd.f32 %v2588, %v2465
    %2591 = vmatpush.msra.mxu0 0.0
    %2592 = vmatpush.msra.mxu0 0.0
    %2593 = vmatpush.msra.mxu0 0.0
    %2594 = vmatpush.msra.mxu0 0.0
    %2595 = vmatpush.msra.mxu0 0.0
    %2596 = vmatpush.msra.mxu0 0.0
    %2597 = vmatpush.msra.mxu0 0.0
    %2598 = vmatpush.msra.mxu0 0.0
    %2599 = vmatpush.msra.mxu0 0.0
    %2600 = vmatpush.msra.mxu0 0.0
    %2601 = vmatpush.msra.mxu0 0.0
    %2602 = vmatpush.msra.mxu0 0.0
    %2603 = vmatpush.msra.mxu0 %v2418
    %2604 = vmatpush.msra.mxu0 %v2417
    %2605 = vmatpush.msra.mxu0 %v2416
    %2606 = vmatpush.msra.mxu0 %v2415
    %2607 = vmatmul.f32.gmra.mxu0 %v1309
    %v2608 = vpop.f32.mrf.mxu0
    %v2609 = vadd.f32 0.0, %v2608
    %2610 = vdwg.mxu0
    %2611 = vmatpush.msra.mxu0 0.0
    %2612 = vmatpush.msra.mxu0 0.0
    %2613 = vmatpush.msra.mxu0 0.0
    %2614 = vmatpush.msra.mxu0 0.0
    %2615 = vmatpush.msra.mxu0 0.0
    %2616 = vmatpush.msra.mxu0 0.0
    %2617 = vmatpush.msra.mxu0 0.0
    %2618 = vmatpush.msra.mxu0 0.0
    %2619 = vmatpush.msra.mxu0 0.0
    %2620 = vmatpush.msra.mxu0 0.0
    %2621 = vmatpush.msra.mxu0 0.0
    %2622 = vmatpush.msra.mxu0 0.0
    %2623 = vmatpush.msra.mxu0 %v2414
    %2624 = vmatpush.msra.mxu0 %v2413
    %2625 = vmatpush.msra.mxu0 %v2412
    %2626 = vmatpush.msra.mxu0 %v2411
    %2627 = vmatmul.f32.gmra.mxu0 %v701
    %v2628 = vpop.f32.mrf.mxu0
    %v2629 = vadd.f32 %v2609, %v2628
    %2630 = vdwg.mxu0
    %v2631 = vadd.f32 %v2629, %v2465
    %2632 = vmatpush.msra.mxu0 0.0
    %2633 = vmatpush.msra.mxu0 0.0
    %2634 = vmatpush.msra.mxu0 0.0
    %2635 = vmatpush.msra.mxu0 0.0
    %2636 = vmatpush.msra.mxu0 0.0
    %2637 = vmatpush.msra.mxu0 0.0
    %2638 = vmatpush.msra.mxu0 0.0
    %2639 = vmatpush.msra.mxu0 0.0
    %2640 = vmatpush.msra.mxu0 0.0
    %2641 = vmatpush.msra.mxu0 0.0
    %2642 = vmatpush.msra.mxu0 0.0
    %2643 = vmatpush.msra.mxu0 0.0
    %2644 = vmatpush.msra.mxu0 %v2418
    %2645 = vmatpush.msra.mxu0 %v2417
    %2646 = vmatpush.msra.mxu0 %v2416
    %2647 = vmatpush.msra.mxu0 %v2415
    %2648 = vmatmul.f32.gmra.mxu0 %v1246
    %v2649 = vpop.f32.mrf.mxu0
    %v2650 = vadd.f32 0.0, %v2649
    %2651 = vdwg.mxu0
    %2652 = vmatpush.msra.mxu0 0.0
    %2653 = vmatpush.msra.mxu0 0.0
    %2654 = vmatpush.msra.mxu0 0.0
    %2655 = vmatpush.msra.mxu0 0.0
    %2656 = vmatpush.msra.mxu0 0.0
    %2657 = vmatpush.msra.mxu0 0.0
    %2658 = vmatpush.msra.mxu0 0.0
    %2659 = vmatpush.msra.mxu0 0.0
    %2660 = vmatpush.msra.mxu0 0.0
    %2661 = vmatpush.msra.mxu0 0.0
    %2662 = vmatpush.msra.mxu0 0.0
    %2663 = vmatpush.msra.mxu0 0.0
    %2664 = vmatpush.msra.mxu0 %v2414
    %2665 = vmatpush.msra.mxu0 %v2413
    %2666 = vmatpush.msra.mxu0 %v2412
    %2667 = vmatpush.msra.mxu0 %v2411
    %2668 = vmatmul.f32.gmra.mxu0 %v764
    %v2669 = vpop.f32.mrf.mxu0
    %v2670 = vadd.f32 %v2650, %v2669
    %2671 = vdwg.mxu0
    %v2672 = vadd.f32 %v2670, %v2465
    %2673 = vmatpush.msra.mxu0 0.0
    %2674 = vmatpush.msra.mxu0 0.0
    %2675 = vmatpush.msra.mxu0 0.0
    %2676 = vmatpush.msra.mxu0 0.0
    %2677 = vmatpush.msra.mxu0 0.0
    %2678 = vmatpush.msra.mxu0 0.0
    %2679 = vmatpush.msra.mxu0 0.0
    %2680 = vmatpush.msra.mxu0 0.0
    %2681 = vmatpush.msra.mxu0 0.0
    %2682 = vmatpush.msra.mxu0 0.0
    %2683 = vmatpush.msra.mxu0 0.0
    %2684 = vmatpush.msra.mxu0 0.0
    %2685 = vmatpush.msra.mxu0 %v2418
    %2686 = vmatpush.msra.mxu0 %v2417
    %2687 = vmatpush.msra.mxu0 %v2416
    %2688 = vmatpush.msra.mxu0 %v2415
    %2689 = vmatmul.f32.gmra.mxu0 %v1183
    %v2690 = vpop.f32.mrf.mxu0
    %v2691 = vadd.f32 0.0, %v2690
    %2692 = vdwg.mxu0
    %2693 = vmatpush.msra.mxu0 0.0
    %2694 = vmatpush.msra.mxu0 0.0
    %2695 = vmatpush.msra.mxu0 0.0
    %2696 = vmatpush.msra.mxu0 0.0
    %2697 = vmatpush.msra.mxu0 0.0
    %2698 = vmatpush.msra.mxu0 0.0
    %2699 = vmatpush.msra.mxu0 0.0
    %2700 = vmatpush.msra.mxu0 0.0
    %2701 = vmatpush.msra.mxu0 0.0
    %2702 = vmatpush.msra.mxu0 0.0
    %2703 = vmatpush.msra.mxu0 0.0
    %2704 = vmatpush.msra.mxu0 0.0
    %2705 = vmatpush.msra.mxu0 %v2414
    %2706 = vmatpush.msra.mxu0 %v2413
    %2707 = vmatpush.msra.mxu0 %v2412
    %2708 = vmatpush.msra.mxu0 %v2411
    %2709 = vmatmul.f32.gmra.mxu0 %v827
    %v2710 = vpop.f32.mrf.mxu0
    %v2711 = vadd.f32 %v2691, %v2710
    %2712 = vdwg.mxu0
    %v2713 = vadd.f32 %v2711, %v2465
    %2714 = vmatpush.msra.mxu0 0.0
    %2715 = vmatpush.msra.mxu0 0.0
    %2716 = vmatpush.msra.mxu0 0.0
    %2717 = vmatpush.msra.mxu0 0.0
    %2718 = vmatpush.msra.mxu0 0.0
    %2719 = vmatpush.msra.mxu0 0.0
    %2720 = vmatpush.msra.mxu0 0.0
    %2721 = vmatpush.msra.mxu0 0.0
    %2722 = vmatpush.msra.mxu0 0.0
    %2723 = vmatpush.msra.mxu0 0.0
    %2724 = vmatpush.msra.mxu0 0.0
    %2725 = vmatpush.msra.mxu0 0.0
    %2726 = vmatpush.msra.mxu0 %v2418
    %2727 = vmatpush.msra.mxu0 %v2417
    %2728 = vmatpush.msra.mxu0 %v2416
    %2729 = vmatpush.msra.mxu0 %v2415
    %2730 = vmatmul.f32.gmra.mxu0 %v1120
    %v2731 = vpop.f32.mrf.mxu0
    %v2732 = vadd.f32 0.0, %v2731
    %2733 = vdwg.mxu0
    %2734 = vmatpush.msra.mxu0 0.0
    %2735 = vmatpush.msra.mxu0 0.0
    %2736 = vmatpush.msra.mxu0 0.0
    %2737 = vmatpush.msra.mxu0 0.0
    %2738 = vmatpush.msra.mxu0 0.0
    %2739 = vmatpush.msra.mxu0 0.0
    %2740 = vmatpush.msra.mxu0 0.0
    %2741 = vmatpush.msra.mxu0 0.0
    %2742 = vmatpush.msra.mxu0 0.0
    %2743 = vmatpush.msra.mxu0 0.0
    %2744 = vmatpush.msra.mxu0 0.0
    %2745 = vmatpush.msra.mxu0 0.0
    %2746 = vmatpush.msra.mxu0 %v2414
    %2747 = vmatpush.msra.mxu0 %v2413
    %2748 = vmatpush.msra.mxu0 %v2412
    %2749 = vmatpush.msra.mxu0 %v2411
    %2750 = vmatmul.f32.gmra.mxu0 %v1889
    %v2751 = vpop.f32.mrf.mxu0
    %v2752 = vadd.f32 %v2732, %v2751
    %2753 = vdwg.mxu0
    %v2754 = vadd.f32 %v2752, %v2465
    %2755 = vmatpush.msra.mxu0 0.0
    %2756 = vmatpush.msra.mxu0 0.0
    %2757 = vmatpush.msra.mxu0 0.0
    %2758 = vmatpush.msra.mxu0 0.0
    %2759 = vmatpush.msra.mxu0 0.0
    %2760 = vmatpush.msra.mxu0 0.0
    %2761 = vmatpush.msra.mxu0 0.0
    %2762 = vmatpush.msra.mxu0 0.0
    %2763 = vmatpush.msra.mxu0 0.0
    %2764 = vmatpush.msra.mxu0 0.0
    %2765 = vmatpush.msra.mxu0 0.0
    %2766 = vmatpush.msra.mxu0 0.0
    %2767 = vmatpush.msra.mxu0 %v2422
    %2768 = vmatpush.msra.mxu0 %v2421
    %2769 = vmatpush.msra.mxu0 %v2420
    %2770 = vmatpush.msra.mxu0 %v2419
    %2771 = vmatmul.f32.gmra.mxu0 %v386
    %v2772 = vpop.f32.mrf.mxu0
    %v2773 = vadd.f32 0.0, %v2772
    %2774 = vdwg.mxu0
    %v2775 = vadd.f32 %v2754, %v2773
    %v2776 = vxor.u32 %v2775, 2147483648
    %v2777 = vmul.f32 %v2776, 1.442695
    %v2778 = vpow.pop %v2777
    %v2779 = vadd.f32 %v2778, 1.0
    %v2780 = vrcp.pop %v2779
    %v2781 = vmul.f32 %v2779, %v2780
    %v2782 = vsub.f32 1.0, %v2781
    %v2783 = vmul.f32 %v2780, %v2782
    %v2784 = vadd.f32 %v2780, %v2783
    %vm2785 = vweird.f32 %v2779
    %vm2786 = vweird.f32 %v2780
    %vm2787 = vmor %vm2785, %vm2786
    %v2788 = vsel %vm2787, %v2780, %v2784
    %v2789 = vand.u32 2147483647, %v2779
    %vm2790 = vcmp.eq.f32.partialorder %v2789, 8.507059e+37
    %v2791 = vand.u32 %v2779, 2147483648
    %v2792 = vor.u32 1.1754944e-38, %v2791
    %v2793 = vsel %vm2790, %v2792, %v2788
    %v2794 = vmul.f32 1.0, %v2793
    %v2795 = vtanh.pop %v2775
    %v2796 = vmul.f32 %v2794, 0.0
    %2798 = vrot.lane.b32.xlu0 %v2795, 64
    %v2799 = vpop.permute.xlu0 %2798
    %v2801 = vmul.f32 %v2794, %v2799
    %2803 = vrot.lane.b32.xlu0 %v2801, 32
    %v2804 = vpop.permute.xlu0 %2803
    %v2806 = vadd.f32 %v2796, %v2804
    %v2807 = vtanh.pop %v2806
    %2809 = vrot.lane.b32.xlu0 %v2807, 64
    %v2810 = vpop.permute.xlu0 %2809
    %v2812 = vmul.f32 %v2794, %v2810
    %2814 = vrot.lane.b32.xlu0 %v2812, 32
    %v2815 = vpop.permute.xlu0 %2814
    %v2816 = vsel %vm200, %v2815, 0
    %2818 = vmatpush.msra.mxu0 0.0
    %2819 = vmatpush.msra.mxu0 0.0
    %2820 = vmatpush.msra.mxu0 0.0
    %2821 = vmatpush.msra.mxu0 0.0
    %2822 = vmatpush.msra.mxu0 0.0
    %2823 = vmatpush.msra.mxu0 0.0
    %2824 = vmatpush.msra.mxu0 0.0
    %2825 = vmatpush.msra.mxu0 0.0
    %2826 = vmatpush.msra.mxu0 0.0
    %2827 = vmatpush.msra.mxu0 0.0
    %2828 = vmatpush.msra.mxu0 0.0
    %2829 = vmatpush.msra.mxu0 0.0
    %2830 = vmatpush.msra.mxu0 %v2422
    %2831 = vmatpush.msra.mxu0 %v2421
    %2832 = vmatpush.msra.mxu0 %v2420
    %2833 = vmatpush.msra.mxu0 %v2419
    %2834 = vmatmul.f32.gmra.mxu0 %v2816
    %v2835 = vpop.f32.mrf.mxu0
    %v2836 = vadd.f32 0.0, %v2835
    %2837 = vdwg.mxu0
    %v2838 = vadd.f32 %v2713, %v2836
    %v2839 = vxor.u32 %v2838, 2147483648
    %v2840 = vmul.f32 %v2839, 1.442695
    %v2841 = vpow.pop %v2840
    %v2842 = vadd.f32 %v2841, 1.0
    %v2843 = vrcp.pop %v2842
    %v2844 = vmul.f32 %v2842, %v2843
    %v2845 = vsub.f32 1.0, %v2844
    %v2846 = vmul.f32 %v2843, %v2845
    %v2847 = vadd.f32 %v2843, %v2846
    %vm2848 = vweird.f32 %v2842
    %vm2849 = vweird.f32 %v2843
    %vm2850 = vmor %vm2848, %vm2849
    %v2851 = vsel %vm2850, %v2843, %v2847
    %v2852 = vand.u32 2147483647, %v2842
    %vm2853 = vcmp.eq.f32.partialorder %v2852, 8.507059e+37
    %v2854 = vand.u32 %v2842, 2147483648
    %v2855 = vor.u32 1.1754944e-38, %v2854
    %v2856 = vsel %vm2853, %v2855, %v2851
    %v2857 = vmul.f32 1.0, %v2856
    %v2858 = vtanh.pop %v2838
    %v2859 = vmul.f32 %v2857, %v2806
    %2861 = vrot.lane.b32.xlu0 %v2858, 64
    %v2862 = vpop.permute.xlu0 %2861
    %v2864 = vmul.f32 %v2857, %v2862
    %2866 = vrot.lane.b32.xlu0 %v2864, 32
    %v2867 = vpop.permute.xlu0 %2866
    %v2869 = vadd.f32 %v2859, %v2867
    %v2870 = vtanh.pop %v2869
    %2872 = vrot.lane.b32.xlu0 %v2870, 64
    %v2873 = vpop.permute.xlu0 %2872
    %v2875 = vmul.f32 %v2857, %v2873
    %2877 = vrot.lane.b32.xlu0 %v2875, 32
    %v2878 = vpop.permute.xlu0 %2877
    %v2879 = vsel %vm200, %v2878, 0
    %2881 = vmatpush.msra.mxu0 0.0
    %2882 = vmatpush.msra.mxu0 0.0
    %2883 = vmatpush.msra.mxu0 0.0
    %2884 = vmatpush.msra.mxu0 0.0
    %2885 = vmatpush.msra.mxu0 0.0
    %2886 = vmatpush.msra.mxu0 0.0
    %2887 = vmatpush.msra.mxu0 0.0
    %2888 = vmatpush.msra.mxu0 0.0
    %2889 = vmatpush.msra.mxu0 0.0
    %2890 = vmatpush.msra.mxu0 0.0
    %2891 = vmatpush.msra.mxu0 0.0
    %2892 = vmatpush.msra.mxu0 0.0
    %2893 = vmatpush.msra.mxu0 %v2422
    %2894 = vmatpush.msra.mxu0 %v2421
    %2895 = vmatpush.msra.mxu0 %v2420
    %2896 = vmatpush.msra.mxu0 %v2419
    %2897 = vmatmul.f32.gmra.mxu0 %v2879
    %v2898 = vpop.f32.mrf.mxu0
    %v2899 = vadd.f32 0.0, %v2898
    %2900 = vdwg.mxu0
    %v2901 = vadd.f32 %v2672, %v2899
    %v2902 = vxor.u32 %v2901, 2147483648
    %v2903 = vmul.f32 %v2902, 1.442695
    %v2904 = vpow.pop %v2903
    %v2905 = vadd.f32 %v2904, 1.0
    %v2906 = vrcp.pop %v2905
    %v2907 = vmul.f32 %v2905, %v2906
    %v2908 = vsub.f32 1.0, %v2907
    %v2909 = vmul.f32 %v2906, %v2908
    %v2910 = vadd.f32 %v2906, %v2909
    %vm2911 = vweird.f32 %v2905
    %vm2912 = vweird.f32 %v2906
    %vm2913 = vmor %vm2911, %vm2912
    %v2914 = vsel %vm2913, %v2906, %v2910
    %v2915 = vand.u32 2147483647, %v2905
    %vm2916 = vcmp.eq.f32.partialorder %v2915, 8.507059e+37
    %v2917 = vand.u32 %v2905, 2147483648
    %v2918 = vor.u32 1.1754944e-38, %v2917
    %v2919 = vsel %vm2916, %v2918, %v2914
    %v2920 = vmul.f32 1.0, %v2919
    %v2921 = vtanh.pop %v2901
    %v2922 = vmul.f32 %v2920, %v2869
    %2924 = vrot.lane.b32.xlu0 %v2921, 64
    %v2925 = vpop.permute.xlu0 %2924
    %v2927 = vmul.f32 %v2920, %v2925
    %2929 = vrot.lane.b32.xlu0 %v2927, 32
    %v2930 = vpop.permute.xlu0 %2929
    %v2932 = vadd.f32 %v2922, %v2930
    %v2933 = vtanh.pop %v2932
    %2935 = vrot.lane.b32.xlu0 %v2933, 64
    %v2936 = vpop.permute.xlu0 %2935
    %v2938 = vmul.f32 %v2920, %v2936
    %2940 = vrot.lane.b32.xlu0 %v2938, 32
    %v2941 = vpop.permute.xlu0 %2940
    %v2942 = vsel %vm200, %v2941, 0
    %2944 = vmatpush.msra.mxu0 0.0
    %2945 = vmatpush.msra.mxu0 0.0
    %2946 = vmatpush.msra.mxu0 0.0
    %2947 = vmatpush.msra.mxu0 0.0
    %2948 = vmatpush.msra.mxu0 0.0
    %2949 = vmatpush.msra.mxu0 0.0
    %2950 = vmatpush.msra.mxu0 0.0
    %2951 = vmatpush.msra.mxu0 0.0
    %2952 = vmatpush.msra.mxu0 0.0
    %2953 = vmatpush.msra.mxu0 0.0
    %2954 = vmatpush.msra.mxu0 0.0
    %2955 = vmatpush.msra.mxu0 0.0
    %2956 = vmatpush.msra.mxu0 %v2422
    %2957 = vmatpush.msra.mxu0 %v2421
    %2958 = vmatpush.msra.mxu0 %v2420
    %2959 = vmatpush.msra.mxu0 %v2419
    %2960 = vmatmul.f32.gmra.mxu0 %v2942
    %v2961 = vpop.f32.mrf.mxu0
    %v2962 = vadd.f32 0.0, %v2961
    %2963 = vdwg.mxu0
    %v2964 = vadd.f32 %v2631, %v2962
    %v2965 = vxor.u32 %v2964, 2147483648
    %v2966 = vmul.f32 %v2965, 1.442695
    %v2967 = vpow.pop %v2966
    %v2968 = vadd.f32 %v2967, 1.0
    %v2969 = vrcp.pop %v2968
    %v2970 = vmul.f32 %v2968, %v2969
    %v2971 = vsub.f32 1.0, %v2970
    %v2972 = vmul.f32 %v2969, %v2971
    %v2973 = vadd.f32 %v2969, %v2972
    %vm2974 = vweird.f32 %v2968
    %vm2975 = vweird.f32 %v2969
    %vm2976 = vmor %vm2974, %vm2975
    %v2977 = vsel %vm2976, %v2969, %v2973
    %v2978 = vand.u32 2147483647, %v2968
    %vm2979 = vcmp.eq.f32.partialorder %v2978, 8.507059e+37
    %v2980 = vand.u32 %v2968, 2147483648
    %v2981 = vor.u32 1.1754944e-38, %v2980
    %v2982 = vsel %vm2979, %v2981, %v2977
    %v2983 = vmul.f32 1.0, %v2982
    %v2984 = vtanh.pop %v2964
    %v2985 = vmul.f32 %v2983, %v2932
    %2987 = vrot.lane.b32.xlu0 %v2984, 64
    %v2988 = vpop.permute.xlu0 %2987
    %v2990 = vmul.f32 %v2983, %v2988
    %2992 = vrot.lane.b32.xlu0 %v2990, 32
    %v2993 = vpop.permute.xlu0 %2992
    %v2995 = vadd.f32 %v2985, %v2993
    %v2996 = vtanh.pop %v2995
    %2998 = vrot.lane.b32.xlu0 %v2996, 64
    %v2999 = vpop.permute.xlu0 %2998
    %v3001 = vmul.f32 %v2983, %v2999
    %3003 = vrot.lane.b32.xlu0 %v3001, 32
    %v3004 = vpop.permute.xlu0 %3003
    %v3005 = vsel %vm200, %v3004, 0
    %3007 = vmatpush.msra.mxu0 0.0
    %3008 = vmatpush.msra.mxu0 0.0
    %3009 = vmatpush.msra.mxu0 0.0
    %3010 = vmatpush.msra.mxu0 0.0
    %3011 = vmatpush.msra.mxu0 0.0
    %3012 = vmatpush.msra.mxu0 0.0
    %3013 = vmatpush.msra.mxu0 0.0
    %3014 = vmatpush.msra.mxu0 0.0
    %3015 = vmatpush.msra.mxu0 0.0
    %3016 = vmatpush.msra.mxu0 0.0
    %3017 = vmatpush.msra.mxu0 0.0
    %3018 = vmatpush.msra.mxu0 0.0
    %3019 = vmatpush.msra.mxu0 %v2422
    %3020 = vmatpush.msra.mxu0 %v2421
    %3021 = vmatpush.msra.mxu0 %v2420
    %3022 = vmatpush.msra.mxu0 %v2419
    %3023 = vmatmul.f32.gmra.mxu0 %v3005
    %v3024 = vpop.f32.mrf.mxu0
    %v3025 = vadd.f32 0.0, %v3024
    %3026 = vdwg.mxu0
    %v3027 = vadd.f32 %v2590, %v3025
    %v3028 = vxor.u32 %v3027, 2147483648
    %v3029 = vmul.f32 %v3028, 1.442695
    %v3030 = vpow.pop %v3029
    %v3031 = vadd.f32 %v3030, 1.0
    %v3032 = vrcp.pop %v3031
    %v3033 = vmul.f32 %v3031, %v3032
    %v3034 = vsub.f32 1.0, %v3033
    %v3035 = vmul.f32 %v3032, %v3034
    %v3036 = vadd.f32 %v3032, %v3035
    %vm3037 = vweird.f32 %v3031
    %vm3038 = vweird.f32 %v3032
    %vm3039 = vmor %vm3037, %vm3038
    %v3040 = vsel %vm3039, %v3032, %v3036
    %v3041 = vand.u32 2147483647, %v3031
    %vm3042 = vcmp.eq.f32.partialorder %v3041, 8.507059e+37
    %v3043 = vand.u32 %v3031, 2147483648
    %v3044 = vor.u32 1.1754944e-38, %v3043
    %v3045 = vsel %vm3042, %v3044, %v3040
    %v3046 = vmul.f32 1.0, %v3045
    %v3047 = vtanh.pop %v3027
    %v3048 = vmul.f32 %v3046, %v2995
    %3050 = vrot.lane.b32.xlu0 %v3047, 64
    %v3051 = vpop.permute.xlu0 %3050
    %v3053 = vmul.f32 %v3046, %v3051
    %3055 = vrot.lane.b32.xlu0 %v3053, 32
    %v3056 = vpop.permute.xlu0 %3055
    %v3058 = vadd.f32 %v3048, %v3056
    %v3059 = vtanh.pop %v3058
    %3061 = vrot.lane.b32.xlu0 %v3059, 64
    %v3062 = vpop.permute.xlu0 %3061
    %v3064 = vmul.f32 %v3046, %v3062
    %3066 = vrot.lane.b32.xlu0 %v3064, 32
    %v3067 = vpop.permute.xlu0 %3066
    %v3068 = vsel %vm200, %v3067, 0
    %3070 = vmatpush.msra.mxu0 0.0
    %3071 = vmatpush.msra.mxu0 0.0
    %3072 = vmatpush.msra.mxu0 0.0
    %3073 = vmatpush.msra.mxu0 0.0
    %3074 = vmatpush.msra.mxu0 0.0
    %3075 = vmatpush.msra.mxu0 0.0
    %3076 = vmatpush.msra.mxu0 0.0
    %3077 = vmatpush.msra.mxu0 0.0
    %3078 = vmatpush.msra.mxu0 0.0
    %3079 = vmatpush.msra.mxu0 0.0
    %3080 = vmatpush.msra.mxu0 0.0
    %3081 = vmatpush.msra.mxu0 0.0
    %3082 = vmatpush.msra.mxu0 %v2422
    %3083 = vmatpush.msra.mxu0 %v2421
    %3084 = vmatpush.msra.mxu0 %v2420
    %3085 = vmatpush.msra.mxu0 %v2419
    %3086 = vmatmul.f32.gmra.mxu0 %v3068
    %v3087 = vpop.f32.mrf.mxu0
    %v3088 = vadd.f32 0.0, %v3087
    %3089 = vdwg.mxu0
    %v3090 = vadd.f32 %v2549, %v3088
    %v3091 = vxor.u32 %v3090, 2147483648
    %v3092 = vmul.f32 %v3091, 1.442695
    %v3093 = vpow.pop %v3092
    %v3094 = vadd.f32 %v3093, 1.0
    %v3095 = vrcp.pop %v3094
    %v3096 = vmul.f32 %v3094, %v3095
    %v3097 = vsub.f32 1.0, %v3096
    %v3098 = vmul.f32 %v3095, %v3097
    %v3099 = vadd.f32 %v3095, %v3098
    %vm3100 = vweird.f32 %v3094
    %vm3101 = vweird.f32 %v3095
    %vm3102 = vmor %vm3100, %vm3101
    %v3103 = vsel %vm3102, %v3095, %v3099
    %v3104 = vand.u32 2147483647, %v3094
    %vm3105 = vcmp.eq.f32.partialorder %v3104, 8.507059e+37
    %v3106 = vand.u32 %v3094, 2147483648
    %v3107 = vor.u32 1.1754944e-38, %v3106
    %v3108 = vsel %vm3105, %v3107, %v3103
    %v3109 = vmul.f32 1.0, %v3108
    %v3110 = vtanh.pop %v3090
    %v3111 = vmul.f32 %v3109, %v3058
    %3113 = vrot.lane.b32.xlu0 %v3110, 64
    %v3114 = vpop.permute.xlu0 %3113
    %v3116 = vmul.f32 %v3109, %v3114
    %3118 = vrot.lane.b32.xlu0 %v3116, 32
    %v3119 = vpop.permute.xlu0 %3118
    %v3121 = vadd.f32 %v3111, %v3119
    %v3122 = vtanh.pop %v3121
    %3124 = vrot.lane.b32.xlu0 %v3122, 64
    %v3125 = vpop.permute.xlu0 %3124
    %v3127 = vmul.f32 %v3109, %v3125
    %3129 = vrot.lane.b32.xlu0 %v3127, 32
    %v3130 = vpop.permute.xlu0 %3129
    %v3131 = vsel %vm200, %v3130, 0
    %3133 = vmatpush.msra.mxu0 0.0
    %3134 = vmatpush.msra.mxu0 0.0
    %3135 = vmatpush.msra.mxu0 0.0
    %3136 = vmatpush.msra.mxu0 0.0
    %3137 = vmatpush.msra.mxu0 0.0
    %3138 = vmatpush.msra.mxu0 0.0
    %3139 = vmatpush.msra.mxu0 0.0
    %3140 = vmatpush.msra.mxu0 0.0
    %3141 = vmatpush.msra.mxu0 0.0
    %3142 = vmatpush.msra.mxu0 0.0
    %3143 = vmatpush.msra.mxu0 0.0
    %3144 = vmatpush.msra.mxu0 0.0
    %3145 = vmatpush.msra.mxu0 %v2422
    %3146 = vmatpush.msra.mxu0 %v2421
    %3147 = vmatpush.msra.mxu0 %v2420
    %3148 = vmatpush.msra.mxu0 %v2419
    %3149 = vmatmul.f32.gmra.mxu0 %v3131
    %v3150 = vpop.f32.mrf.mxu0
    %v3151 = vadd.f32 0.0, %v3150
    %3152 = vdwg.mxu0
    %v3153 = vadd.f32 %v2508, %v3151
    %v3154 = vxor.u32 %v3153, 2147483648
    %v3155 = vmul.f32 %v3154, 1.442695
    %v3156 = vpow.pop %v3155
    %v3157 = vadd.f32 %v3156, 1.0
    %v3158 = vrcp.pop %v3157
    %v3159 = vmul.f32 %v3157, %v3158
    %v3160 = vsub.f32 1.0, %v3159
    %v3161 = vmul.f32 %v3158, %v3160
    %v3162 = vadd.f32 %v3158, %v3161
    %vm3163 = vweird.f32 %v3157
    %vm3164 = vweird.f32 %v3158
    %vm3165 = vmor %vm3163, %vm3164
    %v3166 = vsel %vm3165, %v3158, %v3162
    %v3167 = vand.u32 2147483647, %v3157
    %vm3168 = vcmp.eq.f32.partialorder %v3167, 8.507059e+37
    %v3169 = vand.u32 %v3157, 2147483648
    %v3170 = vor.u32 1.1754944e-38, %v3169
    %v3171 = vsel %vm3168, %v3170, %v3166
    %v3172 = vmul.f32 1.0, %v3171
    %v3173 = vtanh.pop %v3153
    %v3174 = vmul.f32 %v3172, %v3121
    %3176 = vrot.lane.b32.xlu0 %v3173, 64
    %v3177 = vpop.permute.xlu0 %3176
    %v3179 = vmul.f32 %v3172, %v3177
    %3181 = vrot.lane.b32.xlu0 %v3179, 32
    %v3182 = vpop.permute.xlu0 %3181
    %v3184 = vadd.f32 %v3174, %v3182
    %v3185 = vtanh.pop %v3184
    %3187 = vrot.lane.b32.xlu0 %v3185, 64
    %v3188 = vpop.permute.xlu0 %3187
    %v3190 = vmul.f32 %v3172, %v3188
    %3192 = vrot.lane.b32.xlu0 %v3190, 32
    %v3193 = vpop.permute.xlu0 %3192
    %v3194 = vsel %vm200, %v3193, 0
    %3196 = vmatpush.msra.mxu0 0.0
    %3197 = vmatpush.msra.mxu0 0.0
    %3198 = vmatpush.msra.mxu0 0.0
    %3199 = vmatpush.msra.mxu0 0.0
    %3200 = vmatpush.msra.mxu0 0.0
    %3201 = vmatpush.msra.mxu0 0.0
    %3202 = vmatpush.msra.mxu0 0.0
    %3203 = vmatpush.msra.mxu0 0.0
    %3204 = vmatpush.msra.mxu0 0.0
    %3205 = vmatpush.msra.mxu0 0.0
    %3206 = vmatpush.msra.mxu0 0.0
    %3207 = vmatpush.msra.mxu0 0.0
    %3208 = vmatpush.msra.mxu0 %v2422
    %3209 = vmatpush.msra.mxu0 %v2421
    %3210 = vmatpush.msra.mxu0 %v2420
    %3211 = vmatpush.msra.mxu0 %v2419
    %3212 = vmatmul.f32.gmra.mxu0 %v3194
    %v3213 = vpop.f32.mrf.mxu0
    %v3214 = vadd.f32 0.0, %v3213
    %3215 = vdwg.mxu0
    %v3216 = vadd.f32 %v2467, %v3214
    %v3217 = vxor.u32 %v3216, 2147483648
    %v3218 = vmul.f32 %v3217, 1.442695
    %v3219 = vpow.pop %v3218
    %v3220 = vadd.f32 %v3219, 1.0
    %v3221 = vrcp.pop %v3220
    %v3222 = vmul.f32 %v3220, %v3221
    %v3223 = vsub.f32 1.0, %v3222
    %v3224 = vmul.f32 %v3221, %v3223
    %v3225 = vadd.f32 %v3221, %v3224
    %vm3226 = vweird.f32 %v3220
    %vm3227 = vweird.f32 %v3221
    %vm3228 = vmor %vm3226, %vm3227
    %v3229 = vsel %vm3228, %v3221, %v3225
    %v3230 = vand.u32 2147483647, %v3220
    %vm3231 = vcmp.eq.f32.partialorder %v3230, 8.507059e+37
    %v3232 = vand.u32 %v3220, 2147483648
    %v3233 = vor.u32 1.1754944e-38, %v3232
    %v3234 = vsel %vm3231, %v3233, %v3229
    %v3235 = vmul.f32 1.0, %v3234
    %v3236 = vtanh.pop %v3216
    %v3237 = vmul.f32 %v3235, %v3184
    %3239 = vrot.lane.b32.xlu0 %v3236, 64
    %v3240 = vpop.permute.xlu0 %3239
    %v3242 = vmul.f32 %v3235, %v3240
    %3244 = vrot.lane.b32.xlu0 %v3242, 32
    %v3245 = vpop.permute.xlu0 %3244
    %v3247 = vadd.f32 %v3237, %v3245
    %v3248 = vtanh.pop %v3247
    %3250 = vrot.lane.b32.xlu0 %v3248, 64
    %v3251 = vpop.permute.xlu0 %3250
    %v3253 = vmul.f32 %v3235, %v3251
    %3255 = vrot.lane.b32.xlu0 %v2410, 32
    %v3256 = vpop.permute.xlu0 %3255
    %3266 = vrot.lane.b32.xlu0 %v3253, 64
    %v3267 = vpop.permute.xlu0 %3266
    %3268 = vrot.lane.b32.xlu0 %v3190, 64
    %v3269 = vpop.permute.xlu0 %3268
    %3270 = vrot.lane.b32.xlu0 %v3127, 64
    %v3271 = vpop.permute.xlu0 %3270
    %3272 = vrot.lane.b32.xlu0 %v3064, 64
    %v3273 = vpop.permute.xlu0 %3272
    %3274 = vrot.lane.b32.xlu0 %v3001, 64
    %v3275 = vpop.permute.xlu0 %3274
    %3276 = vrot.lane.b32.xlu0 %v2938, 64
    %v3277 = vpop.permute.xlu0 %3276
    %3278 = vrot.lane.b32.xlu0 %v2875, 64
    %v3279 = vpop.permute.xlu0 %3278
    %3280 = vrot.lane.b32.xlu0 %v2812, 64
    %v3281 = vpop.permute.xlu0 %3280
    %v3290 = vsel %vm200, %v1972, %v3267
    %v3291 = vsel %vm200, %v2035, %v3269
    %v3292 = vsel %vm200, %v2098, %v3271
    %v3293 = vsel %vm200, %v2161, %v3273
    %v3294 = vsel %vm200, %v2224, %v3275
    %v3295 = vsel %vm200, %v2287, %v3277
    %v3296 = vsel %vm200, %v2350, %v3279
    %v3297 = vsel %vm200, %v3256, %v3281
    %v3298 = vld [vmem:[%s1] sm:$0x3]
    %v3299 = vld [vmem:[%s1 + $0x2] sm:$0x3]
    %v3300 = vld [vmem:[%s1 + $0x4] sm:$0x3]
    %v3301 = vld [vmem:[%s1 + $0x6] sm:$0x3]
    %v3302 = vld [vmem:[%s1 + $0x8] sm:$0x3]
    %v3303 = vld [vmem:[%s1 + $0xa] sm:$0x3]
    %v3304 = vld [vmem:[%s1 + $0xc] sm:$0x3]
    %v3305 = vld [vmem:[%s1 + $0xe] sm:$0x3]
    %3307 = vset.pattern.permute.xlu0 0
    %3308 = vperm.xlu0 %3307, %v3298
    %v3309 = vpop.permute.xlu0 %3308
    %3312 = vset.pattern.permute.xlu0 0
    %3313 = vperm.xlu0 %3312, %v3299
    %v3314 = vpop.permute.xlu0 %3313
    %3317 = vset.pattern.permute.xlu0 0
    %3318 = vperm.xlu0 %3317, %v3300
    %v3319 = vpop.permute.xlu0 %3318
    %3322 = vset.pattern.permute.xlu0 0
    %3323 = vperm.xlu0 %3322, %v3301
    %v3324 = vpop.permute.xlu0 %3323
    %3327 = vset.pattern.permute.xlu0 0
    %3328 = vperm.xlu0 %3327, %v3302
    %v3329 = vpop.permute.xlu0 %3328
    %3332 = vset.pattern.permute.xlu0 0
    %3333 = vperm.xlu0 %3332, %v3303
    %v3334 = vpop.permute.xlu0 %3333
    %3337 = vset.pattern.permute.xlu0 0
    %3338 = vperm.xlu0 %3337, %v3304
    %v3339 = vpop.permute.xlu0 %3338
    %3342 = vset.pattern.permute.xlu0 0
    %3343 = vperm.xlu0 %3342, %v3305
    %v3344 = vpop.permute.xlu0 %3343
    %v3346 = vmul.f32 %v3290, %v3309
    %v3347 = vmul.f32 %v3291, %v3314
    %v3348 = vmul.f32 %v3292, %v3319
    %v3349 = vmul.f32 %v3293, %v3324
    %v3350 = vmul.f32 %v3294, %v3329
    %v3351 = vmul.f32 %v3295, %v3334
    %v3352 = vmul.f32 %v3296, %v3339
    %v3353 = vmul.f32 %v3297, %v3344
    %vm3354 = vcmask 517120
    %3355 = vst.msk [vmem:[#allocation16] sm:$0x3] %vm3354, %v3346
    %3356 = vst.msk [vmem:[#allocation16 + $0x2] sm:$0x3] %vm3354, %v3347
    %3357 = vst.msk [vmem:[#allocation16 + $0x4] sm:$0x3] %vm3354, %v3348
    %3358 = vst.msk [vmem:[#allocation16 + $0x6] sm:$0x3] %vm3354, %v3349
    %3359 = vst.msk [vmem:[#allocation16 + $0x8] sm:$0x3] %vm3354, %v3350
    %3360 = vst.msk [vmem:[#allocation16 + $0xa] sm:$0x3] %vm3354, %v3351
    %3361 = vst.msk [vmem:[#allocation16 + $0xc] sm:$0x3] %vm3354, %v3352
    %3362 = vst.msk [vmem:[#allocation16 + $0xe] sm:$0x3] %vm3354, %v3353
    // Predicated region
    $region90: #{tpu_custom_call.1} parent=1 // pred_check
      _
    $region91: #{tpu_custom_call.1} parent=1 // pred_check_branch
      %3364 = sbr.rel (0) target = $region93
    $region92: #{tpu_custom_call.1} parent=1 // pred_region
      %3366 = vsyncadd [#allocation4], 0
      %s3367 = sshll.u32 [#allocation16], 4
      %s3368 = int_to_ptr.vmem [resolvable:$true] %s3367
      %s3369 = sshll.u32 %s14, 4
      %s3370 = int_to_ptr.hbm [resolvable:$true] %s3369
      %3375 = dma.vmem_to_hbm [thread:$0]  %s3368, 256, %s3370, [#allocation4], 32, 32, 2
    $region93: #{tpu_custom_call.1} parent=1 // pred_fallthru
      _
    // Predicated region
    $region94: #{tpu_custom_call.1} parent=1 // pred_check
      _
    $region95: #{tpu_custom_call.1} parent=1 // pred_check_branch
      %3377 = sbr.rel (0) target = $region97
    $region96: #{tpu_custom_call.1} parent=1 // pred_region
      %3379 = dma.done [#allocation4], 256
    $region97: #{tpu_custom_call.1} parent=1 // pred_fallthru
      _
    %3380 = vsyncpa [#allocation3], 1
    %3381 = vsyncpa [#allocation6], 1
    %3382 = vsyncpa [#allocation9], 1
    %3383 = vsyncpa [#allocation12], 1
    %3384 = vsyncpa [#allocation15], 1
    %3385 = vsyncpa [#allocation4], 1

</llo_original>
